<compile_context>
chip_gen: v7x
topology: tpu7x:2x2x1
jax: 0.10.0
libtpu: 0.0.40
codegen_flags: <defaults>
</compile_context>

<pallas_src>
import functools
import numpy as np
import jax
import jax.numpy as jnp
from jax.experimental import pallas as pl
from jax.experimental.pallas import tpu as pltpu


# ----------------------------- tiling helpers ------------------------------

def _round_up(x, m):
    return ((x + m - 1) // m) * m


def _pick_tile(dim, pref, align):
    # Tile = pref if the dim is large, else the whole (alignment-padded) dim.
    if dim >= pref:
        return pref
    return _round_up(dim, align)


def _divisor_tile(dim, prefs=(512, 256, 128)):
    # Largest preferred tile that evenly divides a 128-multiple dim.
    for t in prefs:
        if dim % t == 0:
            return t
    return dim


def _vmem_limit_bytes():
    # Generation-aware: most of physical VMEM (64 MiB v7x / 128 MiB v5e,v6e),
    # capped at 100 MiB, with a safe fallback.
    try:
        cap = int(pltpu.get_tpu_info().vmem_capacity_bytes)
        return min((cap * 3) // 4, 100 * 1024 * 1024)
    except Exception:
        return 48 * 1024 * 1024


_VMEM_LIMIT = _vmem_limit_bytes()


# ----------------------------- Pallas kernels ------------------------------

def _ln_kernel(x_ref, g_ref, b_ref, o_ref, *, eps):
    x = x_ref[...]
    mu = jnp.mean(x, axis=-1, keepdims=True)
    var = jnp.mean(jnp.square(x - mu), axis=-1, keepdims=True)
    xn = (x - mu) * jax.lax.rsqrt(var + eps)
    o_ref[...] = (xn * g_ref[...] + b_ref[...]).astype(o_ref.dtype)


def pallas_layernorm(x2d, gamma, beta, eps=1e-6):
    M, D = x2d.shape
    tm = _pick_tile(M, 512, 8)
    Mp = _round_up(M, tm)
    xp = x2d.astype(jnp.float32)
    if Mp != M:
        xp = jnp.pad(xp, ((0, Mp - M), (0, 0)))
    g = jnp.reshape(gamma, (1, D)).astype(jnp.float32)
    b = jnp.reshape(beta, (1, D)).astype(jnp.float32)
    out = pl.pallas_call(
        functools.partial(_ln_kernel, eps=eps),
        out_shape=jax.ShapeDtypeStruct((Mp, D), jnp.float32),
        grid=(Mp // tm,),
        in_specs=[pl.BlockSpec((tm, D), lambda i: (i, 0)),
                  pl.BlockSpec((1, D), lambda i: (0, 0)),
                  pl.BlockSpec((1, D), lambda i: (0, 0))],
        out_specs=pl.BlockSpec((tm, D), lambda i: (i, 0)),
        compiler_params=pltpu.CompilerParams(
            dimension_semantics=("parallel",),
            vmem_limit_bytes=_VMEM_LIMIT),
    )(xp, g, b)
    return out[:M] if Mp != M else out


def _mha_kernel(ids_ref, xq_ref, xkv_ref, wq_ref, wk_ref, wv_ref, wo_ref,
                g_ref, bln_ref, o_ref, *, n_head, d_k, causal, pad_idx, eps):
    # Per batch element: fused QKV projection -> per-head scores (NT matmul,
    # no transposes) -> in-kernel pad/causal mask -> f32 softmax (approx
    # reciprocal) -> P@V -> single (Lq, H*dv)@(H*dv, D) output projection ->
    # + residual -> LayerNorm, written lane-dense as (Lq, D).
    xq = xq_ref[...]                                   # (Lq, D) f32 residual
    xq_b = xq.astype(jnp.bfloat16)
    xkv_b = xkv_ref[...].astype(jnp.bfloat16)          # (Lk, D)
    Lq = xq.shape[0]
    Lk = xkv_b.shape[0]
    scale = 1.0 / float(np.sqrt(d_k))                  # temperature = d_k ** 0.5

    keep = ids_ref[...] != pad_idx                     # (1, Lk) key pad mask
    if causal:
        row = jax.lax.broadcasted_iota(jnp.int32, (Lq, Lk), 0)
        col = jax.lax.broadcasted_iota(jnp.int32, (Lq, Lk), 1)
        keep = jnp.logical_and(keep, col <= row)       # (Lq, Lk)

    ctx_heads = []
    for h in range(n_head):                            # static, small H; heads on
        qh = jnp.dot(xq_b, wq_ref[h],                  # leading ref axis -> no
                     preferred_element_type=jnp.float32)     # lane slicing
        kh = jnp.dot(xkv_b, wk_ref[h], preferred_element_type=jnp.float32)
        vh = jnp.dot(xkv_b, wv_ref[h], preferred_element_type=jnp.float32)
        s = jax.lax.dot_general(                       # q @ k^T (NT)
            qh.astype(jnp.bfloat16), kh.astype(jnp.bfloat16),
            dimension_numbers=(((1,), (1,)), ((), ())),
            preferred_element_type=jnp.float32) * scale
        s = jnp.where(keep, s, -1e9)
        s = s - jnp.max(s, axis=-1, keepdims=True)
        p = jnp.exp(s)
        p = p * pl.reciprocal(jnp.sum(p, axis=-1, keepdims=True), approx=True)
        ctx_heads.append(jnp.dot(p.astype(jnp.bfloat16), vh.astype(jnp.bfloat16),
                                 preferred_element_type=jnp.float32))

    ctx = jnp.concatenate(ctx_heads, axis=-1) if n_head > 1 else ctx_heads[0]
    y = jnp.dot(ctx.astype(jnp.bfloat16), wo_ref[...],
                preferred_element_type=jnp.float32) + xq

    mu = jnp.mean(y, axis=-1, keepdims=True)
    var = jnp.mean(jnp.square(y - mu), axis=-1, keepdims=True)
    yn = (y - mu) * jax.lax.rsqrt(var + eps)
    o_ref[...] = (yn * g_ref[...] + bln_ref[...]).astype(o_ref.dtype)


def pallas_mha(x_q, x_kv, key_ids, p, *, causal, pad_idx, eps=1e-6):
    # x_q: (B, Lq, D) f32   x_kv: (B, Lk, D) f32   key_ids: (B, 1, Lk) int32
    # p["w_q3"/"w_k3"]: (H, D, d_k) bf16, p["w_v3"]: (H, D, d_v) bf16,
    # p["w_o"]: (H*d_v, D) bf16, p["ln_g"/"ln_b"]: (1, D) f32
    B, Lq, D = x_q.shape
    Lk = x_kv.shape[1]
    H, _, dk = p["w_q3"].shape
    dv = p["w_v3"].shape[2]
    # TODO(synk): add flash-style Lk tiling + Lq/head-parallel grid axes for
    #             long sequences; here everything fits VMEM per batch element.
    kernel = functools.partial(_mha_kernel, n_head=H, d_k=dk,
                               causal=causal, pad_idx=pad_idx, eps=eps)
    return pl.pallas_call(
        kernel,
        out_shape=jax.ShapeDtypeStruct((B, Lq, D), jnp.float32),
        grid=(B,),
        in_specs=[
            pl.BlockSpec((None, 1, Lk), lambda b: (b, 0, 0)),
            pl.BlockSpec((None, Lq, D), lambda b: (b, 0, 0)),
            pl.BlockSpec((None, Lk, D), lambda b: (b, 0, 0)),
            pl.BlockSpec((H, D, dk), lambda b: (0, 0, 0)),
            pl.BlockSpec((H, D, dk), lambda b: (0, 0, 0)),
            pl.BlockSpec((H, D, dv), lambda b: (0, 0, 0)),
            pl.BlockSpec((H * dv, D), lambda b: (0, 0)),
            pl.BlockSpec((1, D), lambda b: (0, 0)),
            pl.BlockSpec((1, D), lambda b: (0, 0)),
        ],
        out_specs=pl.BlockSpec((None, Lq, D), lambda b: (b, 0, 0)),
        compiler_params=pltpu.CompilerParams(
            dimension_semantics=("parallel",),
            vmem_limit_bytes=_VMEM_LIMIT),
    )(key_ids.astype(jnp.int32), x_q.astype(jnp.float32),
      x_kv.astype(jnp.float32), p["w_q3"], p["w_k3"], p["w_v3"], p["w_o"],
      p["ln_g"], p["ln_b"])


def _ffn_kernel(x_ref, w1_ref, b1_ref, w2_ref, b2_ref, g_ref, bln_ref, o_ref,
                acc_ref, *, eps):
    # Fully fused FFN: per (tm, D) row tile, loop d_inner in tk chunks:
    #   h = relu(x @ w1[:, chunk] + b1[chunk]);  acc += h @ w2[chunk, :]
    # then residual + LayerNorm epilogue.  The (M, d_inner) intermediate never
    # leaves VMEM.
    j = pl.program_id(1)

    @pl.when(j == 0)
    def _():
        acc_ref[...] = jnp.zeros_like(acc_ref)

    x_b = x_ref[...].astype(jnp.bfloat16)
    h = jnp.dot(x_b, w1_ref[...], preferred_element_type=jnp.float32) + b1_ref[...]
    h = jnp.maximum(h, 0.0)
    acc_ref[...] += jnp.dot(h.astype(jnp.bfloat16), w2_ref[...],
                            preferred_element_type=jnp.float32)

    @pl.when(j == pl.num_programs(1) - 1)
    def _():
        y = acc_ref[...] + b2_ref[...] + x_ref[...]
        mu = jnp.mean(y, axis=-1, keepdims=True)
        var = jnp.mean(jnp.square(y - mu), axis=-1, keepdims=True)
        yn = (y - mu) * jax.lax.rsqrt(var + eps)
        o_ref[...] = (yn * g_ref[...] + bln_ref[...]).astype(o_ref.dtype)


def pallas_ffn(x, p, eps=1e-6):
    B, L, D = x.shape
    M = B * L
    dffp = p["w1"].shape[1]                  # pre-padded to a 128 multiple
    tm = _pick_tile(M, 256, 8)
    tk = _divisor_tile(dffp)
    Mp = _round_up(M, tm)
    xp = x.reshape(M, D).astype(jnp.float32)
    if Mp != M:
        xp = jnp.pad(xp, ((0, Mp - M), (0, 0)))
    out = pl.pallas_call(
        functools.partial(_ffn_kernel, eps=eps),
        out_shape=jax.ShapeDtypeStruct((Mp, D), jnp.float32),
        grid=(Mp // tm, dffp // tk),
        in_specs=[
            pl.BlockSpec((tm, D), lambda i, k: (i, 0)),
            pl.BlockSpec((D, tk), lambda i, k: (0, k)),
            pl.BlockSpec((1, tk), lambda i, k: (0, k)),
            pl.BlockSpec((tk, D), lambda i, k: (k, 0)),
            pl.BlockSpec((1, D), lambda i, k: (0, 0)),
            pl.BlockSpec((1, D), lambda i, k: (0, 0)),
            pl.BlockSpec((1, D), lambda i, k: (0, 0)),
        ],
        out_specs=pl.BlockSpec((tm, D), lambda i, k: (i, 0)),
        scratch_shapes=[pltpu.VMEM((tm, D), jnp.float32)],
        compiler_params=pltpu.CompilerParams(
            dimension_semantics=("parallel", "arbitrary"),
            vmem_limit_bytes=_VMEM_LIMIT),
    )(xp, p["w1"], p["b1"], p["w2"], p["b2"], p["ln_g"], p["ln_b"])
    out = out[:M] if Mp != M else out
    return out.reshape(B, L, D)


def _proj_kernel(x_ref, w_ref, o_ref, *, out_scale):
    y = jnp.dot(x_ref[...], w_ref[...], preferred_element_type=jnp.float32)
    if out_scale is not None:
        y = y * out_scale
    o_ref[...] = y.astype(o_ref.dtype)


def pallas_vocab_proj(x2d, w_bf16, out_scale=None):
    # x2d: (M, D) f32; w: (D, Vp) bf16, pre-padded so Vp % 128 == 0 (lane-dense
    # unmasked stores).  K (= d_model) is kept fully resident -> no K grid.
    M, D = x2d.shape
    Vp = w_bf16.shape[1]
    tm = _pick_tile(M, 256, 8)
    tn = _divisor_tile(Vp)
    Mp = _round_up(M, tm)
    xp = x2d.astype(jnp.bfloat16)
    if Mp != M:
        xp = jnp.pad(xp, ((0, Mp - M), (0, 0)))
    out = pl.pallas_call(
        functools.partial(_proj_kernel, out_scale=out_scale),
        out_shape=jax.ShapeDtypeStruct((Mp, Vp), jnp.float32),
        grid=(Mp // tm, Vp // tn),
        in_specs=[pl.BlockSpec((tm, D), lambda i, j: (i, 0)),
                  pl.BlockSpec((D, tn), lambda i, j: (0, j))],
        out_specs=pl.BlockSpec((tm, tn), lambda i, j: (i, j)),
        compiler_params=pltpu.CompilerParams(
            dimension_semantics=("parallel", "parallel"),
            vmem_limit_bytes=_VMEM_LIMIT),
    )(xp, w_bf16)
    return out[:M] if Mp != M else out


# ------------------------------ model glue ---------------------------------

def sinusoid_table(n_position, d_hid):
    pos = np.arange(n_position)[:, None].astype(np.float64)
    hid = np.arange(d_hid)[None, :]
    angle = pos / np.power(10000.0, 2 * (hid // 2) / d_hid)
    table = np.zeros((n_position, d_hid), dtype=np.float32)
    table[:, 0::2] = np.sin(angle[:, 0::2])
    table[:, 1::2] = np.cos(angle[:, 1::2])
    return jnp.asarray(table)


def run_encoder(src_seq, P, cfg):
    B, L = src_seq.shape
    D = cfg["d_model"]
    x = P["emb"][src_seq]                                  # embedding lookup (glue)
    if cfg["scale_emb"]:
        x = x * (D ** 0.5)
    x = x + P["pos_table"][:L][None, :, :]
    x = pallas_layernorm(x.reshape(B * L, D), P["enc_ln_g"], P["enc_ln_b"]).reshape(B, L, D)
    src_ids = src_seq.reshape(B, 1, L)
    for lp in P["enc_layers"]:
        x = pallas_mha(x, x, src_ids, lp["slf"], causal=False, pad_idx=cfg["pad_idx"])
        x = pallas_ffn(x, lp["ffn"])
    return x


def run_decoder(trg_seq, src_seq, enc_out, P, cfg):
    B, L = trg_seq.shape
    D = cfg["d_model"]
    x = P["emb"][trg_seq]                                  # shared embedding
    if cfg["scale_emb"]:
        x = x * (D ** 0.5)
    x = x + P["pos_table"][:L][None, :, :]
    x = pallas_layernorm(x.reshape(B * L, D), P["dec_ln_g"], P["dec_ln_b"]).reshape(B, L, D)
    trg_ids = trg_seq.reshape(B, 1, L)
    src_ids = src_seq.reshape(B, 1, src_seq.shape[1])
    for lp in P["dec_layers"]:
        x = pallas_mha(x, x, trg_ids, lp["slf"], causal=True, pad_idx=cfg["pad_idx"])
        x = pallas_mha(x, enc_out, src_ids, lp["crs"], causal=False, pad_idx=cfg["pad_idx"])
        x = pallas_ffn(x, lp["ffn"])
    return x


def transformer_forward(input_sentences, input_sentence_length, input_conversation_length,
                        target_sentences, input_images, input_images_length, P, cfg):
    # (input_sentence_length, input_conversation_length, input_images,
    #  input_images_length are unused by the reference forward pass)
    enc_out = run_encoder(input_sentences, P, cfg)
    dec_out = run_decoder(target_sentences, input_sentences, enc_out, P, cfg)
    B, Lt, D = dec_out.shape
    # trg_word_prj shares weight with the embedding; persistent pre-transposed,
    # pre-padded bf16 (D, Vp) copy, scale_prj folded into the matmul epilogue.
    scale = (D ** -0.5) if cfg["scale_prj"] else None
    logits = pallas_vocab_proj(dec_out.reshape(B * Lt, D), P["emb_t"], out_scale=scale)
    logits = logits[:, :cfg["vocab_size"]]
    return logits.reshape(B, Lt, cfg["vocab_size"])


# ---------------------------- parameter init --------------------------------

def init_params(key, cfg):
    D, H = cfg["d_model"], cfg["n_head"]
    dk, dv, dff, V = cfg["d_k"], cfg["d_v"], cfg["d_inner"], cfg["vocab_size"]
    keys = iter(jax.random.split(key, 512))

    def xav(shape):  # xavier_uniform
        fan_in, fan_out = shape[-2], shape[-1]
        a = float(np.sqrt(6.0 / (fan_in + fan_out)))
        return jax.random.uniform(next(keys), shape, jnp.float32, -a, a)

    def attn_block():
        # Per-head weight layout (H, D, d_k): heads indexed on a leading ref
        # axis in-kernel (no lane slicing / transposes); bf16 storage.
        wq = xav((D, H * dk)).reshape(D, H, dk).transpose(1, 0, 2)
        wk = xav((D, H * dk)).reshape(D, H, dk).transpose(1, 0, 2)
        wv = xav((D, H * dv)).reshape(D, H, dv).transpose(1, 0, 2)
        wo = xav((H * dv, D))
        return dict(w_q3=wq.astype(jnp.bfloat16), w_k3=wk.astype(jnp.bfloat16),
                    w_v3=wv.astype(jnp.bfloat16), w_o=wo.astype(jnp.bfloat16),
                    ln_g=jnp.ones((1, D), jnp.float32),
                    ln_b=jnp.zeros((1, D), jnp.float32))

    dffp = _round_up(dff, 128)

    def ffn_block():
        # Pre-pad the d_inner dim to a 128 multiple ONCE (zero pads keep the
        # math exact: relu(0 + 0) = 0 and padded w2 rows are 0).
        w1 = jnp.pad(xav((D, dff)), ((0, 0), (0, dffp - dff))).astype(jnp.bfloat16)
        w2 = jnp.pad(xav((dff, D)), ((0, dffp - dff), (0, 0))).astype(jnp.bfloat16)
        return dict(w1=w1, b1=jnp.zeros((1, dffp), jnp.float32),
                    w2=w2, b2=jnp.zeros((1, D), jnp.float32),
                    ln_g=jnp.ones((1, D), jnp.float32),
                    ln_b=jnp.zeros((1, D), jnp.float32))

    emb = xav((V, D))                                   # shared src/trg/prj weight
    Vp = _round_up(V, 128)
    emb_t = jnp.pad(emb.T, ((0, 0), (0, Vp - V))).astype(jnp.bfloat16)

    P = dict(
        emb=emb,
        emb_t=emb_t,                                    # persistent padded bf16 copy
        pos_table=sinusoid_table(cfg["n_position"], D),
        enc_ln_g=jnp.ones((1, D), jnp.float32), enc_ln_b=jnp.zeros((1, D), jnp.float32),
        dec_ln_g=jnp.ones((1, D), jnp.float32), dec_ln_b=jnp.zeros((1, D), jnp.float32),
        enc_layers=[dict(slf=attn_block(), ffn=ffn_block())
                    for _ in range(cfg["n_layers"])],
        dec_layers=[dict(slf=attn_block(), crs=attn_block(), ffn=ffn_block())
                    for _ in range(cfg["n_layers"])],
    )
    return P


# --------------------------------- main -------------------------------------

if __name__ == "__main__":
    cfg = dict(vocab_size=32, pad_idx=0, sos_idx=1, n_position=16,
               d_model=32, d_inner=64, n_layers=2, n_head=2, d_k=16, d_v=16,
               scale_emb=False, scale_prj=True)   # scale_emb_or_prj == 'prj'

    key = jax.random.PRNGKey(0)
    kp, ks, kt = jax.random.split(key, 3)
    P = init_params(kp, cfg)

    B, L = 2, 8
    input_sentences = jax.random.randint(ks, (B, L), 0, cfg["vocab_size"], dtype=jnp.int32)
    target_sentences = jax.random.randint(kt, (B, L), 0, cfg["vocab_size"], dtype=jnp.int32)
    input_sentence_length = jnp.full((B,), L, jnp.int32)           # unused by forward
    input_conversation_length = jnp.array([B], jnp.int32)          # unused by forward
    input_images = jnp.zeros((B, 4, 16, 16), jnp.float32)          # unused by forward
    input_images_length = jnp.full((B,), 1, jnp.int32)             # unused by forward

    fwd = jax.jit(lambda params, src, trg: transformer_forward(
        src, input_sentence_length, input_conversation_length,
        trg, input_images, input_images_length, params, cfg))

    logits = fwd(P, input_sentences, target_sentences)
    jax.block_until_ready(logits)
    assert logits.shape == (B, L, cfg["vocab_size"])
    assert bool(jnp.all(jnp.isfinite(logits)))
    print("KERNEL_OK")
</pallas_src>

<mosaic_0001>
module attributes {stable_mosaic.version = 11 : i64} {
  func.func @_ln_kernel(%arg0: i32, %arg1: memref<16x32xf32, #tpu.memory_space<vmem>>, %arg2: memref<1x32xf32, #tpu.memory_space<vmem>>, %arg3: memref<1x32xf32, #tpu.memory_space<vmem>>, %arg4: memref<16x32xf32, #tpu.memory_space<vmem>>) attributes {dimension_semantics = [#tpu.dimension_semantics<parallel>], iteration_bounds = array<i64: 1>, scalar_prefetch = 0 : i64, scratch_operands = 0 : i64, tpu.core_type = #tpu.core_type<tc>, window_params = [{transform_indices = @transform_0, window_bounds = array<i64: 16, 32>}, {pipeline_mode = #tpu.pipeline_mode<synchronous>, transform_indices = @transform_1, window_bounds = array<i64: 1, 32>}, {pipeline_mode = #tpu.pipeline_mode<synchronous>, transform_indices = @transform_2, window_bounds = array<i64: 1, 32>}, {transform_indices = @transform_3, window_bounds = array<i64: 16, 32>}]} {
    %c0 = arith.constant 0 : index
    %c0_0 = arith.constant 0 : index
    %0 = vector.load %arg1[%c0, %c0_0] : memref<16x32xf32, #tpu.memory_space<vmem>>, vector<16x32xf32>
    %cst = arith.constant dense<0.000000e+00> : vector<16xf32>
    %1 = vector.multi_reduction <add>, %0, %cst [1] : vector<16x32xf32> to vector<16xf32>
    %2 = vector.shape_cast %1 : vector<16xf32> to vector<16x1xf32>
    %cst_1 = arith.constant 3.200000e+01 : f32
    %3 = vector.broadcast %cst_1 : f32 to vector<16x1xf32>
    %4 = arith.divf %2, %3 : vector<16x1xf32>
    %5 = vector.broadcast %4 : vector<16x1xf32> to vector<16x32xf32>
    %6 = arith.subf %0, %5 : vector<16x32xf32>
    %7 = arith.mulf %6, %6 : vector<16x32xf32>
    %cst_2 = arith.constant dense<0.000000e+00> : vector<16xf32>
    %8 = vector.multi_reduction <add>, %7, %cst_2 [1] : vector<16x32xf32> to vector<16xf32>
    %9 = vector.shape_cast %8 : vector<16xf32> to vector<16x1xf32>
    %cst_3 = arith.constant 3.200000e+01 : f32
    %10 = vector.broadcast %cst_3 : f32 to vector<16x1xf32>
    %11 = arith.divf %9, %10 : vector<16x1xf32>
    %12 = vector.broadcast %4 : vector<16x1xf32> to vector<16x32xf32>
    %13 = arith.subf %0, %12 : vector<16x32xf32>
    %cst_4 = arith.constant 9.99999997E-7 : f32
    %14 = vector.broadcast %cst_4 : f32 to vector<16x1xf32>
    %15 = arith.addf %11, %14 : vector<16x1xf32>
    %16 = math.rsqrt %15 : vector<16x1xf32>
    %17 = vector.broadcast %16 : vector<16x1xf32> to vector<16x32xf32>
    %18 = arith.mulf %13, %17 : vector<16x32xf32>
    %c0_5 = arith.constant 0 : index
    %c0_6 = arith.constant 0 : index
    %19 = vector.load %arg2[%c0_5, %c0_6] : memref<1x32xf32, #tpu.memory_space<vmem>>, vector<1x32xf32>
    %20 = vector.broadcast %19 : vector<1x32xf32> to vector<16x32xf32>
    %21 = arith.mulf %18, %20 : vector<16x32xf32>
    %c0_7 = arith.constant 0 : index
    %c0_8 = arith.constant 0 : index
    %22 = vector.load %arg3[%c0_7, %c0_8] : memref<1x32xf32, #tpu.memory_space<vmem>>, vector<1x32xf32>
    %23 = vector.broadcast %22 : vector<1x32xf32> to vector<16x32xf32>
    %24 = arith.addf %21, %23 : vector<16x32xf32>
    %c0_9 = arith.constant 0 : index
    %c0_10 = arith.constant 0 : index
    %25 = vector.load %arg4[%c0_9, %c0_10] : memref<16x32xf32, #tpu.memory_space<vmem>>, vector<16x32xf32>
    tpu.vector_store %arg4[%c0_9, %c0_10], %24 {strides = array<i32>} : memref<16x32xf32, #tpu.memory_space<vmem>>, vector<16x32xf32>,
    return
  }
  func.func @transform_0(%arg0: i32) -> (i32, i32) {
    %c0_i32 = arith.constant 0 : i32
    %c0_i32_0 = arith.constant 0 : i32
    return %arg0, %c0_i32 : i32, i32
  }
  func.func @transform_1(%arg0: i32) -> (i32, i32) {
    %c0_i32 = arith.constant 0 : i32
    %c0_i32_0 = arith.constant 0 : i32
    %c0_i32_1 = arith.constant 0 : i32
    return %c0_i32, %c0_i32_0 : i32, i32
  }
  func.func @transform_2(%arg0: i32) -> (i32, i32) {
    %c0_i32 = arith.constant 0 : i32
    %c0_i32_0 = arith.constant 0 : i32
    %c0_i32_1 = arith.constant 0 : i32
    return %c0_i32, %c0_i32_0 : i32, i32
  }
  func.func @transform_3(%arg0: i32) -> (i32, i32) {
    %c0_i32 = arith.constant 0 : i32
    %c0_i32_0 = arith.constant 0 : i32
    return %arg0, %c0_i32 : i32, i32
  }
}

module attributes {stable_mosaic.version = 11 : i64} {
  func.func @_ffn_kernel(%arg0: i32, %arg1: i32, %arg2: memref<16x32xf32, #tpu.memory_space<vmem>>, %arg3: memref<32x128xbf16, #tpu.memory_space<vmem>>, %arg4: memref<1x128xf32, #tpu.memory_space<vmem>>, %arg5: memref<128x32xbf16, #tpu.memory_space<vmem>>, %arg6: memref<1x32xf32, #tpu.memory_space<vmem>>, %arg7: memref<1x32xf32, #tpu.memory_space<vmem>>, %arg8: memref<1x32xf32, #tpu.memory_space<vmem>>, %arg9: memref<16x32xf32, #tpu.memory_space<vmem>>, %arg10: memref<16x32xf32, #tpu.memory_space<vmem>>) attributes {dimension_semantics = [#tpu.dimension_semantics<parallel>, #tpu.dimension_semantics<arbitrary>], iteration_bounds = array<i64: 1, 1>, scalar_prefetch = 0 : i64, scratch_operands = 1 : i64, tpu.core_type = #tpu.core_type<tc>, window_params = [{transform_indices = @transform_0, window_bounds = array<i64: 16, 32>}, {transform_indices = @transform_1, window_bounds = array<i64: 32, 128>}, {transform_indices = @transform_2, window_bounds = array<i64: 1, 128>}, {transform_indices = @transform_3, window_bounds = array<i64: 128, 32>}, {pipeline_mode = #tpu.pipeline_mode<synchronous>, transform_indices = @transform_4, window_bounds = array<i64: 1, 32>}, {pipeline_mode = #tpu.pipeline_mode<synchronous>, transform_indices = @transform_5, window_bounds = array<i64: 1, 32>}, {pipeline_mode = #tpu.pipeline_mode<synchronous>, transform_indices = @transform_6, window_bounds = array<i64: 1, 32>}, {transform_indices = @transform_7, window_bounds = array<i64: 16, 32>}]} {
    %c0_i32 = arith.constant 0 : i32
    %0 = arith.cmpi eq, %arg1, %c0_i32 : i32
    %1 = arith.extui %0 : i1 to i32
    %c0_i32_0 = arith.constant 0 : i32
    %2 = arith.cmpi ne, %1, %c0_i32_0 : i32
    scf.if %2 {
      %cst_16 = arith.constant 0.000000e+00 : f32
      %21 = vector.broadcast %cst_16 : f32 to vector<16x32xf32>
      %c0_17 = arith.constant 0 : index
      %c0_18 = arith.constant 0 : index
      %22 = vector.load %arg10[%c0_17, %c0_18] : memref<16x32xf32, #tpu.memory_space<vmem>>, vector<16x32xf32>
      tpu.vector_store %arg10[%c0_17, %c0_18], %21 {strides = array<i32>} : memref<16x32xf32, #tpu.memory_space<vmem>>, vector<16x32xf32>,
    } else {
    }
    %c0 = arith.constant 0 : index
    %c0_1 = arith.constant 0 : index
    %3 = vector.load %arg2[%c0, %c0_1] : memref<16x32xf32, #tpu.memory_space<vmem>>, vector<16x32xf32>
    %4 = arith.truncf %3 : vector<16x32xf32> to vector<16x32xbf16>
    %c0_2 = arith.constant 0 : index
    %c0_3 = arith.constant 0 : index
    %5 = vector.load %arg3[%c0_2, %c0_3] : memref<32x128xbf16, #tpu.memory_space<vmem>>, vector<32x128xbf16>
    %cst = arith.constant dense<0.000000e+00> : vector<16x128xf32>
    %6 = tpu.matmul %4, %5, %cst {dimension_numbers = #tpu.dot_dimension_numbers<[1], [0], [0], [1], [0, 0, 1, 1], [], []>} : vector<16x32xbf16>, vector<32x128xbf16>, vector<16x128xf32> -> vector<16x128xf32>
    %c0_4 = arith.constant 0 : index
    %c0_5 = arith.constant 0 : index
    %7 = vector.load %arg4[%c0_4, %c0_5] : memref<1x128xf32, #tpu.memory_space<vmem>>, vector<1x128xf32>
    %8 = vector.broadcast %7 : vector<1x128xf32> to vector<16x128xf32>
    %9 = arith.addf %6, %8 : vector<16x128xf32>
    %cst_6 = arith.constant 0.000000e+00 : f32
    %10 = vector.broadcast %cst_6 : f32 to vector<16x128xf32>
    %11 = arith.maximumf %9, %10 : vector<16x128xf32>
    %c0_7 = arith.constant 0 : index
    %c0_8 = arith.constant 0 : index
    %12 = vector.load %arg10[%c0_7, %c0_8] : memref<16x32xf32, #tpu.memory_space<vmem>>, vector<16x32xf32>
    %13 = arith.truncf %11 : vector<16x128xf32> to vector<16x128xbf16>
    %c0_9 = arith.constant 0 : index
    %c0_10 = arith.constant 0 : index
    %14 = vector.load %arg5[%c0_9, %c0_10] : memref<128x32xbf16, #tpu.memory_space<vmem>>, vector<128x32xbf16>
    %cst_11 = arith.constant dense<0.000000e+00> : vector<16x32xf32>
    %15 = tpu.matmul %13, %14, %cst_11 {dimension_numbers = #tpu.dot_dimension_numbers<[1], [0], [0], [1], [0, 0, 1, 1], [], []>} : vector<16x128xbf16>, vector<128x32xbf16>, vector<16x32xf32> -> vector<16x32xf32>
    %16 = arith.addf %12, %15 : vector<16x32xf32>
    %c0_12 = arith.constant 0 : index
    %c0_13 = arith.constant 0 : index
    %17 = vector.load %arg10[%c0_12, %c0_13] : memref<16x32xf32, #tpu.memory_space<vmem>>, vector<16x32xf32>
    tpu.vector_store %arg10[%c0_12, %c0_13], %16 {strides = array<i32>} : memref<16x32xf32, #tpu.memory_space<vmem>>, vector<16x32xf32>,
    %c0_i32_14 = arith.constant 0 : i32
    %18 = arith.cmpi eq, %arg1, %c0_i32_14 : i32
    %19 = arith.extui %18 : i1 to i32
    %c0_i32_15 = arith.constant 0 : i32
    %20 = arith.cmpi ne, %19, %c0_i32_15 : i32
    scf.if %20 {
      %c0_16 = arith.constant 0 : index
      %c0_17 = arith.constant 0 : index
      %21 = vector.load %arg10[%c0_16, %c0_17] : memref<16x32xf32, #tpu.memory_space<vmem>>, vector<16x32xf32>
      %c0_18 = arith.constant 0 : index
      %c0_19 = arith.constant 0 : index
      %22 = vector.load %arg6[%c0_18, %c0_19] : memref<1x32xf32, #tpu.memory_space<vmem>>, vector<1x32xf32>
      %23 = vector.broadcast %22 : vector<1x32xf32> to vector<16x32xf32>
      %24 = arith.addf %21, %23 : vector<16x32xf32>
      %c0_20 = arith.constant 0 : index
      %c0_21 = arith.constant 0 : index
      %25 = vector.load %arg2[%c0_20, %c0_21] : memref<16x32xf32, #tpu.memory_space<vmem>>, vector<16x32xf32>
      %26 = arith.addf %24, %25 : vector<16x32xf32>
      %cst_22 = arith.constant dense<0.000000e+00> : vector<16xf32>
      %27 = vector.multi_reduction <add>, %26, %cst_22 [1] : vector<16x32xf32> to vector<16xf32>
      %28 = vector.shape_cast %27 : vector<16xf32> to vector<16x1xf32>
      %cst_23 = arith.constant 3.200000e+01 : f32
      %29 = vector.broadcast %cst_23 : f32 to vector<16x1xf32>
      %30 = arith.divf %28, %29 : vector<16x1xf32>
      %31 = vector.broadcast %30 : vector<16x1xf32> to vector<16x32xf32>
      %32 = arith.subf %26, %31 : vector<16x32xf32>
      %33 = arith.mulf %32, %32 : vector<16x32xf32>
      %cst_24 = arith.constant dense<0.000000e+00> : vector<16xf32>
      %34 = vector.multi_reduction <add>, %33, %cst_24 [1] : vector<16x32xf32> to vector<16xf32>
      %35 = vector.shape_cast %34 : vector<16xf32> to vector<16x1xf32>
      %cst_25 = arith.constant 3.200000e+01 : f32
      %36 = vector.broadcast %cst_25 : f32 to vector<16x1xf32>
      %37 = arith.divf %35, %36 : vector<16x1xf32>
      %38 = vector.broadcast %30 : vector<16x1xf32> to vector<16x32xf32>
      %39 = arith.subf %26, %38 : vector<16x32xf32>
      %cst_26 = arith.constant 9.99999997E-7 : f32
      %40 = vector.broadcast %cst_26 : f32 to vector<16x1xf32>
      %41 = arith.addf %37, %40 : vector<16x1xf32>
      %42 = math.rsqrt %41 : vector<16x1xf32>
      %43 = vector.broadcast %42 : vector<16x1xf32> to vector<16x32xf32>
      %44 = arith.mulf %39, %43 : vector<16x32xf32>
      %c0_27 = arith.constant 0 : index
      %c0_28 = arith.constant 0 : index
      %45 = vector.load %arg7[%c0_27, %c0_28] : memref<1x32xf32, #tpu.memory_space<vmem>>, vector<1x32xf32>
      %46 = vector.broadcast %45 : vector<1x32xf32> to vector<16x32xf32>
      %47 = arith.mulf %44, %46 : vector<16x32xf32>
      %c0_29 = arith.constant 0 : index
      %c0_30 = arith.constant 0 : index
      %48 = vector.load %arg8[%c0_29, %c0_30] : memref<1x32xf32, #tpu.memory_space<vmem>>, vector<1x32xf32>
      %49 = vector.broadcast %48 : vector<1x32xf32> to vector<16x32xf32>
      %50 = arith.addf %47, %49 : vector<16x32xf32>
      %c0_31 = arith.constant 0 : index
      %c0_32 = arith.constant 0 : index
      %51 = vector.load %arg9[%c0_31, %c0_32] : memref<16x32xf32, #tpu.memory_space<vmem>>, vector<16x32xf32>
      tpu.vector_store %arg9[%c0_31, %c0_32], %50 {strides = array<i32>} : memref<16x32xf32, #tpu.memory_space<vmem>>, vector<16x32xf32>,
    } else {
    }
    return
  }
  func.func @transform_0(%arg0: i32, %arg1: i32) -> (i32, i32) {
    %c0_i32 = arith.constant 0 : i32
    %c0_i32_0 = arith.constant 0 : i32
    return %arg0, %c0_i32 : i32, i32
  }
  func.func @transform_1(%arg0: i32, %arg1: i32) -> (i32, i32) {
    %c0_i32 = arith.constant 0 : i32
    %c0_i32_0 = arith.constant 0 : i32
    return %c0_i32, %arg1 : i32, i32
  }
  func.func @transform_2(%arg0: i32, %arg1: i32) -> (i32, i32) {
    %c0_i32 = arith.constant 0 : i32
    %c0_i32_0 = arith.constant 0 : i32
    return %c0_i32, %arg1 : i32, i32
  }
  func.func @transform_3(%arg0: i32, %arg1: i32) -> (i32, i32) {
    %c0_i32 = arith.constant 0 : i32
    %c0_i32_0 = arith.constant 0 : i32
    return %arg1, %c0_i32 : i32, i32
  }
  func.func @transform_4(%arg0: i32, %arg1: i32) -> (i32, i32) {
    %c0_i32 = arith.constant 0 : i32
    %c0_i32_0 = arith.constant 0 : i32
    %c0_i32_1 = arith.constant 0 : i32
    return %c0_i32, %c0_i32_0 : i32, i32
  }
  func.func @transform_5(%arg0: i32, %arg1: i32) -> (i32, i32) {
    %c0_i32 = arith.constant 0 : i32
    %c0_i32_0 = arith.constant 0 : i32
    %c0_i32_1 = arith.constant 0 : i32
    return %c0_i32, %c0_i32_0 : i32, i32
  }
  func.func @transform_6(%arg0: i32, %arg1: i32) -> (i32, i32) {
    %c0_i32 = arith.constant 0 : i32
    %c0_i32_0 = arith.constant 0 : i32
    %c0_i32_1 = arith.constant 0 : i32
    return %c0_i32, %c0_i32_0 : i32, i32
  }
  func.func @transform_7(%arg0: i32, %arg1: i32) -> (i32, i32) {
    %c0_i32 = arith.constant 0 : i32
    %c0_i32_0 = arith.constant 0 : i32
    return %arg0, %c0_i32 : i32, i32
  }
}

module attributes {stable_mosaic.version = 11 : i64} {
  func.func @_mha_kernel(%arg0: i32, %arg1: memref<1x1x8xi32, #tpu.memory_space<vmem>>, %arg2: memref<1x8x32xf32, #tpu.memory_space<vmem>>, %arg3: memref<1x8x32xf32, #tpu.memory_space<vmem>>, %arg4: memref<2x32x16xbf16, #tpu.memory_space<vmem>>, %arg5: memref<2x32x16xbf16, #tpu.memory_space<vmem>>, %arg6: memref<2x32x16xbf16, #tpu.memory_space<vmem>>, %arg7: memref<32x32xbf16, #tpu.memory_space<vmem>>, %arg8: memref<1x32xf32, #tpu.memory_space<vmem>>, %arg9: memref<1x32xf32, #tpu.memory_space<vmem>>, %arg10: memref<1x8x32xf32, #tpu.memory_space<vmem>>) attributes {dimension_semantics = [#tpu.dimension_semantics<parallel>], iteration_bounds = array<i64: 2>, scalar_prefetch = 0 : i64, scratch_operands = 0 : i64, tpu.core_type = #tpu.core_type<tc>, window_params = [{transform_indices = @transform_0, window_bounds = array<i64: 1, 1, 8>}, {transform_indices = @transform_1, window_bounds = array<i64: 1, 8, 32>}, {transform_indices = @transform_2, window_bounds = array<i64: 1, 8, 32>}, {pipeline_mode = #tpu.pipeline_mode<synchronous>, transform_indices = @transform_3, window_bounds = array<i64: 2, 32, 16>}, {pipeline_mode = #tpu.pipeline_mode<synchronous>, transform_indices = @transform_4, window_bounds = array<i64: 2, 32, 16>}, {pipeline_mode = #tpu.pipeline_mode<synchronous>, transform_indices = @transform_5, window_bounds = array<i64: 2, 32, 16>}, {pipeline_mode = #tpu.pipeline_mode<synchronous>, transform_indices = @transform_6, window_bounds = array<i64: 32, 32>}, {pipeline_mode = #tpu.pipeline_mode<synchronous>, transform_indices = @transform_7, window_bounds = array<i64: 1, 32>}, {pipeline_mode = #tpu.pipeline_mode<synchronous>, transform_indices = @transform_8, window_bounds = array<i64: 1, 32>}, {transform_indices = @transform_9, window_bounds = array<i64: 1, 8, 32>}]} {
    %c0 = arith.constant 0 : index
    %c0_0 = arith.constant 0 : index
    %c0_1 = arith.constant 0 : index
    %0 = vector.load %arg2[%c0, %c0_0, %c0_1] : memref<1x8x32xf32, #tpu.memory_space<vmem>>, vector<1x8x32xf32>
    %1 = vector.shape_cast %0 : vector<1x8x32xf32> to vector<8x32xf32>
    %2 = arith.truncf %1 : vector<8x32xf32> to vector<8x32xbf16>
    %c0_2 = arith.constant 0 : index
    %c0_3 = arith.constant 0 : index
    %c0_4 = arith.constant 0 : index
    %3 = vector.load %arg3[%c0_2, %c0_3, %c0_4] : memref<1x8x32xf32, #tpu.memory_space<vmem>>, vector<1x8x32xf32>
    %4 = vector.shape_cast %3 : vector<1x8x32xf32> to vector<8x32xf32>
    %5 = arith.truncf %4 : vector<8x32xf32> to vector<8x32xbf16>
    %c0_5 = arith.constant 0 : index
    %c0_6 = arith.constant 0 : index
    %c0_7 = arith.constant 0 : index
    %6 = vector.load %arg1[%c0_5, %c0_6, %c0_7] : memref<1x1x8xi32, #tpu.memory_space<vmem>>, vector<1x1x8xi32>
    %7 = vector.shape_cast %6 : vector<1x1x8xi32> to vector<1x8xi32>
    %c0_i32 = arith.constant 0 : i32
    %8 = vector.broadcast %c0_i32 : i32 to vector<1x8xi32>
    %9 = arith.cmpi ne, %7, %8 : vector<1x8xi32>
    %c0_8 = arith.constant 0 : index
    %c0_9 = arith.constant 0 : index
    %c0_10 = arith.constant 0 : index
    %10 = vector.load %arg4[%c0_8, %c0_9, %c0_10] : memref<2x32x16xbf16, #tpu.memory_space<vmem>>, vector<1x32x16xbf16>
    %11 = vector.shape_cast %10 : vector<1x32x16xbf16> to vector<32x16xbf16>
    %cst = arith.constant dense<0.000000e+00> : vector<8x16xf32>
    %12 = tpu.matmul %2, %11, %cst {dimension_numbers = #tpu.dot_dimension_numbers<[1], [0], [0], [1], [0, 0, 1, 1], [], []>} : vector<8x32xbf16>, vector<32x16xbf16>, vector<8x16xf32> -> vector<8x16xf32>
    %c0_11 = arith.constant 0 : index
    %c0_12 = arith.constant 0 : index
    %c0_13 = arith.constant 0 : index
    %13 = vector.load %arg5[%c0_11, %c0_12, %c0_13] : memref<2x32x16xbf16, #tpu.memory_space<vmem>>, vector<1x32x16xbf16>
    %14 = vector.shape_cast %13 : vector<1x32x16xbf16> to vector<32x16xbf16>
    %cst_14 = arith.constant dense<0.000000e+00> : vector<8x16xf32>
    %15 = tpu.matmul %5, %14, %cst_14 {dimension_numbers = #tpu.dot_dimension_numbers<[1], [0], [0], [1], [0, 0, 1, 1], [], []>} : vector<8x32xbf16>, vector<32x16xbf16>, vector<8x16xf32> -> vector<8x16xf32>
    %c0_15 = arith.constant 0 : index
    %c0_16 = arith.constant 0 : index
    %c0_17 = arith.constant 0 : index
    %16 = vector.load %arg6[%c0_15, %c0_16, %c0_17] : memref<2x32x16xbf16, #tpu.memory_space<vmem>>, vector<1x32x16xbf16>
    %17 = vector.shape_cast %16 : vector<1x32x16xbf16> to vector<32x16xbf16>
    %cst_18 = arith.constant dense<0.000000e+00> : vector<8x16xf32>
    %18 = tpu.matmul %5, %17, %cst_18 {dimension_numbers = #tpu.dot_dimension_numbers<[1], [0], [0], [1], [0, 0, 1, 1], [], []>} : vector<8x32xbf16>, vector<32x16xbf16>, vector<8x16xf32> -> vector<8x16xf32>
    %19 = arith.truncf %12 : vector<8x16xf32> to vector<8x16xbf16>
    %20 = arith.truncf %15 : vector<8x16xf32> to vector<8x16xbf16>
    %cst_19 = arith.constant dense<0.000000e+00> : vector<8x8xf32>
    %21 = tpu.matmul %19, %20, %cst_19 {dimension_numbers = #tpu.dot_dimension_numbers<[1], [1], [0], [0], [0, 0, 1, 0], [], []>} : vector<8x16xbf16>, vector<8x16xbf16>, vector<8x8xf32> -> vector<8x8xf32>
    %cst_20 = arith.constant 2.500000e-01 : f32
    %22 = vector.broadcast %cst_20 : f32 to vector<8x8xf32>
    %23 = arith.mulf %21, %22 : vector<8x8xf32>
    %cst_21 = arith.constant -1.000000e+09 : f32
    %24 = vector.shape_cast %9 : vector<1x8xi1> to vector<1x8xi1>
    %25 = vector.broadcast %24 : vector<1x8xi1> to vector<8x8xi1>
    %26 = vector.broadcast %cst_21 : f32 to vector<8x8xf32>
    %27 = arith.select %25, %23, %26 : vector<8x8xi1>, vector<8x8xf32>
    %cst_22 = arith.constant dense<0xFF800000> : vector<8xf32>
    %28 = vector.multi_reduction <maximumf>, %27, %cst_22 [1] : vector<8x8xf32> to vector<8xf32>
    %29 = vector.shape_cast %28 : vector<8xf32> to vector<8x1xf32>
    %30 = vector.broadcast %29 : vector<8x1xf32> to vector<8x8xf32>
    %31 = arith.subf %27, %30 : vector<8x8xf32>
    %32 = math.exp %31 : vector<8x8xf32>
    %cst_23 = arith.constant dense<0.000000e+00> : vector<8xf32>
    %33 = vector.multi_reduction <add>, %32, %cst_23 [1] : vector<8x8xf32> to vector<8xf32>
    %34 = vector.shape_cast %33 : vector<8xf32> to vector<8x1xf32>
    %35 = tpu.reciprocal %34 {approx = true} : vector<8x1xf32> -> vector<8x1xf32>
    %36 = vector.broadcast %35 : vector<8x1xf32> to vector<8x8xf32>
    %37 = arith.mulf %32, %36 : vector<8x8xf32>
    %38 = arith.truncf %37 : vector<8x8xf32> to vector<8x8xbf16>
    %39 = arith.truncf %18 : vector<8x16xf32> to vector<8x16xbf16>
    %cst_24 = arith.constant dense<0.000000e+00> : vector<8x16xf32>
    %40 = tpu.matmul %38, %39, %cst_24 {dimension_numbers = #tpu.dot_dimension_numbers<[1], [0], [0], [1], [0, 0, 1, 1], [], []>} : vector<8x8xbf16>, vector<8x16xbf16>, vector<8x16xf32> -> vector<8x16xf32>
    %c1 = arith.constant 1 : index
    %c0_25 = arith.constant 0 : index
    %c0_26 = arith.constant 0 : index
    %41 = vector.load %arg4[%c1, %c0_25, %c0_26] : memref<2x32x16xbf16, #tpu.memory_space<vmem>>, vector<1x32x16xbf16>
    %42 = vector.shape_cast %41 : vector<1x32x16xbf16> to vector<32x16xbf16>
    %cst_27 = arith.constant dense<0.000000e+00> : vector<8x16xf32>
    %43 = tpu.matmul %2, %42, %cst_27 {dimension_numbers = #tpu.dot_dimension_numbers<[1], [0], [0], [1], [0, 0, 1, 1], [], []>} : vector<8x32xbf16>, vector<32x16xbf16>, vector<8x16xf32> -> vector<8x16xf32>
    %c1_28 = arith.constant 1 : index
    %c0_29 = arith.constant 0 : index
    %c0_30 = arith.constant 0 : index
    %44 = vector.load %arg5[%c1_28, %c0_29, %c0_30] : memref<2x32x16xbf16, #tpu.memory_space<vmem>>, vector<1x32x16xbf16>
    %45 = vector.shape_cast %44 : vector<1x32x16xbf16> to vector<32x16xbf16>
    %cst_31 = arith.constant dense<0.000000e+00> : vector<8x16xf32>
    %46 = tpu.matmul %5, %45, %cst_31 {dimension_numbers = #tpu.dot_dimension_numbers<[1], [0], [0], [1], [0, 0, 1, 1], [], []>} : vector<8x32xbf16>, vector<32x16xbf16>, vector<8x16xf32> -> vector<8x16xf32>
    %c1_32 = arith.constant 1 : index
    %c0_33 = arith.constant 0 : index
    %c0_34 = arith.constant 0 : index
    %47 = vector.load %arg6[%c1_32, %c0_33, %c0_34] : memref<2x32x16xbf16, #tpu.memory_space<vmem>>, vector<1x32x16xbf16>
    %48 = vector.shape_cast %47 : vector<1x32x16xbf16> to vector<32x16xbf16>
    %cst_35 = arith.constant dense<0.000000e+00> : vector<8x16xf32>
    %49 = tpu.matmul %5, %48, %cst_35 {dimension_numbers = #tpu.dot_dimension_numbers<[1], [0], [0], [1], [0, 0, 1, 1], [], []>} : vector<8x32xbf16>, vector<32x16xbf16>, vector<8x16xf32> -> vector<8x16xf32>
    %50 = arith.truncf %43 : vector<8x16xf32> to vector<8x16xbf16>
    %51 = arith.truncf %46 : vector<8x16xf32> to vector<8x16xbf16>
    %cst_36 = arith.constant dense<0.000000e+00> : vector<8x8xf32>
    %52 = tpu.matmul %50, %51, %cst_36 {dimension_numbers = #tpu.dot_dimension_numbers<[1], [1], [0], [0], [0, 0, 1, 0], [], []>} : vector<8x16xbf16>, vector<8x16xbf16>, vector<8x8xf32> -> vector<8x8xf32>
    %cst_37 = arith.constant 2.500000e-01 : f32
    %53 = vector.broadcast %cst_37 : f32 to vector<8x8xf32>
    %54 = arith.mulf %52, %53 : vector<8x8xf32>
    %cst_38 = arith.constant -1.000000e+09 : f32
    %55 = vector.shape_cast %9 : vector<1x8xi1> to vector<1x8xi1>
    %56 = vector.broadcast %55 : vector<1x8xi1> to vector<8x8xi1>
    %57 = vector.broadcast %cst_38 : f32 to vector<8x8xf32>
    %58 = arith.select %56, %54, %57 : vector<8x8xi1>, vector<8x8xf32>
    %cst_39 = arith.constant dense<0xFF800000> : vector<8xf32>
    %59 = vector.multi_reduction <maximumf>, %58, %cst_39 [1] : vector<8x8xf32> to vector<8xf32>
    %60 = vector.shape_cast %59 : vector<8xf32> to vector<8x1xf32>
    %61 = vector.broadcast %60 : vector<8x1xf32> to vector<8x8xf32>
    %62 = arith.subf %58, %61 : vector<8x8xf32>
    %63 = math.exp %62 : vector<8x8xf32>
    %cst_40 = arith.constant dense<0.000000e+00> : vector<8xf32>
    %64 = vector.multi_reduction <add>, %63, %cst_40 [1] : vector<8x8xf32> to vector<8xf32>
    %65 = vector.shape_cast %64 : vector<8xf32> to vector<8x1xf32>
    %66 = tpu.reciprocal %65 {approx = true} : vector<8x1xf32> -> vector<8x1xf32>
    %67 = vector.broadcast %66 : vector<8x1xf32> to vector<8x8xf32>
    %68 = arith.mulf %63, %67 : vector<8x8xf32>
    %69 = arith.truncf %68 : vector<8x8xf32> to vector<8x8xbf16>
    %70 = arith.truncf %49 : vector<8x16xf32> to vector<8x16xbf16>
    %cst_41 = arith.constant dense<0.000000e+00> : vector<8x16xf32>
    %71 = tpu.matmul %69, %70, %cst_41 {dimension_numbers = #tpu.dot_dimension_numbers<[1], [0], [0], [1], [0, 0, 1, 1], [], []>} : vector<8x8xbf16>, vector<8x16xbf16>, vector<8x16xf32> -> vector<8x16xf32>
    %72 = tpu.concatenate %40, %71 in 1 : vector<8x16xf32>, vector<8x16xf32> -> vector<8x32xf32>
    %73 = arith.truncf %72 : vector<8x32xf32> to vector<8x32xbf16>
    %c0_42 = arith.constant 0 : index
    %c0_43 = arith.constant 0 : index
    %74 = vector.load %arg7[%c0_42, %c0_43] : memref<32x32xbf16, #tpu.memory_space<vmem>>, vector<32x32xbf16>
    %cst_44 = arith.constant dense<0.000000e+00> : vector<8x32xf32>
    %75 = tpu.matmul %73, %74, %cst_44 {dimension_numbers = #tpu.dot_dimension_numbers<[1], [0], [0], [1], [0, 0, 1, 1], [], []>} : vector<8x32xbf16>, vector<32x32xbf16>, vector<8x32xf32> -> vector<8x32xf32>
    %76 = arith.addf %75, %1 : vector<8x32xf32>
    %cst_45 = arith.constant dense<0.000000e+00> : vector<8xf32>
    %77 = vector.multi_reduction <add>, %76, %cst_45 [1] : vector<8x32xf32> to vector<8xf32>
    %78 = vector.shape_cast %77 : vector<8xf32> to vector<8x1xf32>
    %cst_46 = arith.constant 3.200000e+01 : f32
    %79 = vector.broadcast %cst_46 : f32 to vector<8x1xf32>
    %80 = arith.divf %78, %79 : vector<8x1xf32>
    %81 = vector.broadcast %80 : vector<8x1xf32> to vector<8x32xf32>
    %82 = arith.subf %76, %81 : vector<8x32xf32>
    %83 = arith.mulf %82, %82 : vector<8x32xf32>
    %cst_47 = arith.constant dense<0.000000e+00> : vector<8xf32>
    %84 = vector.multi_reduction <add>, %83, %cst_47 [1] : vector<8x32xf32> to vector<8xf32>
    %85 = vector.shape_cast %84 : vector<8xf32> to vector<8x1xf32>
    %cst_48 = arith.constant 3.200000e+01 : f32
    %86 = vector.broadcast %cst_48 : f32 to vector<8x1xf32>
    %87 = arith.divf %85, %86 : vector<8x1xf32>
    %88 = vector.broadcast %80 : vector<8x1xf32> to vector<8x32xf32>
    %89 = arith.subf %76, %88 : vector<8x32xf32>
    %cst_49 = arith.constant 9.99999997E-7 : f32
    %90 = vector.broadcast %cst_49 : f32 to vector<8x1xf32>
    %91 = arith.addf %87, %90 : vector<8x1xf32>
    %92 = math.rsqrt %91 : vector<8x1xf32>
    %93 = vector.broadcast %92 : vector<8x1xf32> to vector<8x32xf32>
    %94 = arith.mulf %89, %93 : vector<8x32xf32>
    %c0_50 = arith.constant 0 : index
    %c0_51 = arith.constant 0 : index
    %95 = vector.load %arg8[%c0_50, %c0_51] : memref<1x32xf32, #tpu.memory_space<vmem>>, vector<1x32xf32>
    %96 = vector.broadcast %95 : vector<1x32xf32> to vector<8x32xf32>
    %97 = arith.mulf %94, %96 : vector<8x32xf32>
    %c0_52 = arith.constant 0 : index
    %c0_53 = arith.constant 0 : index
    %98 = vector.load %arg9[%c0_52, %c0_53] : memref<1x32xf32, #tpu.memory_space<vmem>>, vector<1x32xf32>
    %99 = vector.broadcast %98 : vector<1x32xf32> to vector<8x32xf32>
    %100 = arith.addf %97, %99 : vector<8x32xf32>
    %c0_54 = arith.constant 0 : index
    %c0_55 = arith.constant 0 : index
    %c0_56 = arith.constant 0 : index
    %101 = vector.load %arg10[%c0_54, %c0_55, %c0_56] : memref<1x8x32xf32, #tpu.memory_space<vmem>>, vector<1x8x32xf32>
    %102 = vector.shape_cast %101 : vector<1x8x32xf32> to vector<8x32xf32>
    %103 = vector.shape_cast %100 : vector<8x32xf32> to vector<1x8x32xf32>
    tpu.vector_store %arg10[%c0_54, %c0_55, %c0_56], %103 {strides = array<i32>} : memref<1x8x32xf32, #tpu.memory_space<vmem>>, vector<1x8x32xf32>,
    return
  }
  func.func @transform_0(%arg0: i32) -> (i32, i32, i32) {
    %c0_i32 = arith.constant 0 : i32
    %c0_i32_0 = arith.constant 0 : i32
    %c0_i32_1 = arith.constant 0 : i32
    return %arg0, %c0_i32, %c0_i32_0 : i32, i32, i32
  }
  func.func @transform_1(%arg0: i32) -> (i32, i32, i32) {
    %c0_i32 = arith.constant 0 : i32
    %c0_i32_0 = arith.constant 0 : i32
    %c0_i32_1 = arith.constant 0 : i32
    return %arg0, %c0_i32, %c0_i32_0 : i32, i32, i32
  }
  func.func @transform_2(%arg0: i32) -> (i32, i32, i32) {
    %c0_i32 = arith.constant 0 : i32
    %c0_i32_0 = arith.constant 0 : i32
    %c0_i32_1 = arith.constant 0 : i32
    return %arg0, %c0_i32, %c0_i32_0 : i32, i32, i32
  }
  func.func @transform_3(%arg0: i32) -> (i32, i32, i32) {
    %c0_i32 = arith.constant 0 : i32
    %c0_i32_0 = arith.constant 0 : i32
    %c0_i32_1 = arith.constant 0 : i32
    %c0_i32_2 = arith.constant 0 : i32
    return %c0_i32, %c0_i32_0, %c0_i32_1 : i32, i32, i32
  }
  func.func @transform_4(%arg0: i32) -> (i32, i32, i32) {
    %c0_i32 = arith.constant 0 : i32
    %c0_i32_0 = arith.constant 0 : i32
    %c0_i32_1 = arith.constant 0 : i32
    %c0_i32_2 = arith.constant 0 : i32
    return %c0_i32, %c0_i32_0, %c0_i32_1 : i32, i32, i32
  }
  func.func @transform_5(%arg0: i32) -> (i32, i32, i32) {
    %c0_i32 = arith.constant 0 : i32
    %c0_i32_0 = arith.constant 0 : i32
    %c0_i32_1 = arith.constant 0 : i32
    %c0_i32_2 = arith.constant 0 : i32
    return %c0_i32, %c0_i32_0, %c0_i32_1 : i32, i32, i32
  }
  func.func @transform_6(%arg0: i32) -> (i32, i32) {
    %c0_i32 = arith.constant 0 : i32
    %c0_i32_0 = arith.constant 0 : i32
    %c0_i32_1 = arith.constant 0 : i32
    return %c0_i32, %c0_i32_0 : i32, i32
  }
  func.func @transform_7(%arg0: i32) -> (i32, i32) {
    %c0_i32 = arith.constant 0 : i32
    %c0_i32_0 = arith.constant 0 : i32
    %c0_i32_1 = arith.constant 0 : i32
    return %c0_i32, %c0_i32_0 : i32, i32
  }
  func.func @transform_8(%arg0: i32) -> (i32, i32) {
    %c0_i32 = arith.constant 0 : i32
    %c0_i32_0 = arith.constant 0 : i32
    %c0_i32_1 = arith.constant 0 : i32
    return %c0_i32, %c0_i32_0 : i32, i32
  }
  func.func @transform_9(%arg0: i32) -> (i32, i32, i32) {
    %c0_i32 = arith.constant 0 : i32
    %c0_i32_0 = arith.constant 0 : i32
    %c0_i32_1 = arith.constant 0 : i32
    return %arg0, %c0_i32, %c0_i32_0 : i32, i32, i32
  }
}

module attributes {stable_mosaic.version = 11 : i64} {
  func.func @_mha_kernel(%arg0: i32, %arg1: memref<1x1x8xi32, #tpu.memory_space<vmem>>, %arg2: memref<1x8x32xf32, #tpu.memory_space<vmem>>, %arg3: memref<1x8x32xf32, #tpu.memory_space<vmem>>, %arg4: memref<2x32x16xbf16, #tpu.memory_space<vmem>>, %arg5: memref<2x32x16xbf16, #tpu.memory_space<vmem>>, %arg6: memref<2x32x16xbf16, #tpu.memory_space<vmem>>, %arg7: memref<32x32xbf16, #tpu.memory_space<vmem>>, %arg8: memref<1x32xf32, #tpu.memory_space<vmem>>, %arg9: memref<1x32xf32, #tpu.memory_space<vmem>>, %arg10: memref<1x8x32xf32, #tpu.memory_space<vmem>>) attributes {dimension_semantics = [#tpu.dimension_semantics<parallel>], iteration_bounds = array<i64: 2>, scalar_prefetch = 0 : i64, scratch_operands = 0 : i64, tpu.core_type = #tpu.core_type<tc>, window_params = [{transform_indices = @transform_0, window_bounds = array<i64: 1, 1, 8>}, {transform_indices = @transform_1, window_bounds = array<i64: 1, 8, 32>}, {transform_indices = @transform_2, window_bounds = array<i64: 1, 8, 32>}, {pipeline_mode = #tpu.pipeline_mode<synchronous>, transform_indices = @transform_3, window_bounds = array<i64: 2, 32, 16>}, {pipeline_mode = #tpu.pipeline_mode<synchronous>, transform_indices = @transform_4, window_bounds = array<i64: 2, 32, 16>}, {pipeline_mode = #tpu.pipeline_mode<synchronous>, transform_indices = @transform_5, window_bounds = array<i64: 2, 32, 16>}, {pipeline_mode = #tpu.pipeline_mode<synchronous>, transform_indices = @transform_6, window_bounds = array<i64: 32, 32>}, {pipeline_mode = #tpu.pipeline_mode<synchronous>, transform_indices = @transform_7, window_bounds = array<i64: 1, 32>}, {pipeline_mode = #tpu.pipeline_mode<synchronous>, transform_indices = @transform_8, window_bounds = array<i64: 1, 32>}, {transform_indices = @transform_9, window_bounds = array<i64: 1, 8, 32>}]} {
    %c0 = arith.constant 0 : index
    %c0_0 = arith.constant 0 : index
    %c0_1 = arith.constant 0 : index
    %0 = vector.load %arg2[%c0, %c0_0, %c0_1] : memref<1x8x32xf32, #tpu.memory_space<vmem>>, vector<1x8x32xf32>
    %1 = vector.shape_cast %0 : vector<1x8x32xf32> to vector<8x32xf32>
    %2 = arith.truncf %1 : vector<8x32xf32> to vector<8x32xbf16>
    %c0_2 = arith.constant 0 : index
    %c0_3 = arith.constant 0 : index
    %c0_4 = arith.constant 0 : index
    %3 = vector.load %arg3[%c0_2, %c0_3, %c0_4] : memref<1x8x32xf32, #tpu.memory_space<vmem>>, vector<1x8x32xf32>
    %4 = vector.shape_cast %3 : vector<1x8x32xf32> to vector<8x32xf32>
    %5 = arith.truncf %4 : vector<8x32xf32> to vector<8x32xbf16>
    %c0_5 = arith.constant 0 : index
    %c0_6 = arith.constant 0 : index
    %c0_7 = arith.constant 0 : index
    %6 = vector.load %arg1[%c0_5, %c0_6, %c0_7] : memref<1x1x8xi32, #tpu.memory_space<vmem>>, vector<1x1x8xi32>
    %7 = vector.shape_cast %6 : vector<1x1x8xi32> to vector<1x8xi32>
    %c0_i32 = arith.constant 0 : i32
    %8 = vector.broadcast %c0_i32 : i32 to vector<1x8xi32>
    %9 = arith.cmpi ne, %7, %8 : vector<1x8xi32>
    %10 = tpu.iota {dimensions = array<i32: 0>} : vector<8x8xi32>
    %11 = tpu.iota {dimensions = array<i32: 1>} : vector<8x8xi32>
    %12 = arith.cmpi sle, %11, %10 : vector<8x8xi32>
    %13 = vector.broadcast %9 : vector<1x8xi1> to vector<8x8xi1>
    %14 = arith.andi %13, %12 : vector<8x8xi1>
    %c0_8 = arith.constant 0 : index
    %c0_9 = arith.constant 0 : index
    %c0_10 = arith.constant 0 : index
    %15 = vector.load %arg4[%c0_8, %c0_9, %c0_10] : memref<2x32x16xbf16, #tpu.memory_space<vmem>>, vector<1x32x16xbf16>
    %16 = vector.shape_cast %15 : vector<1x32x16xbf16> to vector<32x16xbf16>
    %cst = arith.constant dense<0.000000e+00> : vector<8x16xf32>
    %17 = tpu.matmul %2, %16, %cst {dimension_numbers = #tpu.dot_dimension_numbers<[1], [0], [0], [1], [0, 0, 1, 1], [], []>} : vector<8x32xbf16>, vector<32x16xbf16>, vector<8x16xf32> -> vector<8x16xf32>
    %c0_11 = arith.constant 0 : index
    %c0_12 = arith.constant 0 : index
    %c0_13 = arith.constant 0 : index
    %18 = vector.load %arg5[%c0_11, %c0_12, %c0_13] : memref<2x32x16xbf16, #tpu.memory_space<vmem>>, vector<1x32x16xbf16>
    %19 = vector.shape_cast %18 : vector<1x32x16xbf16> to vector<32x16xbf16>
    %cst_14 = arith.constant dense<0.000000e+00> : vector<8x16xf32>
    %20 = tpu.matmul %5, %19, %cst_14 {dimension_numbers = #tpu.dot_dimension_numbers<[1], [0], [0], [1], [0, 0, 1, 1], [], []>} : vector<8x32xbf16>, vector<32x16xbf16>, vector<8x16xf32> -> vector<8x16xf32>
    %c0_15 = arith.constant 0 : index
    %c0_16 = arith.constant 0 : index
    %c0_17 = arith.constant 0 : index
    %21 = vector.load %arg6[%c0_15, %c0_16, %c0_17] : memref<2x32x16xbf16, #tpu.memory_space<vmem>>, vector<1x32x16xbf16>
    %22 = vector.shape_cast %21 : vector<1x32x16xbf16> to vector<32x16xbf16>
    %cst_18 = arith.constant dense<0.000000e+00> : vector<8x16xf32>
    %23 = tpu.matmul %5, %22, %cst_18 {dimension_numbers = #tpu.dot_dimension_numbers<[1], [0], [0], [1], [0, 0, 1, 1], [], []>} : vector<8x32xbf16>, vector<32x16xbf16>, vector<8x16xf32> -> vector<8x16xf32>
    %24 = arith.truncf %17 : vector<8x16xf32> to vector<8x16xbf16>
    %25 = arith.truncf %20 : vector<8x16xf32> to vector<8x16xbf16>
    %cst_19 = arith.constant dense<0.000000e+00> : vector<8x8xf32>
    %26 = tpu.matmul %24, %25, %cst_19 {dimension_numbers = #tpu.dot_dimension_numbers<[1], [1], [0], [0], [0, 0, 1, 0], [], []>} : vector<8x16xbf16>, vector<8x16xbf16>, vector<8x8xf32> -> vector<8x8xf32>
    %cst_20 = arith.constant 2.500000e-01 : f32
    %27 = vector.broadcast %cst_20 : f32 to vector<8x8xf32>
    %28 = arith.mulf %26, %27 : vector<8x8xf32>
    %cst_21 = arith.constant -1.000000e+09 : f32
    %29 = vector.broadcast %cst_21 : f32 to vector<8x8xf32>
    %30 = arith.select %14, %28, %29 : vector<8x8xi1>, vector<8x8xf32>
    %cst_22 = arith.constant dense<0xFF800000> : vector<8xf32>
    %31 = vector.multi_reduction <maximumf>, %30, %cst_22 [1] : vector<8x8xf32> to vector<8xf32>
    %32 = vector.shape_cast %31 : vector<8xf32> to vector<8x1xf32>
    %33 = vector.broadcast %32 : vector<8x1xf32> to vector<8x8xf32>
    %34 = arith.subf %30, %33 : vector<8x8xf32>
    %35 = math.exp %34 : vector<8x8xf32>
    %cst_23 = arith.constant dense<0.000000e+00> : vector<8xf32>
    %36 = vector.multi_reduction <add>, %35, %cst_23 [1] : vector<8x8xf32> to vector<8xf32>
    %37 = vector.shape_cast %36 : vector<8xf32> to vector<8x1xf32>
    %38 = tpu.reciprocal %37 {approx = true} : vector<8x1xf32> -> vector<8x1xf32>
    %39 = vector.broadcast %38 : vector<8x1xf32> to vector<8x8xf32>
    %40 = arith.mulf %35, %39 : vector<8x8xf32>
    %41 = arith.truncf %40 : vector<8x8xf32> to vector<8x8xbf16>
    %42 = arith.truncf %23 : vector<8x16xf32> to vector<8x16xbf16>
    %cst_24 = arith.constant dense<0.000000e+00> : vector<8x16xf32>
    %43 = tpu.matmul %41, %42, %cst_24 {dimension_numbers = #tpu.dot_dimension_numbers<[1], [0], [0], [1], [0, 0, 1, 1], [], []>} : vector<8x8xbf16>, vector<8x16xbf16>, vector<8x16xf32> -> vector<8x16xf32>
    %c1 = arith.constant 1 : index
    %c0_25 = arith.constant 0 : index
    %c0_26 = arith.constant 0 : index
    %44 = vector.load %arg4[%c1, %c0_25, %c0_26] : memref<2x32x16xbf16, #tpu.memory_space<vmem>>, vector<1x32x16xbf16>
    %45 = vector.shape_cast %44 : vector<1x32x16xbf16> to vector<32x16xbf16>
    %cst_27 = arith.constant dense<0.000000e+00> : vector<8x16xf32>
    %46 = tpu.matmul %2, %45, %cst_27 {dimension_numbers = #tpu.dot_dimension_numbers<[1], [0], [0], [1], [0, 0, 1, 1], [], []>} : vector<8x32xbf16>, vector<32x16xbf16>, vector<8x16xf32> -> vector<8x16xf32>
    %c1_28 = arith.constant 1 : index
    %c0_29 = arith.constant 0 : index
    %c0_30 = arith.constant 0 : index
    %47 = vector.load %arg5[%c1_28, %c0_29, %c0_30] : memref<2x32x16xbf16, #tpu.memory_space<vmem>>, vector<1x32x16xbf16>
    %48 = vector.shape_cast %47 : vector<1x32x16xbf16> to vector<32x16xbf16>
    %cst_31 = arith.constant dense<0.000000e+00> : vector<8x16xf32>
    %49 = tpu.matmul %5, %48, %cst_31 {dimension_numbers = #tpu.dot_dimension_numbers<[1], [0], [0], [1], [0, 0, 1, 1], [], []>} : vector<8x32xbf16>, vector<32x16xbf16>, vector<8x16xf32> -> vector<8x16xf32>
    %c1_32 = arith.constant 1 : index
    %c0_33 = arith.constant 0 : index
    %c0_34 = arith.constant 0 : index
    %50 = vector.load %arg6[%c1_32, %c0_33, %c0_34] : memref<2x32x16xbf16, #tpu.memory_space<vmem>>, vector<1x32x16xbf16>
    %51 = vector.shape_cast %50 : vector<1x32x16xbf16> to vector<32x16xbf16>
    %cst_35 = arith.constant dense<0.000000e+00> : vector<8x16xf32>
    %52 = tpu.matmul %5, %51, %cst_35 {dimension_numbers = #tpu.dot_dimension_numbers<[1], [0], [0], [1], [0, 0, 1, 1], [], []>} : vector<8x32xbf16>, vector<32x16xbf16>, vector<8x16xf32> -> vector<8x16xf32>
    %53 = arith.truncf %46 : vector<8x16xf32> to vector<8x16xbf16>
    %54 = arith.truncf %49 : vector<8x16xf32> to vector<8x16xbf16>
    %cst_36 = arith.constant dense<0.000000e+00> : vector<8x8xf32>
    %55 = tpu.matmul %53, %54, %cst_36 {dimension_numbers = #tpu.dot_dimension_numbers<[1], [1], [0], [0], [0, 0, 1, 0], [], []>} : vector<8x16xbf16>, vector<8x16xbf16>, vector<8x8xf32> -> vector<8x8xf32>
    %cst_37 = arith.constant 2.500000e-01 : f32
    %56 = vector.broadcast %cst_37 : f32 to vector<8x8xf32>
    %57 = arith.mulf %55, %56 : vector<8x8xf32>
    %cst_38 = arith.constant -1.000000e+09 : f32
    %58 = vector.broadcast %cst_38 : f32 to vector<8x8xf32>
    %59 = arith.select %14, %57, %58 : vector<8x8xi1>, vector<8x8xf32>
    %cst_39 = arith.constant dense<0xFF800000> : vector<8xf32>
    %60 = vector.multi_reduction <maximumf>, %59, %cst_39 [1] : vector<8x8xf32> to vector<8xf32>
    %61 = vector.shape_cast %60 : vector<8xf32> to vector<8x1xf32>
    %62 = vector.broadcast %61 : vector<8x1xf32> to vector<8x8xf32>
    %63 = arith.subf %59, %62 : vector<8x8xf32>
    %64 = math.exp %63 : vector<8x8xf32>
    %cst_40 = arith.constant dense<0.000000e+00> : vector<8xf32>
    %65 = vector.multi_reduction <add>, %64, %cst_40 [1] : vector<8x8xf32> to vector<8xf32>
    %66 = vector.shape_cast %65 : vector<8xf32> to vector<8x1xf32>
    %67 = tpu.reciprocal %66 {approx = true} : vector<8x1xf32> -> vector<8x1xf32>
    %68 = vector.broadcast %67 : vector<8x1xf32> to vector<8x8xf32>
    %69 = arith.mulf %64, %68 : vector<8x8xf32>
    %70 = arith.truncf %69 : vector<8x8xf32> to vector<8x8xbf16>
    %71 = arith.truncf %52 : vector<8x16xf32> to vector<8x16xbf16>
    %cst_41 = arith.constant dense<0.000000e+00> : vector<8x16xf32>
    %72 = tpu.matmul %70, %71, %cst_41 {dimension_numbers = #tpu.dot_dimension_numbers<[1], [0], [0], [1], [0, 0, 1, 1], [], []>} : vector<8x8xbf16>, vector<8x16xbf16>, vector<8x16xf32> -> vector<8x16xf32>
    %73 = tpu.concatenate %43, %72 in 1 : vector<8x16xf32>, vector<8x16xf32> -> vector<8x32xf32>
    %74 = arith.truncf %73 : vector<8x32xf32> to vector<8x32xbf16>
    %c0_42 = arith.constant 0 : index
    %c0_43 = arith.constant 0 : index
    %75 = vector.load %arg7[%c0_42, %c0_43] : memref<32x32xbf16, #tpu.memory_space<vmem>>, vector<32x32xbf16>
    %cst_44 = arith.constant dense<0.000000e+00> : vector<8x32xf32>
    %76 = tpu.matmul %74, %75, %cst_44 {dimension_numbers = #tpu.dot_dimension_numbers<[1], [0], [0], [1], [0, 0, 1, 1], [], []>} : vector<8x32xbf16>, vector<32x32xbf16>, vector<8x32xf32> -> vector<8x32xf32>
    %77 = arith.addf %76, %1 : vector<8x32xf32>
    %cst_45 = arith.constant dense<0.000000e+00> : vector<8xf32>
    %78 = vector.multi_reduction <add>, %77, %cst_45 [1] : vector<8x32xf32> to vector<8xf32>
    %79 = vector.shape_cast %78 : vector<8xf32> to vector<8x1xf32>
    %cst_46 = arith.constant 3.200000e+01 : f32
    %80 = vector.broadcast %cst_46 : f32 to vector<8x1xf32>
    %81 = arith.divf %79, %80 : vector<8x1xf32>
    %82 = vector.broadcast %81 : vector<8x1xf32> to vector<8x32xf32>
    %83 = arith.subf %77, %82 : vector<8x32xf32>
    %84 = arith.mulf %83, %83 : vector<8x32xf32>
    %cst_47 = arith.constant dense<0.000000e+00> : vector<8xf32>
    %85 = vector.multi_reduction <add>, %84, %cst_47 [1] : vector<8x32xf32> to vector<8xf32>
    %86 = vector.shape_cast %85 : vector<8xf32> to vector<8x1xf32>
    %cst_48 = arith.constant 3.200000e+01 : f32
    %87 = vector.broadcast %cst_48 : f32 to vector<8x1xf32>
    %88 = arith.divf %86, %87 : vector<8x1xf32>
    %89 = vector.broadcast %81 : vector<8x1xf32> to vector<8x32xf32>
    %90 = arith.subf %77, %89 : vector<8x32xf32>
    %cst_49 = arith.constant 9.99999997E-7 : f32
    %91 = vector.broadcast %cst_49 : f32 to vector<8x1xf32>
    %92 = arith.addf %88, %91 : vector<8x1xf32>
    %93 = math.rsqrt %92 : vector<8x1xf32>
    %94 = vector.broadcast %93 : vector<8x1xf32> to vector<8x32xf32>
    %95 = arith.mulf %90, %94 : vector<8x32xf32>
    %c0_50 = arith.constant 0 : index
    %c0_51 = arith.constant 0 : index
    %96 = vector.load %arg8[%c0_50, %c0_51] : memref<1x32xf32, #tpu.memory_space<vmem>>, vector<1x32xf32>
    %97 = vector.broadcast %96 : vector<1x32xf32> to vector<8x32xf32>
    %98 = arith.mulf %95, %97 : vector<8x32xf32>
    %c0_52 = arith.constant 0 : index
    %c0_53 = arith.constant 0 : index
    %99 = vector.load %arg9[%c0_52, %c0_53] : memref<1x32xf32, #tpu.memory_space<vmem>>, vector<1x32xf32>
    %100 = vector.broadcast %99 : vector<1x32xf32> to vector<8x32xf32>
    %101 = arith.addf %98, %100 : vector<8x32xf32>
    %c0_54 = arith.constant 0 : index
    %c0_55 = arith.constant 0 : index
    %c0_56 = arith.constant 0 : index
    %102 = vector.load %arg10[%c0_54, %c0_55, %c0_56] : memref<1x8x32xf32, #tpu.memory_space<vmem>>, vector<1x8x32xf32>
    %103 = vector.shape_cast %102 : vector<1x8x32xf32> to vector<8x32xf32>
    %104 = vector.shape_cast %101 : vector<8x32xf32> to vector<1x8x32xf32>
    tpu.vector_store %arg10[%c0_54, %c0_55, %c0_56], %104 {strides = array<i32>} : memref<1x8x32xf32, #tpu.memory_space<vmem>>, vector<1x8x32xf32>,
    return
  }
  func.func @transform_0(%arg0: i32) -> (i32, i32, i32) {
    %c0_i32 = arith.constant 0 : i32
    %c0_i32_0 = arith.constant 0 : i32
    %c0_i32_1 = arith.constant 0 : i32
    return %arg0, %c0_i32, %c0_i32_0 : i32, i32, i32
  }
  func.func @transform_1(%arg0: i32) -> (i32, i32, i32) {
    %c0_i32 = arith.constant 0 : i32
    %c0_i32_0 = arith.constant 0 : i32
    %c0_i32_1 = arith.constant 0 : i32
    return %arg0, %c0_i32, %c0_i32_0 : i32, i32, i32
  }
  func.func @transform_2(%arg0: i32) -> (i32, i32, i32) {
    %c0_i32 = arith.constant 0 : i32
    %c0_i32_0 = arith.constant 0 : i32
    %c0_i32_1 = arith.constant 0 : i32
    return %arg0, %c0_i32, %c0_i32_0 : i32, i32, i32
  }
  func.func @transform_3(%arg0: i32) -> (i32, i32, i32) {
    %c0_i32 = arith.constant 0 : i32
    %c0_i32_0 = arith.constant 0 : i32
    %c0_i32_1 = arith.constant 0 : i32
    %c0_i32_2 = arith.constant 0 : i32
    return %c0_i32, %c0_i32_0, %c0_i32_1 : i32, i32, i32
  }
  func.func @transform_4(%arg0: i32) -> (i32, i32, i32) {
    %c0_i32 = arith.constant 0 : i32
    %c0_i32_0 = arith.constant 0 : i32
    %c0_i32_1 = arith.constant 0 : i32
    %c0_i32_2 = arith.constant 0 : i32
    return %c0_i32, %c0_i32_0, %c0_i32_1 : i32, i32, i32
  }
  func.func @transform_5(%arg0: i32) -> (i32, i32, i32) {
    %c0_i32 = arith.constant 0 : i32
    %c0_i32_0 = arith.constant 0 : i32
    %c0_i32_1 = arith.constant 0 : i32
    %c0_i32_2 = arith.constant 0 : i32
    return %c0_i32, %c0_i32_0, %c0_i32_1 : i32, i32, i32
  }
  func.func @transform_6(%arg0: i32) -> (i32, i32) {
    %c0_i32 = arith.constant 0 : i32
    %c0_i32_0 = arith.constant 0 : i32
    %c0_i32_1 = arith.constant 0 : i32
    return %c0_i32, %c0_i32_0 : i32, i32
  }
  func.func @transform_7(%arg0: i32) -> (i32, i32) {
    %c0_i32 = arith.constant 0 : i32
    %c0_i32_0 = arith.constant 0 : i32
    %c0_i32_1 = arith.constant 0 : i32
    return %c0_i32, %c0_i32_0 : i32, i32
  }
  func.func @transform_8(%arg0: i32) -> (i32, i32) {
    %c0_i32 = arith.constant 0 : i32
    %c0_i32_0 = arith.constant 0 : i32
    %c0_i32_1 = arith.constant 0 : i32
    return %c0_i32, %c0_i32_0 : i32, i32
  }
  func.func @transform_9(%arg0: i32) -> (i32, i32, i32) {
    %c0_i32 = arith.constant 0 : i32
    %c0_i32_0 = arith.constant 0 : i32
    %c0_i32_1 = arith.constant 0 : i32
    return %arg0, %c0_i32, %c0_i32_0 : i32, i32, i32
  }
}

module attributes {stable_mosaic.version = 11 : i64} {
  func.func @_proj_kernel(%arg0: i32, %arg1: i32, %arg2: memref<16x32xbf16, #tpu.memory_space<vmem>>, %arg3: memref<32x128xbf16, #tpu.memory_space<vmem>>, %arg4: memref<16x128xf32, #tpu.memory_space<vmem>>) attributes {dimension_semantics = [#tpu.dimension_semantics<parallel>, #tpu.dimension_semantics<parallel>], iteration_bounds = array<i64: 1, 1>, scalar_prefetch = 0 : i64, scratch_operands = 0 : i64, tpu.core_type = #tpu.core_type<tc>, window_params = [{transform_indices = @transform_0, window_bounds = array<i64: 16, 32>}, {transform_indices = @transform_1, window_bounds = array<i64: 32, 128>}, {transform_indices = @transform_2, window_bounds = array<i64: 16, 128>}]} {
    %c0 = arith.constant 0 : index
    %c0_0 = arith.constant 0 : index
    %0 = vector.load %arg2[%c0, %c0_0] : memref<16x32xbf16, #tpu.memory_space<vmem>>, vector<16x32xbf16>
    %c0_1 = arith.constant 0 : index
    %c0_2 = arith.constant 0 : index
    %1 = vector.load %arg3[%c0_1, %c0_2] : memref<32x128xbf16, #tpu.memory_space<vmem>>, vector<32x128xbf16>
    %cst = arith.constant dense<0.000000e+00> : vector<16x128xf32>
    %2 = tpu.matmul %0, %1, %cst {dimension_numbers = #tpu.dot_dimension_numbers<[1], [0], [0], [1], [0, 0, 1, 1], [], []>} : vector<16x32xbf16>, vector<32x128xbf16>, vector<16x128xf32> -> vector<16x128xf32>
    %cst_3 = arith.constant 0.176776692 : f32
    %3 = vector.broadcast %cst_3 : f32 to vector<16x128xf32>
    %4 = arith.mulf %2, %3 : vector<16x128xf32>
    %c0_4 = arith.constant 0 : index
    %c0_5 = arith.constant 0 : index
    %5 = vector.load %arg4[%c0_4, %c0_5] : memref<16x128xf32, #tpu.memory_space<vmem>>, vector<16x128xf32>
    tpu.vector_store %arg4[%c0_4, %c0_5], %4 {strides = array<i32>} : memref<16x128xf32, #tpu.memory_space<vmem>>, vector<16x128xf32>,
    return
  }
  func.func @transform_0(%arg0: i32, %arg1: i32) -> (i32, i32) {
    %c0_i32 = arith.constant 0 : i32
    %c0_i32_0 = arith.constant 0 : i32
    return %arg0, %c0_i32 : i32, i32
  }
  func.func @transform_1(%arg0: i32, %arg1: i32) -> (i32, i32) {
    %c0_i32 = arith.constant 0 : i32
    %c0_i32_0 = arith.constant 0 : i32
    return %c0_i32, %arg1 : i32, i32
  }
  func.func @transform_2(%arg0: i32, %arg1: i32) -> (i32, i32) {
    %c0_i32 = arith.constant 0 : i32
    return %arg0, %arg1 : i32, i32
  }
}

</mosaic_0001>

<llo_original>
// kernel: _lambda_.13
$region0: #{_lambda_.13}
  #allocation0 [shape = 'u32[]', space=smem, size = 0x4, offset = 0x4, fixed_abs, tag = 'smem constant byte address 0x4 - core index']
  #allocation1 [shape = 'u32[144,128]{1,0:T(1,128)}', space=vmem, size = 0x12000, scoped, tag = 'internal scratch']
  %s0 = inlined_call_operand.vmem [shape: f32[16,32], index: 0, kind: input, shape index: {}]
  %s1 = inlined_call_operand.vmem [shape: f32[1,32], index: 1, kind: input, shape index: {}]
  %s2 = inlined_call_operand.vmem [shape: f32[1,32], index: 2, kind: input, shape index: {}]
  %s3 = inlined_call_operand.vmem [shape: f32[16,32], index: 3, kind: output, shape index: {}]
  %s4 = sld [smem:[#allocation0]]
  $region22: #{_lambda_.13} parent=0
    _
  %s6 = ssub.s32 1, %s4
  %s7 = scalar_select 0, %s6, %s4
  // Predicated region
  $region2: #{_lambda_.13} parent=0 // pred_check
    _
  $region3: #{_lambda_.13} parent=0 // pred_check_branch
    %9 = sbr.rel (0) target = $region5
  $region4: #{_lambda_.13} parent=0 // pred_region
    _
  $region5: #{_lambda_.13} parent=0 // pred_fallthru
    _
  // Predicated region
  $region6: #{_lambda_.13} parent=0 // pred_check
    _
  $region7: #{_lambda_.13} parent=0 // pred_check_branch
    %11 = sbr.rel (0) target = $region9
  $region8: #{_lambda_.13} parent=0 // pred_region
    _
  $region9: #{_lambda_.13} parent=0 // pred_fallthru
    _
  // Predicated region
  $region10: #{_lambda_.13} parent=0 // pred_check
    _
  $region11: #{_lambda_.13} parent=0 // pred_check_branch
    %13 = sbr.rel (0) target = $region13
  $region12: #{_lambda_.13} parent=0 // pred_region
    _
  $region13: #{_lambda_.13} parent=0 // pred_fallthru
    _
  %v14 = vld [vmem:[%s0] sm:$0xff]
  %v15 = vld [vmem:[%s0 + $0x8] sm:$0xff]
  %vm16 = vcmask 261120
  %v17 = vsel %vm16, %v14, 0.0
  %18 = vadd.xlane.f32.xlu0 %v17
  %v19 = vpop.xlane.xlu0 %18
  %v20 = vsel %vm16, %v15, 0.0
  %21 = vadd.xlane.f32.xlu0 %v20
  %v22 = vpop.xlane.xlu0 %21
  %v23 = vrcp.pop 32.0
  %v24 = vmul.f32 %v19, %v23
  %v25 = vmul.f32 %v22, %v23
  %v26 = vsub.f32 %v14, %v24
  %v27 = vsub.f32 %v15, %v25
  %v28 = vmul.f32 %v26, %v26
  %v29 = vmul.f32 %v27, %v27
  %v30 = vsel %vm16, %v28, 0.0
  %31 = vadd.xlane.f32.xlu0 %v30
  %v32 = vpop.xlane.xlu0 %31
  %v33 = vsel %vm16, %v29, 0.0
  %34 = vadd.xlane.f32.xlu0 %v33
  %v35 = vpop.xlane.xlu0 %34
  %v36 = vmul.f32 %v32, %v23
  %v37 = vmul.f32 %v35, %v23
  %v38 = vadd.f32 %v36, 1e-06
  %v39 = vadd.f32 %v37, 1e-06
  %v40 = vrsqrt.pop %v38
  %v41 = vrsqrt.pop %v39
  %v42 = vmul.f32 %v26, %v40
  %v43 = vmul.f32 %v27, %v41
  %v44 = vld [vmem:[%s1] sm:$0x1]
  %v46 = vlaneseq
  %v47 = vshrl.u32 %v46, 7
  %v48 = vsub.s32 0, %v47
  %v49 = vrot.slane %v44, %v48
  %v51 = vmul.f32 %v42, %v49
  %v52 = vmul.f32 %v43, %v49
  %v53 = vld [vmem:[%s2] sm:$0x1]
  %v55 = vlaneseq
  %v56 = vshrl.u32 %v55, 7
  %v57 = vsub.s32 0, %v56
  %v58 = vrot.slane %v53, %v57
  %v60 = vadd.f32 %v51, %v58
  %v61 = vadd.f32 %v52, %v58
  %62 = vst.msk [vmem:[%s3] sm:$0xff] %vm16, %v60
  %63 = vst.msk [vmem:[%s3 + $0x8] sm:$0xff] %vm16, %v61
  // Predicated region
  $region14: #{_lambda_.13} parent=0 // pred_check
    _
  $region15: #{_lambda_.13} parent=0 // pred_check_branch
    %65 = sbr.rel (0) target = $region17
  $region16: #{_lambda_.13} parent=0 // pred_region
    _
  $region17: #{_lambda_.13} parent=0 // pred_fallthru
    _
  // Predicated region
  $region18: #{_lambda_.13} parent=0 // pred_check
    _
  $region19: #{_lambda_.13} parent=0 // pred_check_branch
    %67 = sbr.rel (0) target = $region21
  $region20: #{_lambda_.13} parent=0 // pred_region
    _
  $region21: #{_lambda_.13} parent=0 // pred_fallthru
    _

// kernel: _lambda_.15
$region0: #{_lambda_.15}
  #allocation0 [shape = 'u32[]', space=smem, size = 0x4, offset = 0x4, fixed_abs, tag = 'smem constant byte address 0x4 - core index']
  #allocation1 [shape = 'u32[144,128]{1,0:T(1,128)}', space=vmem, size = 0x12000, scoped, tag = 'internal scratch']
  #allocation2 [shape = 'f32[16,32]{1,0:T(8,128)}', space=vmem, size = 0x2000, scoped, tag = 'scratch operand']
  %s0 = inlined_call_operand.vmem [shape: f32[16,32], index: 0, kind: input, shape index: {}]
  %s1 = inlined_call_operand.vmem [shape: bf16[32,128], index: 1, kind: input, shape index: {}]
  %s2 = inlined_call_operand.vmem [shape: f32[1,128], index: 2, kind: input, shape index: {}]
  %s3 = inlined_call_operand.vmem [shape: bf16[128,32], index: 3, kind: input, shape index: {}]
  %s4 = inlined_call_operand.vmem [shape: f32[1,32], index: 4, kind: input, shape index: {}]
  %s5 = inlined_call_operand.vmem [shape: f32[1,32], index: 5, kind: input, shape index: {}]
  %s6 = inlined_call_operand.vmem [shape: f32[1,32], index: 6, kind: input, shape index: {}]
  %s7 = inlined_call_operand.vmem [shape: f32[16,32], index: 7, kind: output, shape index: {}]
  %s8 = sld [smem:[#allocation0]]
  $region46: #{_lambda_.15} parent=0
    _
  %s10 = ssub.s32 1, %s8
  %s11 = scalar_select 0, %s10, %s8
  // Predicated region
  $region2: #{_lambda_.15} parent=0 // pred_check
    _
  $region3: #{_lambda_.15} parent=0 // pred_check_branch
    %13 = sbr.rel (0) target = $region5
  $region4: #{_lambda_.15} parent=0 // pred_region
    _
  $region5: #{_lambda_.15} parent=0 // pred_fallthru
    _
  // Predicated region
  $region6: #{_lambda_.15} parent=0 // pred_check
    _
  $region7: #{_lambda_.15} parent=0 // pred_check_branch
    %15 = sbr.rel (0) target = $region9
  $region8: #{_lambda_.15} parent=0 // pred_region
    _
  $region9: #{_lambda_.15} parent=0 // pred_fallthru
    _
  // Predicated region
  $region10: #{_lambda_.15} parent=0 // pred_check
    _
  $region11: #{_lambda_.15} parent=0 // pred_check_branch
    %17 = sbr.rel (0) target = $region13
  $region12: #{_lambda_.15} parent=0 // pred_region
    _
  $region13: #{_lambda_.15} parent=0 // pred_fallthru
    _
  // Predicated region
  $region14: #{_lambda_.15} parent=0 // pred_check
    _
  $region15: #{_lambda_.15} parent=0 // pred_check_branch
    %19 = sbr.rel (0) target = $region17
  $region16: #{_lambda_.15} parent=0 // pred_region
    _
  $region17: #{_lambda_.15} parent=0 // pred_fallthru
    _
  // Predicated region
  $region18: #{_lambda_.15} parent=0 // pred_check
    _
  $region19: #{_lambda_.15} parent=0 // pred_check_branch
    %21 = sbr.rel (0) target = $region21
  $region20: #{_lambda_.15} parent=0 // pred_region
    _
  $region21: #{_lambda_.15} parent=0 // pred_fallthru
    _
  // Predicated region
  $region22: #{_lambda_.15} parent=0 // pred_check
    _
  $region23: #{_lambda_.15} parent=0 // pred_check_branch
    %23 = sbr.rel (0) target = $region25
  $region24: #{_lambda_.15} parent=0 // pred_region
    _
  $region25: #{_lambda_.15} parent=0 // pred_fallthru
    _
  // Predicated region
  $region26: #{_lambda_.15} parent=0 // pred_check
    _
  $region27: #{_lambda_.15} parent=0 // pred_check_branch
    %25 = sbr.rel (0) target = $region29
  $region28: #{_lambda_.15} parent=0 // pred_region
    _
  $region29: #{_lambda_.15} parent=0 // pred_fallthru
    _
  %p27 = scmp.eq.s32.totalorder 0, 0
  // Predicated region
  $region30: #{_lambda_.15} parent=0 // pred_check
    %p28 = pneg %p27
  $region31: #{_lambda_.15} parent=0 // pred_check_branch
    %30 = sbr.rel (%p28) target = $region33
  $region32: #{_lambda_.15} parent=0 // pred_region
    %vm31 = vcmask 261120
    %32 = vst.msk [vmem:[#allocation2] sm:$0xff] %vm31, 0.0
    %33 = vst.msk [vmem:[#allocation2 + $0x8] sm:$0xff] %vm31, 0.0
  $region33: #{_lambda_.15} parent=0 // pred_fallthru
    _
  %v34 = vld [vmem:[%s0] sm:$0xff]
  %v35 = vld [vmem:[%s0 + $0x8] sm:$0xff]
  %v36 = vpack.c.bf16 %v35, %v34
  %v37 = vld [vmem:[%s1] sm:$0xf]
  %v38 = vld [vmem:[%s1 + $0x4] sm:$0xf]
  %v39 = vld [vmem:[%s1 + $0x8] sm:$0xf]
  %v40 = vld [vmem:[%s1 + $0xc] sm:$0xf]
  %v41 = vld [vmem:[%s2] sm:$0x1]
  %v43 = vlaneseq
  %v44 = vshrl.u32 %v43, 7
  %v45 = vsub.s32 0, %v44
  %v46 = vrot.slane %v41, %v45
  %v52 = vunpack.c.l.b16 %v37
  %v53 = vunpack.c.l.b16 %v38
  %v54 = vunpack.c.l.b16 %v39
  %v55 = vunpack.c.l.b16 %v40
  %v56 = vpack.c.b16 %v53, %v52
  %v57 = vpack.c.b16 %v55, %v54
  %vm60 = vcmask 261120
  %v62 = vsel %vm60, %v36, 0
  %64 = vmatprep.subr.bf16.mxu0 0
  %65 = vmatpush1.bf16.msra.mxu0 %v56
  %66 = vmatprep.subr.bf16.mxu0 0
  %67 = vmatpush1.bf16.msra.mxu0 %v57
  %68 = vmatprep.subr.bf16.mxu0 0
  %69 = vmatpush1.bf16.msra.mxu0 0
  %70 = vmatprep.subr.bf16.mxu0 0
  %71 = vmatpush1.bf16.msra.mxu0 0
  %72 = vmatprep.subr.bf16.mxu0 0
  %73 = vmatpush1.bf16.msra.mxu0 0
  %74 = vmatprep.subr.bf16.mxu0 0
  %75 = vmatpush1.bf16.msra.mxu0 0
  %76 = vmatprep.subr.bf16.mxu0 0
  %77 = vmatpush1.bf16.msra.mxu0 0
  %78 = vmatprep.subr.bf16.mxu0 0
  %79 = vmatpush1.bf16.msra.mxu0 0
  %80 = vmatprep.subr.bf16.mxu0 0
  %81 = vmatpush1.bf16.msra.mxu0 0
  %82 = vmatprep.subr.bf16.mxu0 0
  %83 = vmatpush1.bf16.msra.mxu0 0
  %84 = vmatprep.subr.bf16.mxu0 0
  %85 = vmatpush1.bf16.msra.mxu0 0
  %86 = vmatprep.subr.bf16.mxu0 0
  %87 = vmatpush1.bf16.msra.mxu0 0
  %88 = vmatprep.subr.bf16.mxu0 0
  %89 = vmatpush1.bf16.msra.mxu0 0
  %90 = vmatprep.subr.bf16.mxu0 0
  %91 = vmatpush1.bf16.msra.mxu0 0
  %92 = vmatprep.subr.bf16.mxu0 0
  %93 = vmatpush1.bf16.msra.mxu0 0
  %94 = vmatprep.subr.bf16.mxu0 0
  %95 = vmatpush1.bf16.msra.mxu0 0
  %96 = vmatprep.mubr.bf16.mxu0 0
  %97 = vmatmul.mubr.bf16.gmra.mrb[0].mxu0 %v62
  %v98 = vpop.f32.mrb[0].mxu0
  %v99 = vadd.f32 %v46, %v98
  %v100 = vpop.f32.mrb[0].mxu0
  %v101 = vpop.f32.mrb[0].mxu0
  %v102 = vadd.f32 %v46, %v101
  %v103 = vpop.f32.mrb[0].mxu0
  %104 = vdwg.mxu0
  %v105 = vmax.f32 %v99, 0.0
  %v106 = vmax.f32 %v102, 0.0
  %v107 = vld [vmem:[#allocation2] sm:$0xff]
  %v108 = vld [vmem:[#allocation2 + $0x8] sm:$0xff]
  %v109 = vpack.c.bf16 %v106, %v105
  %v110 = vld [vmem:[%s3] sm:$0xf]
  %v111 = vld [vmem:[%s3 + $0x4] sm:$0xf]
  %v112 = vld [vmem:[%s3 + $0x8] sm:$0xf]
  %v113 = vld [vmem:[%s3 + $0xc] sm:$0xf]
  %v114 = vld [vmem:[%s3 + $0x10] sm:$0xf]
  %v115 = vld [vmem:[%s3 + $0x14] sm:$0xf]
  %v116 = vld [vmem:[%s3 + $0x18] sm:$0xf]
  %v117 = vld [vmem:[%s3 + $0x1c] sm:$0xf]
  %v118 = vld [vmem:[%s3 + $0x20] sm:$0xf]
  %v119 = vld [vmem:[%s3 + $0x24] sm:$0xf]
  %v120 = vld [vmem:[%s3 + $0x28] sm:$0xf]
  %v121 = vld [vmem:[%s3 + $0x2c] sm:$0xf]
  %v122 = vld [vmem:[%s3 + $0x30] sm:$0xf]
  %v123 = vld [vmem:[%s3 + $0x34] sm:$0xf]
  %v124 = vld [vmem:[%s3 + $0x38] sm:$0xf]
  %v125 = vld [vmem:[%s3 + $0x3c] sm:$0xf]
  %v142 = vunpack.c.l.b16 %v110
  %v143 = vunpack.c.l.b16 %v111
  %v144 = vunpack.c.l.b16 %v112
  %v145 = vunpack.c.l.b16 %v113
  %v146 = vunpack.c.l.b16 %v114
  %v147 = vunpack.c.l.b16 %v115
  %v148 = vunpack.c.l.b16 %v116
  %v149 = vunpack.c.l.b16 %v117
  %v150 = vunpack.c.l.b16 %v118
  %v151 = vunpack.c.l.b16 %v119
  %v152 = vunpack.c.l.b16 %v120
  %v153 = vunpack.c.l.b16 %v121
  %v154 = vunpack.c.l.b16 %v122
  %v155 = vunpack.c.l.b16 %v123
  %v156 = vunpack.c.l.b16 %v124
  %v157 = vunpack.c.l.b16 %v125
  %v158 = vpack.c.b16 %v143, %v142
  %v159 = vpack.c.b16 %v145, %v144
  %v160 = vpack.c.b16 %v147, %v146
  %v161 = vpack.c.b16 %v149, %v148
  %v162 = vpack.c.b16 %v151, %v150
  %v163 = vpack.c.b16 %v153, %v152
  %v164 = vpack.c.b16 %v155, %v154
  %v165 = vpack.c.b16 %v157, %v156
  %174 = vmatprep.subr.bf16.mxu0 0
  %175 = vmatpush1.bf16.msra.mxu0 %v158
  %176 = vmatprep.subr.bf16.mxu0 0
  %177 = vmatpush1.bf16.msra.mxu0 %v159
  %178 = vmatprep.subr.bf16.mxu0 0
  %179 = vmatpush1.bf16.msra.mxu0 %v160
  %180 = vmatprep.subr.bf16.mxu0 0
  %181 = vmatpush1.bf16.msra.mxu0 %v161
  %182 = vmatprep.subr.bf16.mxu0 0
  %183 = vmatpush1.bf16.msra.mxu0 %v162
  %184 = vmatprep.subr.bf16.mxu0 0
  %185 = vmatpush1.bf16.msra.mxu0 %v163
  %186 = vmatprep.subr.bf16.mxu0 0
  %187 = vmatpush1.bf16.msra.mxu0 %v164
  %188 = vmatprep.subr.bf16.mxu0 0
  %189 = vmatpush1.bf16.msra.mxu0 %v165
  %190 = vmatprep.subr.bf16.mxu0 0
  %191 = vmatpush1.bf16.msra.mxu0 0
  %192 = vmatprep.subr.bf16.mxu0 0
  %193 = vmatpush1.bf16.msra.mxu0 0
  %194 = vmatprep.subr.bf16.mxu0 0
  %195 = vmatpush1.bf16.msra.mxu0 0
  %196 = vmatprep.subr.bf16.mxu0 0
  %197 = vmatpush1.bf16.msra.mxu0 0
  %198 = vmatprep.subr.bf16.mxu0 0
  %199 = vmatpush1.bf16.msra.mxu0 0
  %200 = vmatprep.subr.bf16.mxu0 0
  %201 = vmatpush1.bf16.msra.mxu0 0
  %202 = vmatprep.subr.bf16.mxu0 0
  %203 = vmatpush1.bf16.msra.mxu0 0
  %204 = vmatprep.subr.bf16.mxu0 0
  %205 = vmatpush1.bf16.msra.mxu0 0
  %206 = vmatprep.mubr.bf16.mxu0 0
  %207 = vmatmul.mubr.bf16.gmra.mrb[0].mxu0 %v109
  %v208 = vpop.f32.mrb[0].mxu0
  %v209 = vadd.f32 0.0, %v208
  %v210 = vpop.f32.mrb[0].mxu0
  %v211 = vpop.f32.mrb[0].mxu0
  %v212 = vadd.f32 0.0, %v211
  %v213 = vpop.f32.mrb[0].mxu0
  %214 = vdwg.mxu0
  %v215 = vadd.f32 %v107, %v209
  %v216 = vadd.f32 %v108, %v212
  %217 = vst.msk [vmem:[#allocation2] sm:$0xff] %vm60, %v215
  %218 = vst.msk [vmem:[#allocation2 + $0x8] sm:$0xff] %vm60, %v216
  // Predicated region
  $region34: #{_lambda_.15} parent=0 // pred_check
    %p219 = pneg %p27
  $region35: #{_lambda_.15} parent=0 // pred_check_branch
    %221 = sbr.rel (%p219) target = $region37
  $region36: #{_lambda_.15} parent=0 // pred_region
    %v222 = vld [vmem:[#allocation2] sm:$0xff]
    %v223 = vld [vmem:[#allocation2 + $0x8] sm:$0xff]
    %v224 = vld [vmem:[%s4] sm:$0x1]
    %v226 = vlaneseq
    %v227 = vshrl.u32 %v226, 7
    %v228 = vsub.s32 0, %v227
    %v229 = vrot.slane %v224, %v228
    %v231 = vadd.f32 %v222, %v229
    %v232 = vadd.f32 %v223, %v229
    %v233 = vld [vmem:[%s0] sm:$0xff]
    %v234 = vld [vmem:[%s0 + $0x8] sm:$0xff]
    %v235 = vadd.f32 %v231, %v233
    %v236 = vadd.f32 %v232, %v234
    %v237 = vsel %vm60, %v235, 0.0
    %238 = vadd.xlane.f32.xlu0 %v237
    %v239 = vpop.xlane.xlu0 %238
    %v240 = vsel %vm60, %v236, 0.0
    %241 = vadd.xlane.f32.xlu0 %v240
    %v242 = vpop.xlane.xlu0 %241
    %v243 = vrcp.pop 32.0
    %v244 = vmul.f32 %v239, %v243
    %v245 = vmul.f32 %v242, %v243
    %v246 = vsub.f32 %v235, %v244
    %v247 = vsub.f32 %v236, %v245
    %v248 = vmul.f32 %v246, %v246
    %v249 = vmul.f32 %v247, %v247
    %v250 = vsel %vm60, %v248, 0.0
    %251 = vadd.xlane.f32.xlu0 %v250
    %v252 = vpop.xlane.xlu0 %251
    %v253 = vsel %vm60, %v249, 0.0
    %254 = vadd.xlane.f32.xlu0 %v253
    %v255 = vpop.xlane.xlu0 %254
    %v256 = vmul.f32 %v252, %v243
    %v257 = vmul.f32 %v255, %v243
    %v258 = vadd.f32 %v256, 1e-06
    %v259 = vadd.f32 %v257, 1e-06
    %v260 = vrsqrt.pop %v258
    %v261 = vrsqrt.pop %v259
    %v262 = vmul.f32 %v246, %v260
    %v263 = vmul.f32 %v247, %v261
    %v264 = vld [vmem:[%s5] sm:$0x1]
    %v266 = vlaneseq
    %v267 = vshrl.u32 %v266, 7
    %v268 = vsub.s32 0, %v267
    %v269 = vrot.slane %v264, %v268
    %v271 = vmul.f32 %v262, %v269
    %v272 = vmul.f32 %v263, %v269
    %v273 = vld [vmem:[%s6] sm:$0x1]
    %v275 = vlaneseq
    %v276 = vshrl.u32 %v275, 7
    %v277 = vsub.s32 0, %v276
    %v278 = vrot.slane %v273, %v277
    %v280 = vadd.f32 %v271, %v278
    %v281 = vadd.f32 %v272, %v278
    %282 = vst.msk [vmem:[%s7] sm:$0xff] %vm60, %v280
    %283 = vst.msk [vmem:[%s7 + $0x8] sm:$0xff] %vm60, %v281
  $region37: #{_lambda_.15} parent=0 // pred_fallthru
    _
  // Predicated region
  $region38: #{_lambda_.15} parent=0 // pred_check
    _
  $region39: #{_lambda_.15} parent=0 // pred_check_branch
    %285 = sbr.rel (0) target = $region41
  $region40: #{_lambda_.15} parent=0 // pred_region
    _
  $region41: #{_lambda_.15} parent=0 // pred_fallthru
    _
  // Predicated region
  $region42: #{_lambda_.15} parent=0 // pred_check
    _
  $region43: #{_lambda_.15} parent=0 // pred_check_branch
    %287 = sbr.rel (0) target = $region45
  $region44: #{_lambda_.15} parent=0 // pred_region
    _
  $region45: #{_lambda_.15} parent=0 // pred_fallthru
    _

// kernel: _lambda_.14
$region0: #{_lambda_.14}
  #allocation0 [shape = 'u32[]', space=smem, size = 0x4, offset = 0x4, fixed_abs, tag = 'smem constant byte address 0x4 - core index']
  #allocation1 [shape = 'u32[144,128]{1,0:T(1,128)}', space=vmem, size = 0x12000, scoped, tag = 'internal scratch']
  %s0 = inlined_call_operand.vmem [shape: s32[2,1,8], index: 0, kind: input, shape index: {}]
  %s1 = inlined_call_operand.vmem [shape: f32[2,8,32], index: 1, kind: input, shape index: {}, may-alias: {1,2}]
  %s2 = inlined_call_operand.vmem [shape: f32[2,8,32], index: 2, kind: input, shape index: {}, may-alias: {1,2}]
  %s3 = inlined_call_operand.vmem [shape: bf16[2,32,16], index: 3, kind: input, shape index: {}]
  %s4 = inlined_call_operand.vmem [shape: bf16[2,32,16], index: 4, kind: input, shape index: {}]
  %s5 = inlined_call_operand.vmem [shape: bf16[2,32,16], index: 5, kind: input, shape index: {}]
  %s6 = inlined_call_operand.vmem [shape: bf16[32,32], index: 6, kind: input, shape index: {}]
  %s7 = inlined_call_operand.vmem [shape: f32[1,32], index: 7, kind: input, shape index: {}]
  %s8 = inlined_call_operand.vmem [shape: f32[1,32], index: 8, kind: input, shape index: {}]
  %s9 = inlined_call_operand.vmem [shape: f32[2,8,32], index: 9, kind: output, shape index: {}]
  %s10 = sld [smem:[#allocation0]]
  $region69: #{_lambda_.14} parent=0
    _
  %s12 = ssub.s32 1, %s10
  %s13 = scalar_select 0, %s12, %s10
  loop: start=0, step=1, limit=4
  $region2: #{_lambda_.14} parent=0 // loop_pre_header
    _
  $region3: #{_lambda_.14} parent=0 // loop_header
    %s15 = sphi 0, %s19
    %p16 = scmp.ge.s32.totalorder %s15, 4
    %s25 = sphi 0, %s27
    %s28 = sphi 0, %s25
    %s29 = sphi 0, %s28
    %s45 = sphi 0, %s29
    %s51 = sphi 0, %s53
    %s54 = sphi 0, %s51
    %s55 = sphi 0, %s54
    %s71 = sphi 0, %s55
    %s77 = sphi 0, %s79
    %s80 = sphi 0, %s77
    %s81 = sphi 0, %s80
    %s97 = sphi 0, %s81
    %s101 = sphi 0, %s101
    %s103 = sphi 0, %s101
    %s104 = sphi 0, %s103
    %s118 = sphi 0, %s104
    %s122 = sphi 0, %s122
    %s124 = sphi 0, %s122
    %s125 = sphi 0, %s124
    %s139 = sphi 0, %s125
    %s143 = sphi 0, %s143
    %s145 = sphi 0, %s143
    %s146 = sphi 0, %s145
    %s160 = sphi 0, %s146
    %s164 = sphi 0, %s164
    %s166 = sphi 0, %s164
    %s167 = sphi 0, %s166
    %s181 = sphi 0, %s167
    %s185 = sphi 0, %s185
    %s187 = sphi 0, %s185
    %s188 = sphi 0, %s187
    %s202 = sphi 0, %s188
    %s206 = sphi 0, %s206
    %s208 = sphi 0, %s206
    %s209 = sphi 0, %s208
    %s223 = sphi 0, %s209
    %s229 = sphi 0, %s231
    %s232 = sphi 0, %s229
    %s233 = sphi 0, %s232
    %s249 = sphi 0, %s233
  $region4: #{_lambda_.14} parent=0 // loop_header_branch
    %18 = sbr.rel (%p16) target = $region8
  $region5: #{_lambda_.14} parent=0 // loop_body
    %s20 = ssub.s32 %s15, 1
    %s21 = ssub.s32 %s15, 2
    %s22 = sadd.s32 %s15, 1
    %s23 = ssub.s32 %s15, %s22
    %p24 = scmp.eq.s32.totalorder %s23, 0
    %s26 = sadd.s32 %s25, 1
    %s27 = scalar_select %p24, %s25, %s26
    %p30 = pneg %p24
    %p31 = scmp.eq.s32.totalorder %s15, 1
    %p32 = por %p30, %p31
    %p33 = scmp.ne.s32.totalorder %s25, %s28
    %p34 = scmp.eq.s32.totalorder %s15, 0
    %p35 = por %p33, %p34
    %p36 = scmp.ne.s32.totalorder %s25, %s28
    %p37 = scmp.eq.s32.totalorder %s20, 1
    %p38 = por %p36, %p37
    %p39 = scmp.ne.s32.totalorder %s28, %s29
    %p40 = scmp.eq.s32.totalorder %s20, 0
    %p41 = por %p39, %p40
    %p42 = scmp.ne.s32.totalorder %s28, %s29
    %p43 = scmp.eq.s32.totalorder %s21, 1
    %p44 = por %p42, %p43
    %p46 = scmp.ne.s32.totalorder %s29, %s45
    %p47 = scmp.eq.s32.totalorder %s21, 0
    %p48 = por %p46, %p47
    %s49 = ssub.s32 %s15, %s22
    %p50 = scmp.eq.s32.totalorder %s49, 0
    %s52 = sadd.s32 %s51, 1
    %s53 = scalar_select %p50, %s51, %s52
    %p56 = pneg %p50
    %p57 = scmp.eq.s32.totalorder %s15, 1
    %p58 = por %p56, %p57
    %p59 = scmp.ne.s32.totalorder %s51, %s54
    %p60 = scmp.eq.s32.totalorder %s15, 0
    %p61 = por %p59, %p60
    %p62 = scmp.ne.s32.totalorder %s51, %s54
    %p63 = scmp.eq.s32.totalorder %s20, 1
    %p64 = por %p62, %p63
    %p65 = scmp.ne.s32.totalorder %s54, %s55
    %p66 = scmp.eq.s32.totalorder %s20, 0
    %p67 = por %p65, %p66
    %p68 = scmp.ne.s32.totalorder %s54, %s55
    %p69 = scmp.eq.s32.totalorder %s21, 1
    %p70 = por %p68, %p69
    %p72 = scmp.ne.s32.totalorder %s55, %s71
    %p73 = scmp.eq.s32.totalorder %s21, 0
    %p74 = por %p72, %p73
    %s75 = ssub.s32 %s15, %s22
    %p76 = scmp.eq.s32.totalorder %s75, 0
    %s78 = sadd.s32 %s77, 1
    %s79 = scalar_select %p76, %s77, %s78
    %p82 = pneg %p76
    %p83 = scmp.eq.s32.totalorder %s15, 1
    %p84 = por %p82, %p83
    %p85 = scmp.ne.s32.totalorder %s77, %s80
    %p86 = scmp.eq.s32.totalorder %s15, 0
    %p87 = por %p85, %p86
    %p88 = scmp.ne.s32.totalorder %s77, %s80
    %p89 = scmp.eq.s32.totalorder %s20, 1
    %p90 = por %p88, %p89
    %p91 = scmp.ne.s32.totalorder %s80, %s81
    %p92 = scmp.eq.s32.totalorder %s20, 0
    %p93 = por %p91, %p92
    %p94 = scmp.ne.s32.totalorder %s80, %s81
    %p95 = scmp.eq.s32.totalorder %s21, 1
    %p96 = por %p94, %p95
    %p98 = scmp.ne.s32.totalorder %s81, %s97
    %p99 = scmp.eq.s32.totalorder %s21, 0
    %p100 = por %p98, %p99
    %s102 = sadd.s32 %s101, 1
    %p105 = scmp.eq.s32.totalorder %s15, 1
    %p106 = scmp.ne.s32.totalorder %s101, %s103
    %p107 = scmp.eq.s32.totalorder %s15, 0
    %p108 = por %p106, %p107
    %p109 = scmp.ne.s32.totalorder %s101, %s103
    %p110 = scmp.eq.s32.totalorder %s20, 1
    %p111 = por %p109, %p110
    %p112 = scmp.ne.s32.totalorder %s103, %s104
    %p113 = scmp.eq.s32.totalorder %s20, 0
    %p114 = por %p112, %p113
    %p115 = scmp.ne.s32.totalorder %s103, %s104
    %p116 = scmp.eq.s32.totalorder %s21, 1
    %p117 = por %p115, %p116
    %p119 = scmp.ne.s32.totalorder %s104, %s118
    %p120 = scmp.eq.s32.totalorder %s21, 0
    %p121 = por %p119, %p120
    %s123 = sadd.s32 %s122, 1
    %p126 = scmp.eq.s32.totalorder %s15, 1
    %p127 = scmp.ne.s32.totalorder %s122, %s124
    %p128 = scmp.eq.s32.totalorder %s15, 0
    %p129 = por %p127, %p128
    %p130 = scmp.ne.s32.totalorder %s122, %s124
    %p131 = scmp.eq.s32.totalorder %s20, 1
    %p132 = por %p130, %p131
    %p133 = scmp.ne.s32.totalorder %s124, %s125
    %p134 = scmp.eq.s32.totalorder %s20, 0
    %p135 = por %p133, %p134
    %p136 = scmp.ne.s32.totalorder %s124, %s125
    %p137 = scmp.eq.s32.totalorder %s21, 1
    %p138 = por %p136, %p137
    %p140 = scmp.ne.s32.totalorder %s125, %s139
    %p141 = scmp.eq.s32.totalorder %s21, 0
    %p142 = por %p140, %p141
    %s144 = sadd.s32 %s143, 1
    %p147 = scmp.eq.s32.totalorder %s15, 1
    %p148 = scmp.ne.s32.totalorder %s143, %s145
    %p149 = scmp.eq.s32.totalorder %s15, 0
    %p150 = por %p148, %p149
    %p151 = scmp.ne.s32.totalorder %s143, %s145
    %p152 = scmp.eq.s32.totalorder %s20, 1
    %p153 = por %p151, %p152
    %p154 = scmp.ne.s32.totalorder %s145, %s146
    %p155 = scmp.eq.s32.totalorder %s20, 0
    %p156 = por %p154, %p155
    %p157 = scmp.ne.s32.totalorder %s145, %s146
    %p158 = scmp.eq.s32.totalorder %s21, 1
    %p159 = por %p157, %p158
    %p161 = scmp.ne.s32.totalorder %s146, %s160
    %p162 = scmp.eq.s32.totalorder %s21, 0
    %p163 = por %p161, %p162
    %s165 = sadd.s32 %s164, 1
    %p168 = scmp.eq.s32.totalorder %s15, 1
    %p169 = scmp.ne.s32.totalorder %s164, %s166
    %p170 = scmp.eq.s32.totalorder %s15, 0
    %p171 = por %p169, %p170
    %p172 = scmp.ne.s32.totalorder %s164, %s166
    %p173 = scmp.eq.s32.totalorder %s20, 1
    %p174 = por %p172, %p173
    %p175 = scmp.ne.s32.totalorder %s166, %s167
    %p176 = scmp.eq.s32.totalorder %s20, 0
    %p177 = por %p175, %p176
    %p178 = scmp.ne.s32.totalorder %s166, %s167
    %p179 = scmp.eq.s32.totalorder %s21, 1
    %p180 = por %p178, %p179
    %p182 = scmp.ne.s32.totalorder %s167, %s181
    %p183 = scmp.eq.s32.totalorder %s21, 0
    %p184 = por %p182, %p183
    %s186 = sadd.s32 %s185, 1
    %p189 = scmp.eq.s32.totalorder %s15, 1
    %p190 = scmp.ne.s32.totalorder %s185, %s187
    %p191 = scmp.eq.s32.totalorder %s15, 0
    %p192 = por %p190, %p191
    %p193 = scmp.ne.s32.totalorder %s185, %s187
    %p194 = scmp.eq.s32.totalorder %s20, 1
    %p195 = por %p193, %p194
    %p196 = scmp.ne.s32.totalorder %s187, %s188
    %p197 = scmp.eq.s32.totalorder %s20, 0
    %p198 = por %p196, %p197
    %p199 = scmp.ne.s32.totalorder %s187, %s188
    %p200 = scmp.eq.s32.totalorder %s21, 1
    %p201 = por %p199, %p200
    %p203 = scmp.ne.s32.totalorder %s188, %s202
    %p204 = scmp.eq.s32.totalorder %s21, 0
    %p205 = por %p203, %p204
    %s207 = sadd.s32 %s206, 1
    %p210 = scmp.eq.s32.totalorder %s15, 1
    %p211 = scmp.ne.s32.totalorder %s206, %s208
    %p212 = scmp.eq.s32.totalorder %s15, 0
    %p213 = por %p211, %p212
    %p214 = scmp.ne.s32.totalorder %s206, %s208
    %p215 = scmp.eq.s32.totalorder %s20, 1
    %p216 = por %p214, %p215
    %p217 = scmp.ne.s32.totalorder %s208, %s209
    %p218 = scmp.eq.s32.totalorder %s20, 0
    %p219 = por %p217, %p218
    %p220 = scmp.ne.s32.totalorder %s208, %s209
    %p221 = scmp.eq.s32.totalorder %s21, 1
    %p222 = por %p220, %p221
    %p224 = scmp.ne.s32.totalorder %s209, %s223
    %p225 = scmp.eq.s32.totalorder %s21, 0
    %p226 = por %p224, %p225
    %s227 = ssub.s32 %s15, %s22
    %p228 = scmp.eq.s32.totalorder %s227, 0
    %s230 = sadd.s32 %s229, 1
    %s231 = scalar_select %p228, %s229, %s230
    %p234 = pneg %p228
    %p235 = scmp.eq.s32.totalorder %s15, 1
    %p236 = por %p234, %p235
    %p237 = scmp.ne.s32.totalorder %s229, %s232
    %p238 = scmp.eq.s32.totalorder %s15, 0
    %p239 = por %p237, %p238
    %p240 = scmp.ne.s32.totalorder %s229, %s232
    %p241 = scmp.eq.s32.totalorder %s20, 1
    %p242 = por %p240, %p241
    %p243 = scmp.ne.s32.totalorder %s232, %s233
    %p244 = scmp.eq.s32.totalorder %s20, 0
    %p245 = por %p243, %p244
    %p246 = scmp.ne.s32.totalorder %s232, %s233
    %p247 = scmp.eq.s32.totalorder %s21, 1
    %p248 = por %p246, %p247
    %p250 = scmp.ne.s32.totalorder %s233, %s249
    %p251 = scmp.eq.s32.totalorder %s21, 0
    %p252 = por %p250, %p251
    %p253 = scmp.le.s32.totalorder 1, %s15
    %p254 = scmp.lt.s32.totalorder %s15, 3
    %p255 = pnand %p253, %p254
    %p256 = pneg %p255
    // Predicated region
    $region9: #{_lambda_.14} parent=5 // pred_check
      _
    $region10: #{_lambda_.14} parent=5 // pred_check_branch
      %258 = sbr.rel (%p255) target = $region12
    $region11: #{_lambda_.14} parent=5 // pred_region
      %s259 = ssub.s32 %s15, 1
      // Predicated region
      $region13: #{_lambda_.14} parent=11 // pred_check
        %p260 = pneg %p114
      $region14: #{_lambda_.14} parent=11 // pred_check_branch
        %262 = sbr.rel (%p260) target = $region16
      $region15: #{_lambda_.14} parent=11 // pred_region
        _
      $region16: #{_lambda_.14} parent=11 // pred_fallthru
        _
      // Predicated region
      $region17: #{_lambda_.14} parent=11 // pred_check
        %p263 = pneg %p135
      $region18: #{_lambda_.14} parent=11 // pred_check_branch
        %265 = sbr.rel (%p263) target = $region20
      $region19: #{_lambda_.14} parent=11 // pred_region
        _
      $region20: #{_lambda_.14} parent=11 // pred_fallthru
        _
      // Predicated region
      $region21: #{_lambda_.14} parent=11 // pred_check
        %p266 = pneg %p156
      $region22: #{_lambda_.14} parent=11 // pred_check_branch
        %268 = sbr.rel (%p266) target = $region24
      $region23: #{_lambda_.14} parent=11 // pred_region
        _
      $region24: #{_lambda_.14} parent=11 // pred_fallthru
        _
      // Predicated region
      $region25: #{_lambda_.14} parent=11 // pred_check
        %p269 = pneg %p177
      $region26: #{_lambda_.14} parent=11 // pred_check_branch
        %271 = sbr.rel (%p269) target = $region28
      $region27: #{_lambda_.14} parent=11 // pred_region
        _
      $region28: #{_lambda_.14} parent=11 // pred_fallthru
        _
      // Predicated region
      $region29: #{_lambda_.14} parent=11 // pred_check
        %p272 = pneg %p198
      $region30: #{_lambda_.14} parent=11 // pred_check_branch
        %274 = sbr.rel (%p272) target = $region32
      $region31: #{_lambda_.14} parent=11 // pred_region
        _
      $region32: #{_lambda_.14} parent=11 // pred_fallthru
        _
      // Predicated region
      $region33: #{_lambda_.14} parent=11 // pred_check
        %p275 = pneg %p219
      $region34: #{_lambda_.14} parent=11 // pred_check_branch
        %277 = sbr.rel (%p275) target = $region36
      $region35: #{_lambda_.14} parent=11 // pred_region
        _
      $region36: #{_lambda_.14} parent=11 // pred_fallthru
        _
    $region12: #{_lambda_.14} parent=5 // pred_fallthru
      _
    %p278 = scmp.lt.s32.totalorder %s15, 2
    // Predicated region
    $region37: #{_lambda_.14} parent=5 // pred_check
      %p279 = pneg %p278
    $region38: #{_lambda_.14} parent=5 // pred_check_branch
      %281 = sbr.rel (%p279) target = $region40
    $region39: #{_lambda_.14} parent=5 // pred_region
      // Predicated region
      $region41: #{_lambda_.14} parent=39 // pred_check
        %p282 = pneg %p35
      $region42: #{_lambda_.14} parent=39 // pred_check_branch
        %284 = sbr.rel (%p282) target = $region44
      $region43: #{_lambda_.14} parent=39 // pred_region
        %p285 = scmp.lt.s32.totalorder %s15, 1
        %s286 = scalar_select %p285, %s15, 1
        %s287 = scalar_lea.vmem %s0, %s286
      $region44: #{_lambda_.14} parent=39 // pred_fallthru
        _
      // Predicated region
      $region45: #{_lambda_.14} parent=39 // pred_check
        %p288 = pneg %p61
      $region46: #{_lambda_.14} parent=39 // pred_check_branch
        %290 = sbr.rel (%p288) target = $region48
      $region47: #{_lambda_.14} parent=39 // pred_region
        %p291 = scmp.lt.s32.totalorder %s15, 1
        %s292 = scalar_select %p291, %s15, 1
        %s293 = smul.addr %s292, 8
        %s294 = scalar_lea.vmem %s1, %s293
      $region48: #{_lambda_.14} parent=39 // pred_fallthru
        _
      // Predicated region
      $region49: #{_lambda_.14} parent=39 // pred_check
        %p295 = pneg %p87
      $region50: #{_lambda_.14} parent=39 // pred_check_branch
        %297 = sbr.rel (%p295) target = $region52
      $region51: #{_lambda_.14} parent=39 // pred_region
        %p298 = scmp.lt.s32.totalorder %s15, 1
        %s299 = scalar_select %p298, %s15, 1
        %s300 = smul.addr %s299, 8
        %s301 = scalar_lea.vmem %s2, %s300
      $region52: #{_lambda_.14} parent=39 // pred_fallthru
        _
    $region40: #{_lambda_.14} parent=5 // pred_fallthru
      _
    %p302 = scmp.le.s32.totalorder 1, %s15
    %p303 = scmp.lt.s32.totalorder %s15, 3
    %p304 = pnand %p302, %p303
    %p305 = pneg %p304
    // Predicated region
    $region53: #{_lambda_.14} parent=5 // pred_check
      _
    $region54: #{_lambda_.14} parent=5 // pred_check_branch
      %307 = sbr.rel (%p304) target = $region56
    $region55: #{_lambda_.14} parent=5 // pred_region
      %s308 = ssub.s32 %s15, 1
      %p309 = scmp.lt.s32.totalorder %s20, 1
      %s310 = scalar_select %p309, %s20, 1
      %s311 = scalar_lea.vmem %s0, %s310
      %p312 = pneg %p41
      %p313 = pneg %p38
      %p314 = scmp.lt.s32.totalorder %s20, 1
      %s315 = scalar_select %p314, %s20, 1
      %s316 = smul.addr %s315, 8
      %s317 = scalar_lea.vmem %s1, %s316
      %p318 = pneg %p67
      %p319 = pneg %p64
      %p320 = scmp.lt.s32.totalorder %s20, 1
      %s321 = scalar_select %p320, %s20, 1
      %s322 = smul.addr %s321, 8
      %s323 = scalar_lea.vmem %s2, %s322
      %p324 = pneg %p93
      %p325 = pneg %p90
      %p326 = pneg %p114
      %p327 = pneg %p111
      %p328 = pneg %p135
      %p329 = pneg %p132
      %p330 = pneg %p156
      %p331 = pneg %p153
      %p332 = pneg %p177
      %p333 = pneg %p174
      %p334 = pneg %p198
      %p335 = pneg %p195
      %p336 = pneg %p219
      %p337 = pneg %p216
      %p338 = pneg %p245
      %p339 = pneg %p242
      %p340 = scmp.lt.s32.totalorder %s20, 1
      %s341 = scalar_select %p340, %s20, 1
      %s342 = smul.addr %s341, 8
      %s343 = scalar_lea.vmem %s9, %s342
      %p344 = scmp.lt.s32.totalorder %s20, 1
      %s345 = scalar_select %p344, %s20, 1
      %s346 = scalar_lea.vmem %s0, %s345
      %p347 = scmp.lt.s32.totalorder %s20, 1
      %s348 = scalar_select %p347, %s20, 1
      %s349 = smul.addr %s348, 8
      %s350 = scalar_lea.vmem %s1, %s349
      %p351 = scmp.lt.s32.totalorder %s20, 1
      %s352 = scalar_select %p351, %s20, 1
      %s353 = smul.addr %s352, 8
      %s354 = scalar_lea.vmem %s2, %s353
      %p355 = scmp.lt.s32.totalorder %s20, 1
      %s356 = scalar_select %p355, %s20, 1
      %s357 = smul.addr %s356, 8
      %s358 = scalar_lea.vmem %s9, %s357
      %v360 = vld [vmem:[%s350] sm:$0xff]
      %v361 = vpack.c.bf16 %v360, %v360
      %v362 = vld [vmem:[%s354] sm:$0xff]
      %v363 = vpack.c.bf16 %v362, %v362
      %v364 = vld [vmem:[%s346] sm:$0x1]
      %vm365 = vcmp.ne.s32.totalorder %v364, 0
      %v366 = vld [vmem:[%s3] sm:$0xf]
      %v367 = vld [vmem:[%s3 + $0x4] sm:$0xf]
      %v368 = vld [vmem:[%s3 + $0x8] sm:$0xf]
      %v369 = vld [vmem:[%s3 + $0xc] sm:$0xf]
      %v374 = vunpack.c.l.b16 %v366
      %v375 = vunpack.c.l.b16 %v367
      %v376 = vunpack.c.l.b16 %v368
      %v377 = vunpack.c.l.b16 %v369
      %v378 = vpack.c.b16 %v375, %v374
      %v379 = vpack.c.b16 %v377, %v376
      %vm382 = vcmask 261120
      %v384 = vsel %vm382, %v361, 0
      %386 = vmatprep.subr.bf16.mxu0 0
      %387 = vmatpush1.bf16.msra.mxu0 %v378
      %388 = vmatprep.subr.bf16.mxu0 0
      %389 = vmatpush1.bf16.msra.mxu0 %v379
      %390 = vmatprep.subr.bf16.mxu0 0
      %391 = vmatpush1.bf16.msra.mxu0 0
      %392 = vmatprep.subr.bf16.mxu0 0
      %393 = vmatpush1.bf16.msra.mxu0 0
      %394 = vmatprep.subr.bf16.mxu0 0
      %395 = vmatpush1.bf16.msra.mxu0 0
      %396 = vmatprep.subr.bf16.mxu0 0
      %397 = vmatpush1.bf16.msra.mxu0 0
      %398 = vmatprep.subr.bf16.mxu0 0
      %399 = vmatpush1.bf16.msra.mxu0 0
      %400 = vmatprep.subr.bf16.mxu0 0
      %401 = vmatpush1.bf16.msra.mxu0 0
      %402 = vmatprep.subr.bf16.mxu0 0
      %403 = vmatpush1.bf16.msra.mxu0 0
      %404 = vmatprep.subr.bf16.mxu0 0
      %405 = vmatpush1.bf16.msra.mxu0 0
      %406 = vmatprep.subr.bf16.mxu0 0
      %407 = vmatpush1.bf16.msra.mxu0 0
      %408 = vmatprep.subr.bf16.mxu0 0
      %409 = vmatpush1.bf16.msra.mxu0 0
      %410 = vmatprep.subr.bf16.mxu0 0
      %411 = vmatpush1.bf16.msra.mxu0 0
      %412 = vmatprep.subr.bf16.mxu0 0
      %413 = vmatpush1.bf16.msra.mxu0 0
      %414 = vmatprep.subr.bf16.mxu0 0
      %415 = vmatpush1.bf16.msra.mxu0 0
      %416 = vmatprep.subr.bf16.mxu0 0
      %417 = vmatpush1.bf16.msra.mxu0 0
      %418 = vmatprep.mubr.bf16.mxu0 0
      %419 = vmatmul.mubr.bf16.gmra.mrb[0].mxu0 %v384
      %v420 = vpop.f32.mrb[0].mxu0
      %v421 = vadd.f32 0.0, %v420
      %v422 = vpop.f32.mrb[0].mxu0
      %v423 = vpop.f32.mrb[0].mxu0
      %v424 = vpop.f32.mrb[0].mxu0
      %425 = vdwg.mxu0
      %v426 = vld [vmem:[%s4] sm:$0xf]
      %v427 = vld [vmem:[%s4 + $0x4] sm:$0xf]
      %v428 = vld [vmem:[%s4 + $0x8] sm:$0xf]
      %v429 = vld [vmem:[%s4 + $0xc] sm:$0xf]
      %v434 = vunpack.c.l.b16 %v426
      %v435 = vunpack.c.l.b16 %v427
      %v436 = vunpack.c.l.b16 %v428
      %v437 = vunpack.c.l.b16 %v429
      %v438 = vpack.c.b16 %v435, %v434
      %v439 = vpack.c.b16 %v437, %v436
      %v443 = vsel %vm382, %v363, 0
      %445 = vmatprep.subr.bf16.mxu0 0
      %446 = vmatpush1.bf16.msra.mxu0 %v438
      %447 = vmatprep.subr.bf16.mxu0 0
      %448 = vmatpush1.bf16.msra.mxu0 %v439
      %449 = vmatprep.subr.bf16.mxu0 0
      %450 = vmatpush1.bf16.msra.mxu0 0
      %451 = vmatprep.subr.bf16.mxu0 0
      %452 = vmatpush1.bf16.msra.mxu0 0
      %453 = vmatprep.subr.bf16.mxu0 0
      %454 = vmatpush1.bf16.msra.mxu0 0
      %455 = vmatprep.subr.bf16.mxu0 0
      %456 = vmatpush1.bf16.msra.mxu0 0
      %457 = vmatprep.subr.bf16.mxu0 0
      %458 = vmatpush1.bf16.msra.mxu0 0
      %459 = vmatprep.subr.bf16.mxu0 0
      %460 = vmatpush1.bf16.msra.mxu0 0
      %461 = vmatprep.subr.bf16.mxu0 0
      %462 = vmatpush1.bf16.msra.mxu0 0
      %463 = vmatprep.subr.bf16.mxu0 0
      %464 = vmatpush1.bf16.msra.mxu0 0
      %465 = vmatprep.subr.bf16.mxu0 0
      %466 = vmatpush1.bf16.msra.mxu0 0
      %467 = vmatprep.subr.bf16.mxu0 0
      %468 = vmatpush1.bf16.msra.mxu0 0
      %469 = vmatprep.subr.bf16.mxu0 0
      %470 = vmatpush1.bf16.msra.mxu0 0
      %471 = vmatprep.subr.bf16.mxu0 0
      %472 = vmatpush1.bf16.msra.mxu0 0
      %473 = vmatprep.subr.bf16.mxu0 0
      %474 = vmatpush1.bf16.msra.mxu0 0
      %475 = vmatprep.subr.bf16.mxu0 0
      %476 = vmatpush1.bf16.msra.mxu0 0
      %477 = vmatprep.mubr.bf16.mxu0 0
      %478 = vmatmul.mubr.bf16.gmra.mrb[0].mxu0 %v443
      %v479 = vpop.f32.mrb[0].mxu0
      %v480 = vadd.f32 0.0, %v479
      %v481 = vpop.f32.mrb[0].mxu0
      %v482 = vpop.f32.mrb[0].mxu0
      %v483 = vpop.f32.mrb[0].mxu0
      %484 = vdwg.mxu0
      %v485 = vld [vmem:[%s5] sm:$0xf]
      %v486 = vld [vmem:[%s5 + $0x4] sm:$0xf]
      %v487 = vld [vmem:[%s5 + $0x8] sm:$0xf]
      %v488 = vld [vmem:[%s5 + $0xc] sm:$0xf]
      %v493 = vunpack.c.l.b16 %v485
      %v494 = vunpack.c.l.b16 %v486
      %v495 = vunpack.c.l.b16 %v487
      %v496 = vunpack.c.l.b16 %v488
      %v497 = vpack.c.b16 %v494, %v493
      %v498 = vpack.c.b16 %v496, %v495
      %501 = vmatprep.subr.bf16.mxu0 0
      %502 = vmatpush1.bf16.msra.mxu0 %v497
      %503 = vmatprep.subr.bf16.mxu0 0
      %504 = vmatpush1.bf16.msra.mxu0 %v498
      %505 = vmatprep.subr.bf16.mxu0 0
      %506 = vmatpush1.bf16.msra.mxu0 0
      %507 = vmatprep.subr.bf16.mxu0 0
      %508 = vmatpush1.bf16.msra.mxu0 0
      %509 = vmatprep.subr.bf16.mxu0 0
      %510 = vmatpush1.bf16.msra.mxu0 0
      %511 = vmatprep.subr.bf16.mxu0 0
      %512 = vmatpush1.bf16.msra.mxu0 0
      %513 = vmatprep.subr.bf16.mxu0 0
      %514 = vmatpush1.bf16.msra.mxu0 0
      %515 = vmatprep.subr.bf16.mxu0 0
      %516 = vmatpush1.bf16.msra.mxu0 0
      %517 = vmatprep.subr.bf16.mxu0 0
      %518 = vmatpush1.bf16.msra.mxu0 0
      %519 = vmatprep.subr.bf16.mxu0 0
      %520 = vmatpush1.bf16.msra.mxu0 0
      %521 = vmatprep.subr.bf16.mxu0 0
      %522 = vmatpush1.bf16.msra.mxu0 0
      %523 = vmatprep.subr.bf16.mxu0 0
      %524 = vmatpush1.bf16.msra.mxu0 0
      %525 = vmatprep.subr.bf16.mxu0 0
      %526 = vmatpush1.bf16.msra.mxu0 0
      %527 = vmatprep.subr.bf16.mxu0 0
      %528 = vmatpush1.bf16.msra.mxu0 0
      %529 = vmatprep.subr.bf16.mxu0 0
      %530 = vmatpush1.bf16.msra.mxu0 0
      %531 = vmatprep.subr.bf16.mxu0 0
      %532 = vmatpush1.bf16.msra.mxu0 0
      %533 = vmatprep.mubr.bf16.mxu0 0
      %534 = vmatmul.mubr.bf16.gmra.mrb[0].mxu0 %v443
      %v535 = vpop.f32.mrb[0].mxu0
      %v536 = vadd.f32 0.0, %v535
      %v537 = vpop.f32.mrb[0].mxu0
      %v538 = vpop.f32.mrb[0].mxu0
      %v539 = vpop.f32.mrb[0].mxu0
      %540 = vdwg.mxu0
      %v541 = vpack.c.bf16 %v421, %v421
      %v542 = vpack.c.bf16 %v480, %v480
      %vm543 = vcmask 130048
      %v545 = vsel %vm543, %v541, 0
      %v548 = vsel %vm543, %v542, 0
      %550 = vmatprep.subr.bf16.mxu0 0
      %551 = vmatpush1.bf16.xpose.msra.mxu0 %v548
      %552 = vmatprep.subr.bf16.mxu0 0
      %553 = vmatpush1.bf16.xpose.msra.mxu0 0
      %554 = vmatprep.subr.bf16.mxu0 0
      %555 = vmatpush1.bf16.xpose.msra.mxu0 0
      %556 = vmatprep.subr.bf16.mxu0 0
      %557 = vmatpush1.bf16.xpose.msra.mxu0 0
      %558 = vmatprep.subr.bf16.mxu0 0
      %559 = vmatpush1.bf16.xpose.msra.mxu0 0
      %560 = vmatprep.subr.bf16.mxu0 0
      %561 = vmatpush1.bf16.xpose.msra.mxu0 0
      %562 = vmatprep.subr.bf16.mxu0 0
      %563 = vmatpush1.bf16.xpose.msra.mxu0 0
      %564 = vmatprep.subr.bf16.mxu0 0
      %565 = vmatpush1.bf16.xpose.msra.mxu0 0
      %566 = vmatprep.subr.bf16.mxu0 0
      %567 = vmatpush1.bf16.xpose.msra.mxu0 0
      %568 = vmatprep.subr.bf16.mxu0 0
      %569 = vmatpush1.bf16.xpose.msra.mxu0 0
      %570 = vmatprep.subr.bf16.mxu0 0
      %571 = vmatpush1.bf16.xpose.msra.mxu0 0
      %572 = vmatprep.subr.bf16.mxu0 0
      %573 = vmatpush1.bf16.xpose.msra.mxu0 0
      %574 = vmatprep.subr.bf16.mxu0 0
      %575 = vmatpush1.bf16.xpose.msra.mxu0 0
      %576 = vmatprep.subr.bf16.mxu0 0
      %577 = vmatpush1.bf16.xpose.msra.mxu0 0
      %578 = vmatprep.subr.bf16.mxu0 0
      %579 = vmatpush1.bf16.xpose.msra.mxu0 0
      %580 = vmatprep.subr.bf16.mxu0 0
      %581 = vmatpush1.bf16.xpose.msra.mxu0 0
      %582 = vmatprep.mubr.bf16.mxu0 0
      %583 = vmatmul.mubr.bf16.gmra.mrb[0].mxu0 %v545
      %v584 = vpop.f32.mrb[0].mxu0
      %v585 = vadd.f32 0.0, %v584
      %v586 = vpop.f32.mrb[0].mxu0
      %v587 = vpop.f32.mrb[0].mxu0
      %v588 = vpop.f32.mrb[0].mxu0
      %589 = vdwg.mxu0
      %v590 = vmul.f32 %v585, 0.25
      %v591 = vsel %vm365, 1, 0
      %v592 = vlaneseq
      %v593 = vshrl.u32 %v592, 7
      %v594 = vsub.s32 0, %v593
      %v595 = vrot.slane %v591, %v594
      %vm596 = vcmp.eq.s32.totalorder %v595, 1
      %v597 = vsel %vm596, %v590, -1e+09
      %vm598 = vcmask 64512
      %v599 = vsel %vm598, %v597, -inf
      %600 = vmax.xlane.f32.xlu0 %v599
      %v601 = vpop.xlane.xlu0 %600
      %v602 = vsub.f32 %v597, %v601
      %v603 = vmul.f32 %v602, 1.442695
      %v604 = vpow.pop %v603
      %v605 = vsel %vm598, %v604, 0.0
      %606 = vadd.xlane.f32.xlu0 %v605
      %v607 = vpop.xlane.xlu0 %606
      %v608 = vrcp.pop %v607
      %v609 = vmul.f32 %v604, %v608
      %v610 = vpack.c.bf16 %v609, %v609
      %v611 = vpack.c.bf16 %v536, %v536
      %v613 = vsel %vm598, %v610, 0
      %vm615 = vcmask 1043456
      %v617 = vsel %vm615, %v611, 0
      %619 = vmatprep.subr.bf16.mxu0 0
      %620 = vmatpush1.bf16.msra.mxu0 %v617
      %621 = vmatprep.subr.bf16.mxu0 0
      %622 = vmatpush1.bf16.msra.mxu0 0
      %623 = vmatprep.subr.bf16.mxu0 0
      %624 = vmatpush1.bf16.msra.mxu0 0
      %625 = vmatprep.subr.bf16.mxu0 0
      %626 = vmatpush1.bf16.msra.mxu0 0
      %627 = vmatprep.subr.bf16.mxu0 0
      %628 = vmatpush1.bf16.msra.mxu0 0
      %629 = vmatprep.subr.bf16.mxu0 0
      %630 = vmatpush1.bf16.msra.mxu0 0
      %631 = vmatprep.subr.bf16.mxu0 0
      %632 = vmatpush1.bf16.msra.mxu0 0
      %633 = vmatprep.subr.bf16.mxu0 0
      %634 = vmatpush1.bf16.msra.mxu0 0
      %635 = vmatprep.subr.bf16.mxu0 0
      %636 = vmatpush1.bf16.msra.mxu0 0
      %637 = vmatprep.subr.bf16.mxu0 0
      %638 = vmatpush1.bf16.msra.mxu0 0
      %639 = vmatprep.subr.bf16.mxu0 0
      %640 = vmatpush1.bf16.msra.mxu0 0
      %641 = vmatprep.subr.bf16.mxu0 0
      %642 = vmatpush1.bf16.msra.mxu0 0
      %643 = vmatprep.subr.bf16.mxu0 0
      %644 = vmatpush1.bf16.msra.mxu0 0
      %645 = vmatprep.subr.bf16.mxu0 0
      %646 = vmatpush1.bf16.msra.mxu0 0
      %647 = vmatprep.subr.bf16.mxu0 0
      %648 = vmatpush1.bf16.msra.mxu0 0
      %649 = vmatprep.subr.bf16.mxu0 0
      %650 = vmatpush1.bf16.msra.mxu0 0
      %651 = vmatprep.mubr.bf16.mxu0 0
      %652 = vmatmul.mubr.bf16.gmra.mrb[0].mxu0 %v613
      %v653 = vpop.f32.mrb[0].mxu0
      %v654 = vadd.f32 0.0, %v653
      %v655 = vpop.f32.mrb[0].mxu0
      %v656 = vpop.f32.mrb[0].mxu0
      %v657 = vpop.f32.mrb[0].mxu0
      %658 = vdwg.mxu0
      %s659 = scalar_lea.vmem %s3, 16
      %v660 = vld [vmem:[%s659] sm:$0xf]
      %v661 = vld [vmem:[%s659 + $0x4] sm:$0xf]
      %v662 = vld [vmem:[%s659 + $0x8] sm:$0xf]
      %v663 = vld [vmem:[%s659 + $0xc] sm:$0xf]
      %v668 = vunpack.c.l.b16 %v660
      %v669 = vunpack.c.l.b16 %v661
      %v670 = vunpack.c.l.b16 %v662
      %v671 = vunpack.c.l.b16 %v663
      %v672 = vpack.c.b16 %v669, %v668
      %v673 = vpack.c.b16 %v671, %v670
      %676 = vmatprep.subr.bf16.mxu0 0
      %677 = vmatpush1.bf16.msra.mxu0 %v672
      %678 = vmatprep.subr.bf16.mxu0 0
      %679 = vmatpush1.bf16.msra.mxu0 %v673
      %680 = vmatprep.subr.bf16.mxu0 0
      %681 = vmatpush1.bf16.msra.mxu0 0
      %682 = vmatprep.subr.bf16.mxu0 0
      %683 = vmatpush1.bf16.msra.mxu0 0
      %684 = vmatprep.subr.bf16.mxu0 0
      %685 = vmatpush1.bf16.msra.mxu0 0
      %686 = vmatprep.subr.bf16.mxu0 0
      %687 = vmatpush1.bf16.msra.mxu0 0
      %688 = vmatprep.subr.bf16.mxu0 0
      %689 = vmatpush1.bf16.msra.mxu0 0
      %690 = vmatprep.subr.bf16.mxu0 0
      %691 = vmatpush1.bf16.msra.mxu0 0
      %692 = vmatprep.subr.bf16.mxu0 0
      %693 = vmatpush1.bf16.msra.mxu0 0
      %694 = vmatprep.subr.bf16.mxu0 0
      %695 = vmatpush1.bf16.msra.mxu0 0
      %696 = vmatprep.subr.bf16.mxu0 0
      %697 = vmatpush1.bf16.msra.mxu0 0
      %698 = vmatprep.subr.bf16.mxu0 0
      %699 = vmatpush1.bf16.msra.mxu0 0
      %700 = vmatprep.subr.bf16.mxu0 0
      %701 = vmatpush1.bf16.msra.mxu0 0
      %702 = vmatprep.subr.bf16.mxu0 0
      %703 = vmatpush1.bf16.msra.mxu0 0
      %704 = vmatprep.subr.bf16.mxu0 0
      %705 = vmatpush1.bf16.msra.mxu0 0
      %706 = vmatprep.subr.bf16.mxu0 0
      %707 = vmatpush1.bf16.msra.mxu0 0
      %708 = vmatprep.mubr.bf16.mxu0 0
      %709 = vmatmul.mubr.bf16.gmra.mrb[0].mxu0 %v384
      %v710 = vpop.f32.mrb[0].mxu0
      %v711 = vadd.f32 0.0, %v710
      %v712 = vpop.f32.mrb[0].mxu0
      %v713 = vpop.f32.mrb[0].mxu0
      %v714 = vpop.f32.mrb[0].mxu0
      %715 = vdwg.mxu0
      %s716 = scalar_lea.vmem %s4, 16
      %v717 = vld [vmem:[%s716] sm:$0xf]
      %v718 = vld [vmem:[%s716 + $0x4] sm:$0xf]
      %v719 = vld [vmem:[%s716 + $0x8] sm:$0xf]
      %v720 = vld [vmem:[%s716 + $0xc] sm:$0xf]
      %v725 = vunpack.c.l.b16 %v717
      %v726 = vunpack.c.l.b16 %v718
      %v727 = vunpack.c.l.b16 %v719
      %v728 = vunpack.c.l.b16 %v720
      %v729 = vpack.c.b16 %v726, %v725
      %v730 = vpack.c.b16 %v728, %v727
      %733 = vmatprep.subr.bf16.mxu0 0
      %734 = vmatpush1.bf16.msra.mxu0 %v729
      %735 = vmatprep.subr.bf16.mxu0 0
      %736 = vmatpush1.bf16.msra.mxu0 %v730
      %737 = vmatprep.subr.bf16.mxu0 0
      %738 = vmatpush1.bf16.msra.mxu0 0
      %739 = vmatprep.subr.bf16.mxu0 0
      %740 = vmatpush1.bf16.msra.mxu0 0
      %741 = vmatprep.subr.bf16.mxu0 0
      %742 = vmatpush1.bf16.msra.mxu0 0
      %743 = vmatprep.subr.bf16.mxu0 0
      %744 = vmatpush1.bf16.msra.mxu0 0
      %745 = vmatprep.subr.bf16.mxu0 0
      %746 = vmatpush1.bf16.msra.mxu0 0
      %747 = vmatprep.subr.bf16.mxu0 0
      %748 = vmatpush1.bf16.msra.mxu0 0
      %749 = vmatprep.subr.bf16.mxu0 0
      %750 = vmatpush1.bf16.msra.mxu0 0
      %751 = vmatprep.subr.bf16.mxu0 0
      %752 = vmatpush1.bf16.msra.mxu0 0
      %753 = vmatprep.subr.bf16.mxu0 0
      %754 = vmatpush1.bf16.msra.mxu0 0
      %755 = vmatprep.subr.bf16.mxu0 0
      %756 = vmatpush1.bf16.msra.mxu0 0
      %757 = vmatprep.subr.bf16.mxu0 0
      %758 = vmatpush1.bf16.msra.mxu0 0
      %759 = vmatprep.subr.bf16.mxu0 0
      %760 = vmatpush1.bf16.msra.mxu0 0
      %761 = vmatprep.subr.bf16.mxu0 0
      %762 = vmatpush1.bf16.msra.mxu0 0
      %763 = vmatprep.subr.bf16.mxu0 0
      %764 = vmatpush1.bf16.msra.mxu0 0
      %765 = vmatprep.mubr.bf16.mxu0 0
      %766 = vmatmul.mubr.bf16.gmra.mrb[0].mxu0 %v443
      %v767 = vpop.f32.mrb[0].mxu0
      %v768 = vadd.f32 0.0, %v767
      %v769 = vpop.f32.mrb[0].mxu0
      %v770 = vpop.f32.mrb[0].mxu0
      %v771 = vpop.f32.mrb[0].mxu0
      %772 = vdwg.mxu0
      %s773 = scalar_lea.vmem %s5, 16
      %v774 = vld [vmem:[%s773] sm:$0xf]
      %v775 = vld [vmem:[%s773 + $0x4] sm:$0xf]
      %v776 = vld [vmem:[%s773 + $0x8] sm:$0xf]
      %v777 = vld [vmem:[%s773 + $0xc] sm:$0xf]
      %v782 = vunpack.c.l.b16 %v774
      %v783 = vunpack.c.l.b16 %v775
      %v784 = vunpack.c.l.b16 %v776
      %v785 = vunpack.c.l.b16 %v777
      %v786 = vpack.c.b16 %v783, %v782
      %v787 = vpack.c.b16 %v785, %v784
      %790 = vmatprep.subr.bf16.mxu0 0
      %791 = vmatpush1.bf16.msra.mxu0 %v786
      %792 = vmatprep.subr.bf16.mxu0 0
      %793 = vmatpush1.bf16.msra.mxu0 %v787
      %794 = vmatprep.subr.bf16.mxu0 0
      %795 = vmatpush1.bf16.msra.mxu0 0
      %796 = vmatprep.subr.bf16.mxu0 0
      %797 = vmatpush1.bf16.msra.mxu0 0
      %798 = vmatprep.subr.bf16.mxu0 0
      %799 = vmatpush1.bf16.msra.mxu0 0
      %800 = vmatprep.subr.bf16.mxu0 0
      %801 = vmatpush1.bf16.msra.mxu0 0
      %802 = vmatprep.subr.bf16.mxu0 0
      %803 = vmatpush1.bf16.msra.mxu0 0
      %804 = vmatprep.subr.bf16.mxu0 0
      %805 = vmatpush1.bf16.msra.mxu0 0
      %806 = vmatprep.subr.bf16.mxu0 0
      %807 = vmatpush1.bf16.msra.mxu0 0
      %808 = vmatprep.subr.bf16.mxu0 0
      %809 = vmatpush1.bf16.msra.mxu0 0
      %810 = vmatprep.subr.bf16.mxu0 0
      %811 = vmatpush1.bf16.msra.mxu0 0
      %812 = vmatprep.subr.bf16.mxu0 0
      %813 = vmatpush1.bf16.msra.mxu0 0
      %814 = vmatprep.subr.bf16.mxu0 0
      %815 = vmatpush1.bf16.msra.mxu0 0
      %816 = vmatprep.subr.bf16.mxu0 0
      %817 = vmatpush1.bf16.msra.mxu0 0
      %818 = vmatprep.subr.bf16.mxu0 0
      %819 = vmatpush1.bf16.msra.mxu0 0
      %820 = vmatprep.subr.bf16.mxu0 0
      %821 = vmatpush1.bf16.msra.mxu0 0
      %822 = vmatprep.mubr.bf16.mxu0 0
      %823 = vmatmul.mubr.bf16.gmra.mrb[0].mxu0 %v443
      %v824 = vpop.f32.mrb[0].mxu0
      %v825 = vadd.f32 0.0, %v824
      %v826 = vpop.f32.mrb[0].mxu0
      %v827 = vpop.f32.mrb[0].mxu0
      %v828 = vpop.f32.mrb[0].mxu0
      %829 = vdwg.mxu0
      %v830 = vpack.c.bf16 %v711, %v711
      %v831 = vpack.c.bf16 %v768, %v768
      %v833 = vsel %vm543, %v830, 0
      %v836 = vsel %vm543, %v831, 0
      %838 = vmatprep.subr.bf16.mxu0 0
      %839 = vmatpush1.bf16.xpose.msra.mxu0 %v836
      %840 = vmatprep.subr.bf16.mxu0 0
      %841 = vmatpush1.bf16.xpose.msra.mxu0 0
      %842 = vmatprep.subr.bf16.mxu0 0
      %843 = vmatpush1.bf16.xpose.msra.mxu0 0
      %844 = vmatprep.subr.bf16.mxu0 0
      %845 = vmatpush1.bf16.xpose.msra.mxu0 0
      %846 = vmatprep.subr.bf16.mxu0 0
      %847 = vmatpush1.bf16.xpose.msra.mxu0 0
      %848 = vmatprep.subr.bf16.mxu0 0
      %849 = vmatpush1.bf16.xpose.msra.mxu0 0
      %850 = vmatprep.subr.bf16.mxu0 0
      %851 = vmatpush1.bf16.xpose.msra.mxu0 0
      %852 = vmatprep.subr.bf16.mxu0 0
      %853 = vmatpush1.bf16.xpose.msra.mxu0 0
      %854 = vmatprep.subr.bf16.mxu0 0
      %855 = vmatpush1.bf16.xpose.msra.mxu0 0
      %856 = vmatprep.subr.bf16.mxu0 0
      %857 = vmatpush1.bf16.xpose.msra.mxu0 0
      %858 = vmatprep.subr.bf16.mxu0 0
      %859 = vmatpush1.bf16.xpose.msra.mxu0 0
      %860 = vmatprep.subr.bf16.mxu0 0
      %861 = vmatpush1.bf16.xpose.msra.mxu0 0
      %862 = vmatprep.subr.bf16.mxu0 0
      %863 = vmatpush1.bf16.xpose.msra.mxu0 0
      %864 = vmatprep.subr.bf16.mxu0 0
      %865 = vmatpush1.bf16.xpose.msra.mxu0 0
      %866 = vmatprep.subr.bf16.mxu0 0
      %867 = vmatpush1.bf16.xpose.msra.mxu0 0
      %868 = vmatprep.subr.bf16.mxu0 0
      %869 = vmatpush1.bf16.xpose.msra.mxu0 0
      %870 = vmatprep.mubr.bf16.mxu0 0
      %871 = vmatmul.mubr.bf16.gmra.mrb[0].mxu0 %v833
      %v872 = vpop.f32.mrb[0].mxu0
      %v873 = vadd.f32 0.0, %v872
      %v874 = vpop.f32.mrb[0].mxu0
      %v875 = vpop.f32.mrb[0].mxu0
      %v876 = vpop.f32.mrb[0].mxu0
      %877 = vdwg.mxu0
      %v878 = vmul.f32 %v873, 0.25
      %v879 = vsel %vm596, %v878, -1e+09
      %v880 = vsel %vm598, %v879, -inf
      %881 = vmax.xlane.f32.xlu0 %v880
      %v882 = vpop.xlane.xlu0 %881
      %v883 = vsub.f32 %v879, %v882
      %v884 = vmul.f32 %v883, 1.442695
      %v885 = vpow.pop %v884
      %v886 = vsel %vm598, %v885, 0.0
      %887 = vadd.xlane.f32.xlu0 %v886
      %v888 = vpop.xlane.xlu0 %887
      %v889 = vrcp.pop %v888
      %v890 = vmul.f32 %v885, %v889
      %v891 = vpack.c.bf16 %v890, %v890
      %v892 = vpack.c.bf16 %v825, %v825
      %v894 = vsel %vm598, %v891, 0
      %v897 = vsel %vm615, %v892, 0
      %899 = vmatprep.subr.bf16.mxu0 0
      %900 = vmatpush1.bf16.msra.mxu0 %v897
      %901 = vmatprep.subr.bf16.mxu0 0
      %902 = vmatpush1.bf16.msra.mxu0 0
      %903 = vmatprep.subr.bf16.mxu0 0
      %904 = vmatpush1.bf16.msra.mxu0 0
      %905 = vmatprep.subr.bf16.mxu0 0
      %906 = vmatpush1.bf16.msra.mxu0 0
      %907 = vmatprep.subr.bf16.mxu0 0
      %908 = vmatpush1.bf16.msra.mxu0 0
      %909 = vmatprep.subr.bf16.mxu0 0
      %910 = vmatpush1.bf16.msra.mxu0 0
      %911 = vmatprep.subr.bf16.mxu0 0
      %912 = vmatpush1.bf16.msra.mxu0 0
      %913 = vmatprep.subr.bf16.mxu0 0
      %914 = vmatpush1.bf16.msra.mxu0 0
      %915 = vmatprep.subr.bf16.mxu0 0
      %916 = vmatpush1.bf16.msra.mxu0 0
      %917 = vmatprep.subr.bf16.mxu0 0
      %918 = vmatpush1.bf16.msra.mxu0 0
      %919 = vmatprep.subr.bf16.mxu0 0
      %920 = vmatpush1.bf16.msra.mxu0 0
      %921 = vmatprep.subr.bf16.mxu0 0
      %922 = vmatpush1.bf16.msra.mxu0 0
      %923 = vmatprep.subr.bf16.mxu0 0
      %924 = vmatpush1.bf16.msra.mxu0 0
      %925 = vmatprep.subr.bf16.mxu0 0
      %926 = vmatpush1.bf16.msra.mxu0 0
      %927 = vmatprep.subr.bf16.mxu0 0
      %928 = vmatpush1.bf16.msra.mxu0 0
      %929 = vmatprep.subr.bf16.mxu0 0
      %930 = vmatpush1.bf16.msra.mxu0 0
      %931 = vmatprep.mubr.bf16.mxu0 0
      %932 = vmatmul.mubr.bf16.gmra.mrb[0].mxu0 %v894
      %v933 = vpop.f32.mrb[0].mxu0
      %v934 = vadd.f32 0.0, %v933
      %v935 = vpop.f32.mrb[0].mxu0
      %v936 = vpop.f32.mrb[0].mxu0
      %v937 = vpop.f32.mrb[0].mxu0
      %938 = vdwg.mxu0
      %940 = vrot.lane.b32.xlu0 %v934, 16
      %v941 = vpop.permute.xlu0 %940
      %v943 = vsel %vm543, %v654, %v941
      %v944 = vpack.c.bf16 %v943, %v943
      %v945 = vld [vmem:[%s6] sm:$0xf]
      %v946 = vld [vmem:[%s6 + $0x4] sm:$0xf]
      %v947 = vld [vmem:[%s6 + $0x8] sm:$0xf]
      %v948 = vld [vmem:[%s6 + $0xc] sm:$0xf]
      %v953 = vunpack.c.l.b16 %v945
      %v954 = vunpack.c.l.b16 %v946
      %v955 = vunpack.c.l.b16 %v947
      %v956 = vunpack.c.l.b16 %v948
      %v957 = vpack.c.b16 %v954, %v953
      %v958 = vpack.c.b16 %v956, %v955
      %v962 = vsel %vm382, %v944, 0
      %964 = vmatprep.subr.bf16.mxu0 0
      %965 = vmatpush1.bf16.msra.mxu0 %v957
      %966 = vmatprep.subr.bf16.mxu0 0
      %967 = vmatpush1.bf16.msra.mxu0 %v958
      %968 = vmatprep.subr.bf16.mxu0 0
      %969 = vmatpush1.bf16.msra.mxu0 0
      %970 = vmatprep.subr.bf16.mxu0 0
      %971 = vmatpush1.bf16.msra.mxu0 0
      %972 = vmatprep.subr.bf16.mxu0 0
      %973 = vmatpush1.bf16.msra.mxu0 0
      %974 = vmatprep.subr.bf16.mxu0 0
      %975 = vmatpush1.bf16.msra.mxu0 0
      %976 = vmatprep.subr.bf16.mxu0 0
      %977 = vmatpush1.bf16.msra.mxu0 0
      %978 = vmatprep.subr.bf16.mxu0 0
      %979 = vmatpush1.bf16.msra.mxu0 0
      %980 = vmatprep.subr.bf16.mxu0 0
      %981 = vmatpush1.bf16.msra.mxu0 0
      %982 = vmatprep.subr.bf16.mxu0 0
      %983 = vmatpush1.bf16.msra.mxu0 0
      %984 = vmatprep.subr.bf16.mxu0 0
      %985 = vmatpush1.bf16.msra.mxu0 0
      %986 = vmatprep.subr.bf16.mxu0 0
      %987 = vmatpush1.bf16.msra.mxu0 0
      %988 = vmatprep.subr.bf16.mxu0 0
      %989 = vmatpush1.bf16.msra.mxu0 0
      %990 = vmatprep.subr.bf16.mxu0 0
      %991 = vmatpush1.bf16.msra.mxu0 0
      %992 = vmatprep.subr.bf16.mxu0 0
      %993 = vmatpush1.bf16.msra.mxu0 0
      %994 = vmatprep.subr.bf16.mxu0 0
      %995 = vmatpush1.bf16.msra.mxu0 0
      %996 = vmatprep.mubr.bf16.mxu0 0
      %997 = vmatmul.mubr.bf16.gmra.mrb[0].mxu0 %v962
      %v998 = vpop.f32.mrb[0].mxu0
      %v999 = vadd.f32 %v360, %v998
      %v1000 = vpop.f32.mrb[0].mxu0
      %v1001 = vpop.f32.mrb[0].mxu0
      %v1002 = vpop.f32.mrb[0].mxu0
      %1003 = vdwg.mxu0
      %v1004 = vsel %vm382, %v999, 0.0
      %1005 = vadd.xlane.f32.xlu0 %v1004
      %v1006 = vpop.xlane.xlu0 %1005
      %v1007 = vrcp.pop 32.0
      %v1008 = vmul.f32 %v1006, %v1007
      %v1009 = vsub.f32 %v999, %v1008
      %v1010 = vmul.f32 %v1009, %v1009
      %v1011 = vsel %vm382, %v1010, 0.0
      %1012 = vadd.xlane.f32.xlu0 %v1011
      %v1013 = vpop.xlane.xlu0 %1012
      %v1014 = vmul.f32 %v1013, %v1007
      %v1015 = vadd.f32 %v1014, 1e-06
      %v1016 = vrsqrt.pop %v1015
      %v1017 = vmul.f32 %v1009, %v1016
      %v1018 = vld [vmem:[%s7] sm:$0x1]
      %v1020 = vlaneseq
      %v1021 = vshrl.u32 %v1020, 7
      %v1022 = vsub.s32 0, %v1021
      %v1023 = vrot.slane %v1018, %v1022
      %v1025 = vmul.f32 %v1017, %v1023
      %v1026 = vld [vmem:[%s8] sm:$0x1]
      %v1028 = vlaneseq
      %v1029 = vshrl.u32 %v1028, 7
      %v1030 = vsub.s32 0, %v1029
      %v1031 = vrot.slane %v1026, %v1030
      %v1033 = vadd.f32 %v1025, %v1031
      %1034 = vst.msk [vmem:[%s358] sm:$0xff] %vm382, %v1033
      %p1035 = scmp.lt.s32.totalorder %s20, 1
      %s1036 = scalar_select %p1035, %s20, 1
      %s1037 = smul.addr %s1036, 8
      %s1038 = scalar_lea.vmem %s9, %s1037
      // Predicated region
      $region57: #{_lambda_.14} parent=55 // pred_check
        %p1039 = pneg %p242
      $region58: #{_lambda_.14} parent=55 // pred_check_branch
        %1041 = sbr.rel (%p1039) target = $region60
      $region59: #{_lambda_.14} parent=55 // pred_region
        _
      $region60: #{_lambda_.14} parent=55 // pred_fallthru
        _
    $region56: #{_lambda_.14} parent=5 // pred_fallthru
      _
    %p1042 = scmp.le.s32.totalorder 2, %s15
    // Predicated region
    $region61: #{_lambda_.14} parent=5 // pred_check
      %p1043 = pneg %p1042
    $region62: #{_lambda_.14} parent=5 // pred_check_branch
      %1045 = sbr.rel (%p1043) target = $region64
    $region63: #{_lambda_.14} parent=5 // pred_region
      %s1046 = ssub.s32 %s15, 2
      // Predicated region
      $region65: #{_lambda_.14} parent=63 // pred_check
        %p1047 = pneg %p248
      $region66: #{_lambda_.14} parent=63 // pred_check_branch
        %1049 = sbr.rel (%p1047) target = $region68
      $region67: #{_lambda_.14} parent=63 // pred_region
        %p1050 = scmp.lt.s32.totalorder %s21, 1
        %s1051 = scalar_select %p1050, %s21, 1
        %s1052 = smul.addr %s1051, 8
        %s1053 = scalar_lea.vmem %s9, %s1052
      $region68: #{_lambda_.14} parent=63 // pred_fallthru
        _
    $region64: #{_lambda_.14} parent=5 // pred_fallthru
      _
  $region6: #{_lambda_.14} parent=0 // loop_footer
    %s19 = sadd.s32 1, %s15
  $region7: #{_lambda_.14} parent=0 // loop_footer_branch
    %14 = sbr.rel target = $region3
  $region8: #{_lambda_.14} parent=0 // loop_exit
    _

// kernel: _lambda_.19
$region0: #{_lambda_.19}
  #allocation0 [shape = 'u32[]', space=smem, size = 0x4, offset = 0x4, fixed_abs, tag = 'smem constant byte address 0x4 - core index']
  #allocation1 [shape = 'u32[144,128]{1,0:T(1,128)}', space=vmem, size = 0x12000, scoped, tag = 'internal scratch']
  %s0 = inlined_call_operand.vmem [shape: s32[2,1,8], index: 0, kind: input, shape index: {}]
  %s1 = inlined_call_operand.vmem [shape: f32[2,8,32], index: 1, kind: input, shape index: {}, may-alias: {1,2}]
  %s2 = inlined_call_operand.vmem [shape: f32[2,8,32], index: 2, kind: input, shape index: {}, may-alias: {1,2}]
  %s3 = inlined_call_operand.vmem [shape: bf16[2,32,16], index: 3, kind: input, shape index: {}]
  %s4 = inlined_call_operand.vmem [shape: bf16[2,32,16], index: 4, kind: input, shape index: {}]
  %s5 = inlined_call_operand.vmem [shape: bf16[2,32,16], index: 5, kind: input, shape index: {}]
  %s6 = inlined_call_operand.vmem [shape: bf16[32,32], index: 6, kind: input, shape index: {}]
  %s7 = inlined_call_operand.vmem [shape: f32[1,32], index: 7, kind: input, shape index: {}]
  %s8 = inlined_call_operand.vmem [shape: f32[1,32], index: 8, kind: input, shape index: {}]
  %s9 = inlined_call_operand.vmem [shape: f32[2,8,32], index: 9, kind: output, shape index: {}]
  %s10 = sld [smem:[#allocation0]]
  $region69: #{_lambda_.19} parent=0
    _
  %s12 = ssub.s32 1, %s10
  %s13 = scalar_select 0, %s12, %s10
  loop: start=0, step=1, limit=4
  $region2: #{_lambda_.19} parent=0 // loop_pre_header
    _
  $region3: #{_lambda_.19} parent=0 // loop_header
    %s15 = sphi 0, %s19
    %p16 = scmp.ge.s32.totalorder %s15, 4
    %s25 = sphi 0, %s27
    %s28 = sphi 0, %s25
    %s29 = sphi 0, %s28
    %s45 = sphi 0, %s29
    %s51 = sphi 0, %s53
    %s54 = sphi 0, %s51
    %s55 = sphi 0, %s54
    %s71 = sphi 0, %s55
    %s77 = sphi 0, %s79
    %s80 = sphi 0, %s77
    %s81 = sphi 0, %s80
    %s97 = sphi 0, %s81
    %s101 = sphi 0, %s101
    %s103 = sphi 0, %s101
    %s104 = sphi 0, %s103
    %s118 = sphi 0, %s104
    %s122 = sphi 0, %s122
    %s124 = sphi 0, %s122
    %s125 = sphi 0, %s124
    %s139 = sphi 0, %s125
    %s143 = sphi 0, %s143
    %s145 = sphi 0, %s143
    %s146 = sphi 0, %s145
    %s160 = sphi 0, %s146
    %s164 = sphi 0, %s164
    %s166 = sphi 0, %s164
    %s167 = sphi 0, %s166
    %s181 = sphi 0, %s167
    %s185 = sphi 0, %s185
    %s187 = sphi 0, %s185
    %s188 = sphi 0, %s187
    %s202 = sphi 0, %s188
    %s206 = sphi 0, %s206
    %s208 = sphi 0, %s206
    %s209 = sphi 0, %s208
    %s223 = sphi 0, %s209
    %s229 = sphi 0, %s231
    %s232 = sphi 0, %s229
    %s233 = sphi 0, %s232
    %s249 = sphi 0, %s233
  $region4: #{_lambda_.19} parent=0 // loop_header_branch
    %18 = sbr.rel (%p16) target = $region8
  $region5: #{_lambda_.19} parent=0 // loop_body
    %s20 = ssub.s32 %s15, 1
    %s21 = ssub.s32 %s15, 2
    %s22 = sadd.s32 %s15, 1
    %s23 = ssub.s32 %s15, %s22
    %p24 = scmp.eq.s32.totalorder %s23, 0
    %s26 = sadd.s32 %s25, 1
    %s27 = scalar_select %p24, %s25, %s26
    %p30 = pneg %p24
    %p31 = scmp.eq.s32.totalorder %s15, 1
    %p32 = por %p30, %p31
    %p33 = scmp.ne.s32.totalorder %s25, %s28
    %p34 = scmp.eq.s32.totalorder %s15, 0
    %p35 = por %p33, %p34
    %p36 = scmp.ne.s32.totalorder %s25, %s28
    %p37 = scmp.eq.s32.totalorder %s20, 1
    %p38 = por %p36, %p37
    %p39 = scmp.ne.s32.totalorder %s28, %s29
    %p40 = scmp.eq.s32.totalorder %s20, 0
    %p41 = por %p39, %p40
    %p42 = scmp.ne.s32.totalorder %s28, %s29
    %p43 = scmp.eq.s32.totalorder %s21, 1
    %p44 = por %p42, %p43
    %p46 = scmp.ne.s32.totalorder %s29, %s45
    %p47 = scmp.eq.s32.totalorder %s21, 0
    %p48 = por %p46, %p47
    %s49 = ssub.s32 %s15, %s22
    %p50 = scmp.eq.s32.totalorder %s49, 0
    %s52 = sadd.s32 %s51, 1
    %s53 = scalar_select %p50, %s51, %s52
    %p56 = pneg %p50
    %p57 = scmp.eq.s32.totalorder %s15, 1
    %p58 = por %p56, %p57
    %p59 = scmp.ne.s32.totalorder %s51, %s54
    %p60 = scmp.eq.s32.totalorder %s15, 0
    %p61 = por %p59, %p60
    %p62 = scmp.ne.s32.totalorder %s51, %s54
    %p63 = scmp.eq.s32.totalorder %s20, 1
    %p64 = por %p62, %p63
    %p65 = scmp.ne.s32.totalorder %s54, %s55
    %p66 = scmp.eq.s32.totalorder %s20, 0
    %p67 = por %p65, %p66
    %p68 = scmp.ne.s32.totalorder %s54, %s55
    %p69 = scmp.eq.s32.totalorder %s21, 1
    %p70 = por %p68, %p69
    %p72 = scmp.ne.s32.totalorder %s55, %s71
    %p73 = scmp.eq.s32.totalorder %s21, 0
    %p74 = por %p72, %p73
    %s75 = ssub.s32 %s15, %s22
    %p76 = scmp.eq.s32.totalorder %s75, 0
    %s78 = sadd.s32 %s77, 1
    %s79 = scalar_select %p76, %s77, %s78
    %p82 = pneg %p76
    %p83 = scmp.eq.s32.totalorder %s15, 1
    %p84 = por %p82, %p83
    %p85 = scmp.ne.s32.totalorder %s77, %s80
    %p86 = scmp.eq.s32.totalorder %s15, 0
    %p87 = por %p85, %p86
    %p88 = scmp.ne.s32.totalorder %s77, %s80
    %p89 = scmp.eq.s32.totalorder %s20, 1
    %p90 = por %p88, %p89
    %p91 = scmp.ne.s32.totalorder %s80, %s81
    %p92 = scmp.eq.s32.totalorder %s20, 0
    %p93 = por %p91, %p92
    %p94 = scmp.ne.s32.totalorder %s80, %s81
    %p95 = scmp.eq.s32.totalorder %s21, 1
    %p96 = por %p94, %p95
    %p98 = scmp.ne.s32.totalorder %s81, %s97
    %p99 = scmp.eq.s32.totalorder %s21, 0
    %p100 = por %p98, %p99
    %s102 = sadd.s32 %s101, 1
    %p105 = scmp.eq.s32.totalorder %s15, 1
    %p106 = scmp.ne.s32.totalorder %s101, %s103
    %p107 = scmp.eq.s32.totalorder %s15, 0
    %p108 = por %p106, %p107
    %p109 = scmp.ne.s32.totalorder %s101, %s103
    %p110 = scmp.eq.s32.totalorder %s20, 1
    %p111 = por %p109, %p110
    %p112 = scmp.ne.s32.totalorder %s103, %s104
    %p113 = scmp.eq.s32.totalorder %s20, 0
    %p114 = por %p112, %p113
    %p115 = scmp.ne.s32.totalorder %s103, %s104
    %p116 = scmp.eq.s32.totalorder %s21, 1
    %p117 = por %p115, %p116
    %p119 = scmp.ne.s32.totalorder %s104, %s118
    %p120 = scmp.eq.s32.totalorder %s21, 0
    %p121 = por %p119, %p120
    %s123 = sadd.s32 %s122, 1
    %p126 = scmp.eq.s32.totalorder %s15, 1
    %p127 = scmp.ne.s32.totalorder %s122, %s124
    %p128 = scmp.eq.s32.totalorder %s15, 0
    %p129 = por %p127, %p128
    %p130 = scmp.ne.s32.totalorder %s122, %s124
    %p131 = scmp.eq.s32.totalorder %s20, 1
    %p132 = por %p130, %p131
    %p133 = scmp.ne.s32.totalorder %s124, %s125
    %p134 = scmp.eq.s32.totalorder %s20, 0
    %p135 = por %p133, %p134
    %p136 = scmp.ne.s32.totalorder %s124, %s125
    %p137 = scmp.eq.s32.totalorder %s21, 1
    %p138 = por %p136, %p137
    %p140 = scmp.ne.s32.totalorder %s125, %s139
    %p141 = scmp.eq.s32.totalorder %s21, 0
    %p142 = por %p140, %p141
    %s144 = sadd.s32 %s143, 1
    %p147 = scmp.eq.s32.totalorder %s15, 1
    %p148 = scmp.ne.s32.totalorder %s143, %s145
    %p149 = scmp.eq.s32.totalorder %s15, 0
    %p150 = por %p148, %p149
    %p151 = scmp.ne.s32.totalorder %s143, %s145
    %p152 = scmp.eq.s32.totalorder %s20, 1
    %p153 = por %p151, %p152
    %p154 = scmp.ne.s32.totalorder %s145, %s146
    %p155 = scmp.eq.s32.totalorder %s20, 0
    %p156 = por %p154, %p155
    %p157 = scmp.ne.s32.totalorder %s145, %s146
    %p158 = scmp.eq.s32.totalorder %s21, 1
    %p159 = por %p157, %p158
    %p161 = scmp.ne.s32.totalorder %s146, %s160
    %p162 = scmp.eq.s32.totalorder %s21, 0
    %p163 = por %p161, %p162
    %s165 = sadd.s32 %s164, 1
    %p168 = scmp.eq.s32.totalorder %s15, 1
    %p169 = scmp.ne.s32.totalorder %s164, %s166
    %p170 = scmp.eq.s32.totalorder %s15, 0
    %p171 = por %p169, %p170
    %p172 = scmp.ne.s32.totalorder %s164, %s166
    %p173 = scmp.eq.s32.totalorder %s20, 1
    %p174 = por %p172, %p173
    %p175 = scmp.ne.s32.totalorder %s166, %s167
    %p176 = scmp.eq.s32.totalorder %s20, 0
    %p177 = por %p175, %p176
    %p178 = scmp.ne.s32.totalorder %s166, %s167
    %p179 = scmp.eq.s32.totalorder %s21, 1
    %p180 = por %p178, %p179
    %p182 = scmp.ne.s32.totalorder %s167, %s181
    %p183 = scmp.eq.s32.totalorder %s21, 0
    %p184 = por %p182, %p183
    %s186 = sadd.s32 %s185, 1
    %p189 = scmp.eq.s32.totalorder %s15, 1
    %p190 = scmp.ne.s32.totalorder %s185, %s187
    %p191 = scmp.eq.s32.totalorder %s15, 0
    %p192 = por %p190, %p191
    %p193 = scmp.ne.s32.totalorder %s185, %s187
    %p194 = scmp.eq.s32.totalorder %s20, 1
    %p195 = por %p193, %p194
    %p196 = scmp.ne.s32.totalorder %s187, %s188
    %p197 = scmp.eq.s32.totalorder %s20, 0
    %p198 = por %p196, %p197
    %p199 = scmp.ne.s32.totalorder %s187, %s188
    %p200 = scmp.eq.s32.totalorder %s21, 1
    %p201 = por %p199, %p200
    %p203 = scmp.ne.s32.totalorder %s188, %s202
    %p204 = scmp.eq.s32.totalorder %s21, 0
    %p205 = por %p203, %p204
    %s207 = sadd.s32 %s206, 1
    %p210 = scmp.eq.s32.totalorder %s15, 1
    %p211 = scmp.ne.s32.totalorder %s206, %s208
    %p212 = scmp.eq.s32.totalorder %s15, 0
    %p213 = por %p211, %p212
    %p214 = scmp.ne.s32.totalorder %s206, %s208
    %p215 = scmp.eq.s32.totalorder %s20, 1
    %p216 = por %p214, %p215
    %p217 = scmp.ne.s32.totalorder %s208, %s209
    %p218 = scmp.eq.s32.totalorder %s20, 0
    %p219 = por %p217, %p218
    %p220 = scmp.ne.s32.totalorder %s208, %s209
    %p221 = scmp.eq.s32.totalorder %s21, 1
    %p222 = por %p220, %p221
    %p224 = scmp.ne.s32.totalorder %s209, %s223
    %p225 = scmp.eq.s32.totalorder %s21, 0
    %p226 = por %p224, %p225
    %s227 = ssub.s32 %s15, %s22
    %p228 = scmp.eq.s32.totalorder %s227, 0
    %s230 = sadd.s32 %s229, 1
    %s231 = scalar_select %p228, %s229, %s230
    %p234 = pneg %p228
    %p235 = scmp.eq.s32.totalorder %s15, 1
    %p236 = por %p234, %p235
    %p237 = scmp.ne.s32.totalorder %s229, %s232
    %p238 = scmp.eq.s32.totalorder %s15, 0
    %p239 = por %p237, %p238
    %p240 = scmp.ne.s32.totalorder %s229, %s232
    %p241 = scmp.eq.s32.totalorder %s20, 1
    %p242 = por %p240, %p241
    %p243 = scmp.ne.s32.totalorder %s232, %s233
    %p244 = scmp.eq.s32.totalorder %s20, 0
    %p245 = por %p243, %p244
    %p246 = scmp.ne.s32.totalorder %s232, %s233
    %p247 = scmp.eq.s32.totalorder %s21, 1
    %p248 = por %p246, %p247
    %p250 = scmp.ne.s32.totalorder %s233, %s249
    %p251 = scmp.eq.s32.totalorder %s21, 0
    %p252 = por %p250, %p251
    %p253 = scmp.le.s32.totalorder 1, %s15
    %p254 = scmp.lt.s32.totalorder %s15, 3
    %p255 = pnand %p253, %p254
    %p256 = pneg %p255
    // Predicated region
    $region9: #{_lambda_.19} parent=5 // pred_check
      _
    $region10: #{_lambda_.19} parent=5 // pred_check_branch
      %258 = sbr.rel (%p255) target = $region12
    $region11: #{_lambda_.19} parent=5 // pred_region
      %s259 = ssub.s32 %s15, 1
      // Predicated region
      $region13: #{_lambda_.19} parent=11 // pred_check
        %p260 = pneg %p114
      $region14: #{_lambda_.19} parent=11 // pred_check_branch
        %262 = sbr.rel (%p260) target = $region16
      $region15: #{_lambda_.19} parent=11 // pred_region
        _
      $region16: #{_lambda_.19} parent=11 // pred_fallthru
        _
      // Predicated region
      $region17: #{_lambda_.19} parent=11 // pred_check
        %p263 = pneg %p135
      $region18: #{_lambda_.19} parent=11 // pred_check_branch
        %265 = sbr.rel (%p263) target = $region20
      $region19: #{_lambda_.19} parent=11 // pred_region
        _
      $region20: #{_lambda_.19} parent=11 // pred_fallthru
        _
      // Predicated region
      $region21: #{_lambda_.19} parent=11 // pred_check
        %p266 = pneg %p156
      $region22: #{_lambda_.19} parent=11 // pred_check_branch
        %268 = sbr.rel (%p266) target = $region24
      $region23: #{_lambda_.19} parent=11 // pred_region
        _
      $region24: #{_lambda_.19} parent=11 // pred_fallthru
        _
      // Predicated region
      $region25: #{_lambda_.19} parent=11 // pred_check
        %p269 = pneg %p177
      $region26: #{_lambda_.19} parent=11 // pred_check_branch
        %271 = sbr.rel (%p269) target = $region28
      $region27: #{_lambda_.19} parent=11 // pred_region
        _
      $region28: #{_lambda_.19} parent=11 // pred_fallthru
        _
      // Predicated region
      $region29: #{_lambda_.19} parent=11 // pred_check
        %p272 = pneg %p198
      $region30: #{_lambda_.19} parent=11 // pred_check_branch
        %274 = sbr.rel (%p272) target = $region32
      $region31: #{_lambda_.19} parent=11 // pred_region
        _
      $region32: #{_lambda_.19} parent=11 // pred_fallthru
        _
      // Predicated region
      $region33: #{_lambda_.19} parent=11 // pred_check
        %p275 = pneg %p219
      $region34: #{_lambda_.19} parent=11 // pred_check_branch
        %277 = sbr.rel (%p275) target = $region36
      $region35: #{_lambda_.19} parent=11 // pred_region
        _
      $region36: #{_lambda_.19} parent=11 // pred_fallthru
        _
    $region12: #{_lambda_.19} parent=5 // pred_fallthru
      _
    %p278 = scmp.lt.s32.totalorder %s15, 2
    // Predicated region
    $region37: #{_lambda_.19} parent=5 // pred_check
      %p279 = pneg %p278
    $region38: #{_lambda_.19} parent=5 // pred_check_branch
      %281 = sbr.rel (%p279) target = $region40
    $region39: #{_lambda_.19} parent=5 // pred_region
      // Predicated region
      $region41: #{_lambda_.19} parent=39 // pred_check
        %p282 = pneg %p35
      $region42: #{_lambda_.19} parent=39 // pred_check_branch
        %284 = sbr.rel (%p282) target = $region44
      $region43: #{_lambda_.19} parent=39 // pred_region
        %p285 = scmp.lt.s32.totalorder %s15, 1
        %s286 = scalar_select %p285, %s15, 1
        %s287 = scalar_lea.vmem %s0, %s286
      $region44: #{_lambda_.19} parent=39 // pred_fallthru
        _
      // Predicated region
      $region45: #{_lambda_.19} parent=39 // pred_check
        %p288 = pneg %p61
      $region46: #{_lambda_.19} parent=39 // pred_check_branch
        %290 = sbr.rel (%p288) target = $region48
      $region47: #{_lambda_.19} parent=39 // pred_region
        %p291 = scmp.lt.s32.totalorder %s15, 1
        %s292 = scalar_select %p291, %s15, 1
        %s293 = smul.addr %s292, 8
        %s294 = scalar_lea.vmem %s1, %s293
      $region48: #{_lambda_.19} parent=39 // pred_fallthru
        _
      // Predicated region
      $region49: #{_lambda_.19} parent=39 // pred_check
        %p295 = pneg %p87
      $region50: #{_lambda_.19} parent=39 // pred_check_branch
        %297 = sbr.rel (%p295) target = $region52
      $region51: #{_lambda_.19} parent=39 // pred_region
        %p298 = scmp.lt.s32.totalorder %s15, 1
        %s299 = scalar_select %p298, %s15, 1
        %s300 = smul.addr %s299, 8
        %s301 = scalar_lea.vmem %s2, %s300
      $region52: #{_lambda_.19} parent=39 // pred_fallthru
        _
    $region40: #{_lambda_.19} parent=5 // pred_fallthru
      _
    %p302 = scmp.le.s32.totalorder 1, %s15
    %p303 = scmp.lt.s32.totalorder %s15, 3
    %p304 = pnand %p302, %p303
    %p305 = pneg %p304
    // Predicated region
    $region53: #{_lambda_.19} parent=5 // pred_check
      _
    $region54: #{_lambda_.19} parent=5 // pred_check_branch
      %307 = sbr.rel (%p304) target = $region56
    $region55: #{_lambda_.19} parent=5 // pred_region
      %s308 = ssub.s32 %s15, 1
      %p309 = scmp.lt.s32.totalorder %s20, 1
      %s310 = scalar_select %p309, %s20, 1
      %s311 = scalar_lea.vmem %s0, %s310
      %p312 = pneg %p41
      %p313 = pneg %p38
      %p314 = scmp.lt.s32.totalorder %s20, 1
      %s315 = scalar_select %p314, %s20, 1
      %s316 = smul.addr %s315, 8
      %s317 = scalar_lea.vmem %s1, %s316
      %p318 = pneg %p67
      %p319 = pneg %p64
      %p320 = scmp.lt.s32.totalorder %s20, 1
      %s321 = scalar_select %p320, %s20, 1
      %s322 = smul.addr %s321, 8
      %s323 = scalar_lea.vmem %s2, %s322
      %p324 = pneg %p93
      %p325 = pneg %p90
      %p326 = pneg %p114
      %p327 = pneg %p111
      %p328 = pneg %p135
      %p329 = pneg %p132
      %p330 = pneg %p156
      %p331 = pneg %p153
      %p332 = pneg %p177
      %p333 = pneg %p174
      %p334 = pneg %p198
      %p335 = pneg %p195
      %p336 = pneg %p219
      %p337 = pneg %p216
      %p338 = pneg %p245
      %p339 = pneg %p242
      %p340 = scmp.lt.s32.totalorder %s20, 1
      %s341 = scalar_select %p340, %s20, 1
      %s342 = smul.addr %s341, 8
      %s343 = scalar_lea.vmem %s9, %s342
      %p344 = scmp.lt.s32.totalorder %s20, 1
      %s345 = scalar_select %p344, %s20, 1
      %s346 = scalar_lea.vmem %s0, %s345
      %p347 = scmp.lt.s32.totalorder %s20, 1
      %s348 = scalar_select %p347, %s20, 1
      %s349 = smul.addr %s348, 8
      %s350 = scalar_lea.vmem %s1, %s349
      %p351 = scmp.lt.s32.totalorder %s20, 1
      %s352 = scalar_select %p351, %s20, 1
      %s353 = smul.addr %s352, 8
      %s354 = scalar_lea.vmem %s2, %s353
      %p355 = scmp.lt.s32.totalorder %s20, 1
      %s356 = scalar_select %p355, %s20, 1
      %s357 = smul.addr %s356, 8
      %s358 = scalar_lea.vmem %s9, %s357
      %v360 = vld [vmem:[%s350] sm:$0xff]
      %v361 = vpack.c.bf16 %v360, %v360
      %v362 = vld [vmem:[%s354] sm:$0xff]
      %v363 = vpack.c.bf16 %v362, %v362
      %v364 = vld [vmem:[%s346] sm:$0x1]
      %vm365 = vcmp.ne.s32.totalorder %v364, 0
      %v366 = vlaneseq
      %v367 = vshrl.u32 %v366, 7
      %v368 = vlaneseq
      %v369 = vand.u32 %v368, 127
      %vm370 = vcmp.le.s32.totalorder %v369, %v367
      %v371 = vsel %vm365, 1, 0
      %v372 = vlaneseq
      %v373 = vshrl.u32 %v372, 7
      %v374 = vsub.s32 0, %v373
      %v375 = vrot.slane %v371, %v374
      %vm376 = vcmp.eq.s32.totalorder %v375, 1
      %vm377 = vmand %vm376, %vm370
      %v378 = vld [vmem:[%s3] sm:$0xf]
      %v379 = vld [vmem:[%s3 + $0x4] sm:$0xf]
      %v380 = vld [vmem:[%s3 + $0x8] sm:$0xf]
      %v381 = vld [vmem:[%s3 + $0xc] sm:$0xf]
      %v386 = vunpack.c.l.b16 %v378
      %v387 = vunpack.c.l.b16 %v379
      %v388 = vunpack.c.l.b16 %v380
      %v389 = vunpack.c.l.b16 %v381
      %v390 = vpack.c.b16 %v387, %v386
      %v391 = vpack.c.b16 %v389, %v388
      %vm394 = vcmask 261120
      %v396 = vsel %vm394, %v361, 0
      %398 = vmatprep.subr.bf16.mxu0 0
      %399 = vmatpush1.bf16.msra.mxu0 %v390
      %400 = vmatprep.subr.bf16.mxu0 0
      %401 = vmatpush1.bf16.msra.mxu0 %v391
      %402 = vmatprep.subr.bf16.mxu0 0
      %403 = vmatpush1.bf16.msra.mxu0 0
      %404 = vmatprep.subr.bf16.mxu0 0
      %405 = vmatpush1.bf16.msra.mxu0 0
      %406 = vmatprep.subr.bf16.mxu0 0
      %407 = vmatpush1.bf16.msra.mxu0 0
      %408 = vmatprep.subr.bf16.mxu0 0
      %409 = vmatpush1.bf16.msra.mxu0 0
      %410 = vmatprep.subr.bf16.mxu0 0
      %411 = vmatpush1.bf16.msra.mxu0 0
      %412 = vmatprep.subr.bf16.mxu0 0
      %413 = vmatpush1.bf16.msra.mxu0 0
      %414 = vmatprep.subr.bf16.mxu0 0
      %415 = vmatpush1.bf16.msra.mxu0 0
      %416 = vmatprep.subr.bf16.mxu0 0
      %417 = vmatpush1.bf16.msra.mxu0 0
      %418 = vmatprep.subr.bf16.mxu0 0
      %419 = vmatpush1.bf16.msra.mxu0 0
      %420 = vmatprep.subr.bf16.mxu0 0
      %421 = vmatpush1.bf16.msra.mxu0 0
      %422 = vmatprep.subr.bf16.mxu0 0
      %423 = vmatpush1.bf16.msra.mxu0 0
      %424 = vmatprep.subr.bf16.mxu0 0
      %425 = vmatpush1.bf16.msra.mxu0 0
      %426 = vmatprep.subr.bf16.mxu0 0
      %427 = vmatpush1.bf16.msra.mxu0 0
      %428 = vmatprep.subr.bf16.mxu0 0
      %429 = vmatpush1.bf16.msra.mxu0 0
      %430 = vmatprep.mubr.bf16.mxu0 0
      %431 = vmatmul.mubr.bf16.gmra.mrb[0].mxu0 %v396
      %v432 = vpop.f32.mrb[0].mxu0
      %v433 = vadd.f32 0.0, %v432
      %v434 = vpop.f32.mrb[0].mxu0
      %v435 = vpop.f32.mrb[0].mxu0
      %v436 = vpop.f32.mrb[0].mxu0
      %437 = vdwg.mxu0
      %v438 = vld [vmem:[%s4] sm:$0xf]
      %v439 = vld [vmem:[%s4 + $0x4] sm:$0xf]
      %v440 = vld [vmem:[%s4 + $0x8] sm:$0xf]
      %v441 = vld [vmem:[%s4 + $0xc] sm:$0xf]
      %v446 = vunpack.c.l.b16 %v438
      %v447 = vunpack.c.l.b16 %v439
      %v448 = vunpack.c.l.b16 %v440
      %v449 = vunpack.c.l.b16 %v441
      %v450 = vpack.c.b16 %v447, %v446
      %v451 = vpack.c.b16 %v449, %v448
      %v455 = vsel %vm394, %v363, 0
      %457 = vmatprep.subr.bf16.mxu0 0
      %458 = vmatpush1.bf16.msra.mxu0 %v450
      %459 = vmatprep.subr.bf16.mxu0 0
      %460 = vmatpush1.bf16.msra.mxu0 %v451
      %461 = vmatprep.subr.bf16.mxu0 0
      %462 = vmatpush1.bf16.msra.mxu0 0
      %463 = vmatprep.subr.bf16.mxu0 0
      %464 = vmatpush1.bf16.msra.mxu0 0
      %465 = vmatprep.subr.bf16.mxu0 0
      %466 = vmatpush1.bf16.msra.mxu0 0
      %467 = vmatprep.subr.bf16.mxu0 0
      %468 = vmatpush1.bf16.msra.mxu0 0
      %469 = vmatprep.subr.bf16.mxu0 0
      %470 = vmatpush1.bf16.msra.mxu0 0
      %471 = vmatprep.subr.bf16.mxu0 0
      %472 = vmatpush1.bf16.msra.mxu0 0
      %473 = vmatprep.subr.bf16.mxu0 0
      %474 = vmatpush1.bf16.msra.mxu0 0
      %475 = vmatprep.subr.bf16.mxu0 0
      %476 = vmatpush1.bf16.msra.mxu0 0
      %477 = vmatprep.subr.bf16.mxu0 0
      %478 = vmatpush1.bf16.msra.mxu0 0
      %479 = vmatprep.subr.bf16.mxu0 0
      %480 = vmatpush1.bf16.msra.mxu0 0
      %481 = vmatprep.subr.bf16.mxu0 0
      %482 = vmatpush1.bf16.msra.mxu0 0
      %483 = vmatprep.subr.bf16.mxu0 0
      %484 = vmatpush1.bf16.msra.mxu0 0
      %485 = vmatprep.subr.bf16.mxu0 0
      %486 = vmatpush1.bf16.msra.mxu0 0
      %487 = vmatprep.subr.bf16.mxu0 0
      %488 = vmatpush1.bf16.msra.mxu0 0
      %489 = vmatprep.mubr.bf16.mxu0 0
      %490 = vmatmul.mubr.bf16.gmra.mrb[0].mxu0 %v455
      %v491 = vpop.f32.mrb[0].mxu0
      %v492 = vadd.f32 0.0, %v491
      %v493 = vpop.f32.mrb[0].mxu0
      %v494 = vpop.f32.mrb[0].mxu0
      %v495 = vpop.f32.mrb[0].mxu0
      %496 = vdwg.mxu0
      %v497 = vld [vmem:[%s5] sm:$0xf]
      %v498 = vld [vmem:[%s5 + $0x4] sm:$0xf]
      %v499 = vld [vmem:[%s5 + $0x8] sm:$0xf]
      %v500 = vld [vmem:[%s5 + $0xc] sm:$0xf]
      %v505 = vunpack.c.l.b16 %v497
      %v506 = vunpack.c.l.b16 %v498
      %v507 = vunpack.c.l.b16 %v499
      %v508 = vunpack.c.l.b16 %v500
      %v509 = vpack.c.b16 %v506, %v505
      %v510 = vpack.c.b16 %v508, %v507
      %513 = vmatprep.subr.bf16.mxu0 0
      %514 = vmatpush1.bf16.msra.mxu0 %v509
      %515 = vmatprep.subr.bf16.mxu0 0
      %516 = vmatpush1.bf16.msra.mxu0 %v510
      %517 = vmatprep.subr.bf16.mxu0 0
      %518 = vmatpush1.bf16.msra.mxu0 0
      %519 = vmatprep.subr.bf16.mxu0 0
      %520 = vmatpush1.bf16.msra.mxu0 0
      %521 = vmatprep.subr.bf16.mxu0 0
      %522 = vmatpush1.bf16.msra.mxu0 0
      %523 = vmatprep.subr.bf16.mxu0 0
      %524 = vmatpush1.bf16.msra.mxu0 0
      %525 = vmatprep.subr.bf16.mxu0 0
      %526 = vmatpush1.bf16.msra.mxu0 0
      %527 = vmatprep.subr.bf16.mxu0 0
      %528 = vmatpush1.bf16.msra.mxu0 0
      %529 = vmatprep.subr.bf16.mxu0 0
      %530 = vmatpush1.bf16.msra.mxu0 0
      %531 = vmatprep.subr.bf16.mxu0 0
      %532 = vmatpush1.bf16.msra.mxu0 0
      %533 = vmatprep.subr.bf16.mxu0 0
      %534 = vmatpush1.bf16.msra.mxu0 0
      %535 = vmatprep.subr.bf16.mxu0 0
      %536 = vmatpush1.bf16.msra.mxu0 0
      %537 = vmatprep.subr.bf16.mxu0 0
      %538 = vmatpush1.bf16.msra.mxu0 0
      %539 = vmatprep.subr.bf16.mxu0 0
      %540 = vmatpush1.bf16.msra.mxu0 0
      %541 = vmatprep.subr.bf16.mxu0 0
      %542 = vmatpush1.bf16.msra.mxu0 0
      %543 = vmatprep.subr.bf16.mxu0 0
      %544 = vmatpush1.bf16.msra.mxu0 0
      %545 = vmatprep.mubr.bf16.mxu0 0
      %546 = vmatmul.mubr.bf16.gmra.mrb[0].mxu0 %v455
      %v547 = vpop.f32.mrb[0].mxu0
      %v548 = vadd.f32 0.0, %v547
      %v549 = vpop.f32.mrb[0].mxu0
      %v550 = vpop.f32.mrb[0].mxu0
      %v551 = vpop.f32.mrb[0].mxu0
      %552 = vdwg.mxu0
      %v553 = vpack.c.bf16 %v433, %v433
      %v554 = vpack.c.bf16 %v492, %v492
      %vm555 = vcmask 130048
      %v557 = vsel %vm555, %v553, 0
      %v560 = vsel %vm555, %v554, 0
      %562 = vmatprep.subr.bf16.mxu0 0
      %563 = vmatpush1.bf16.xpose.msra.mxu0 %v560
      %564 = vmatprep.subr.bf16.mxu0 0
      %565 = vmatpush1.bf16.xpose.msra.mxu0 0
      %566 = vmatprep.subr.bf16.mxu0 0
      %567 = vmatpush1.bf16.xpose.msra.mxu0 0
      %568 = vmatprep.subr.bf16.mxu0 0
      %569 = vmatpush1.bf16.xpose.msra.mxu0 0
      %570 = vmatprep.subr.bf16.mxu0 0
      %571 = vmatpush1.bf16.xpose.msra.mxu0 0
      %572 = vmatprep.subr.bf16.mxu0 0
      %573 = vmatpush1.bf16.xpose.msra.mxu0 0
      %574 = vmatprep.subr.bf16.mxu0 0
      %575 = vmatpush1.bf16.xpose.msra.mxu0 0
      %576 = vmatprep.subr.bf16.mxu0 0
      %577 = vmatpush1.bf16.xpose.msra.mxu0 0
      %578 = vmatprep.subr.bf16.mxu0 0
      %579 = vmatpush1.bf16.xpose.msra.mxu0 0
      %580 = vmatprep.subr.bf16.mxu0 0
      %581 = vmatpush1.bf16.xpose.msra.mxu0 0
      %582 = vmatprep.subr.bf16.mxu0 0
      %583 = vmatpush1.bf16.xpose.msra.mxu0 0
      %584 = vmatprep.subr.bf16.mxu0 0
      %585 = vmatpush1.bf16.xpose.msra.mxu0 0
      %586 = vmatprep.subr.bf16.mxu0 0
      %587 = vmatpush1.bf16.xpose.msra.mxu0 0
      %588 = vmatprep.subr.bf16.mxu0 0
      %589 = vmatpush1.bf16.xpose.msra.mxu0 0
      %590 = vmatprep.subr.bf16.mxu0 0
      %591 = vmatpush1.bf16.xpose.msra.mxu0 0
      %592 = vmatprep.subr.bf16.mxu0 0
      %593 = vmatpush1.bf16.xpose.msra.mxu0 0
      %594 = vmatprep.mubr.bf16.mxu0 0
      %595 = vmatmul.mubr.bf16.gmra.mrb[0].mxu0 %v557
      %v596 = vpop.f32.mrb[0].mxu0
      %v597 = vadd.f32 0.0, %v596
      %v598 = vpop.f32.mrb[0].mxu0
      %v599 = vpop.f32.mrb[0].mxu0
      %v600 = vpop.f32.mrb[0].mxu0
      %601 = vdwg.mxu0
      %v602 = vmul.f32 %v597, 0.25
      %v603 = vsel %vm377, %v602, -1e+09
      %vm604 = vcmask 64512
      %v605 = vsel %vm604, %v603, -inf
      %606 = vmax.xlane.f32.xlu0 %v605
      %v607 = vpop.xlane.xlu0 %606
      %v608 = vsub.f32 %v603, %v607
      %v609 = vmul.f32 %v608, 1.442695
      %v610 = vpow.pop %v609
      %v611 = vsel %vm604, %v610, 0.0
      %612 = vadd.xlane.f32.xlu0 %v611
      %v613 = vpop.xlane.xlu0 %612
      %v614 = vrcp.pop %v613
      %v615 = vmul.f32 %v610, %v614
      %v616 = vpack.c.bf16 %v615, %v615
      %v617 = vpack.c.bf16 %v548, %v548
      %v619 = vsel %vm604, %v616, 0
      %vm621 = vcmask 1043456
      %v623 = vsel %vm621, %v617, 0
      %625 = vmatprep.subr.bf16.mxu0 0
      %626 = vmatpush1.bf16.msra.mxu0 %v623
      %627 = vmatprep.subr.bf16.mxu0 0
      %628 = vmatpush1.bf16.msra.mxu0 0
      %629 = vmatprep.subr.bf16.mxu0 0
      %630 = vmatpush1.bf16.msra.mxu0 0
      %631 = vmatprep.subr.bf16.mxu0 0
      %632 = vmatpush1.bf16.msra.mxu0 0
      %633 = vmatprep.subr.bf16.mxu0 0
      %634 = vmatpush1.bf16.msra.mxu0 0
      %635 = vmatprep.subr.bf16.mxu0 0
      %636 = vmatpush1.bf16.msra.mxu0 0
      %637 = vmatprep.subr.bf16.mxu0 0
      %638 = vmatpush1.bf16.msra.mxu0 0
      %639 = vmatprep.subr.bf16.mxu0 0
      %640 = vmatpush1.bf16.msra.mxu0 0
      %641 = vmatprep.subr.bf16.mxu0 0
      %642 = vmatpush1.bf16.msra.mxu0 0
      %643 = vmatprep.subr.bf16.mxu0 0
      %644 = vmatpush1.bf16.msra.mxu0 0
      %645 = vmatprep.subr.bf16.mxu0 0
      %646 = vmatpush1.bf16.msra.mxu0 0
      %647 = vmatprep.subr.bf16.mxu0 0
      %648 = vmatpush1.bf16.msra.mxu0 0
      %649 = vmatprep.subr.bf16.mxu0 0
      %650 = vmatpush1.bf16.msra.mxu0 0
      %651 = vmatprep.subr.bf16.mxu0 0
      %652 = vmatpush1.bf16.msra.mxu0 0
      %653 = vmatprep.subr.bf16.mxu0 0
      %654 = vmatpush1.bf16.msra.mxu0 0
      %655 = vmatprep.subr.bf16.mxu0 0
      %656 = vmatpush1.bf16.msra.mxu0 0
      %657 = vmatprep.mubr.bf16.mxu0 0
      %658 = vmatmul.mubr.bf16.gmra.mrb[0].mxu0 %v619
      %v659 = vpop.f32.mrb[0].mxu0
      %v660 = vadd.f32 0.0, %v659
      %v661 = vpop.f32.mrb[0].mxu0
      %v662 = vpop.f32.mrb[0].mxu0
      %v663 = vpop.f32.mrb[0].mxu0
      %664 = vdwg.mxu0
      %s665 = scalar_lea.vmem %s3, 16
      %v666 = vld [vmem:[%s665] sm:$0xf]
      %v667 = vld [vmem:[%s665 + $0x4] sm:$0xf]
      %v668 = vld [vmem:[%s665 + $0x8] sm:$0xf]
      %v669 = vld [vmem:[%s665 + $0xc] sm:$0xf]
      %v674 = vunpack.c.l.b16 %v666
      %v675 = vunpack.c.l.b16 %v667
      %v676 = vunpack.c.l.b16 %v668
      %v677 = vunpack.c.l.b16 %v669
      %v678 = vpack.c.b16 %v675, %v674
      %v679 = vpack.c.b16 %v677, %v676
      %682 = vmatprep.subr.bf16.mxu0 0
      %683 = vmatpush1.bf16.msra.mxu0 %v678
      %684 = vmatprep.subr.bf16.mxu0 0
      %685 = vmatpush1.bf16.msra.mxu0 %v679
      %686 = vmatprep.subr.bf16.mxu0 0
      %687 = vmatpush1.bf16.msra.mxu0 0
      %688 = vmatprep.subr.bf16.mxu0 0
      %689 = vmatpush1.bf16.msra.mxu0 0
      %690 = vmatprep.subr.bf16.mxu0 0
      %691 = vmatpush1.bf16.msra.mxu0 0
      %692 = vmatprep.subr.bf16.mxu0 0
      %693 = vmatpush1.bf16.msra.mxu0 0
      %694 = vmatprep.subr.bf16.mxu0 0
      %695 = vmatpush1.bf16.msra.mxu0 0
      %696 = vmatprep.subr.bf16.mxu0 0
      %697 = vmatpush1.bf16.msra.mxu0 0
      %698 = vmatprep.subr.bf16.mxu0 0
      %699 = vmatpush1.bf16.msra.mxu0 0
      %700 = vmatprep.subr.bf16.mxu0 0
      %701 = vmatpush1.bf16.msra.mxu0 0
      %702 = vmatprep.subr.bf16.mxu0 0
      %703 = vmatpush1.bf16.msra.mxu0 0
      %704 = vmatprep.subr.bf16.mxu0 0
      %705 = vmatpush1.bf16.msra.mxu0 0
      %706 = vmatprep.subr.bf16.mxu0 0
      %707 = vmatpush1.bf16.msra.mxu0 0
      %708 = vmatprep.subr.bf16.mxu0 0
      %709 = vmatpush1.bf16.msra.mxu0 0
      %710 = vmatprep.subr.bf16.mxu0 0
      %711 = vmatpush1.bf16.msra.mxu0 0
      %712 = vmatprep.subr.bf16.mxu0 0
      %713 = vmatpush1.bf16.msra.mxu0 0
      %714 = vmatprep.mubr.bf16.mxu0 0
      %715 = vmatmul.mubr.bf16.gmra.mrb[0].mxu0 %v396
      %v716 = vpop.f32.mrb[0].mxu0
      %v717 = vadd.f32 0.0, %v716
      %v718 = vpop.f32.mrb[0].mxu0
      %v719 = vpop.f32.mrb[0].mxu0
      %v720 = vpop.f32.mrb[0].mxu0
      %721 = vdwg.mxu0
      %s722 = scalar_lea.vmem %s4, 16
      %v723 = vld [vmem:[%s722] sm:$0xf]
      %v724 = vld [vmem:[%s722 + $0x4] sm:$0xf]
      %v725 = vld [vmem:[%s722 + $0x8] sm:$0xf]
      %v726 = vld [vmem:[%s722 + $0xc] sm:$0xf]
      %v731 = vunpack.c.l.b16 %v723
      %v732 = vunpack.c.l.b16 %v724
      %v733 = vunpack.c.l.b16 %v725
      %v734 = vunpack.c.l.b16 %v726
      %v735 = vpack.c.b16 %v732, %v731
      %v736 = vpack.c.b16 %v734, %v733
      %739 = vmatprep.subr.bf16.mxu0 0
      %740 = vmatpush1.bf16.msra.mxu0 %v735
      %741 = vmatprep.subr.bf16.mxu0 0
      %742 = vmatpush1.bf16.msra.mxu0 %v736
      %743 = vmatprep.subr.bf16.mxu0 0
      %744 = vmatpush1.bf16.msra.mxu0 0
      %745 = vmatprep.subr.bf16.mxu0 0
      %746 = vmatpush1.bf16.msra.mxu0 0
      %747 = vmatprep.subr.bf16.mxu0 0
      %748 = vmatpush1.bf16.msra.mxu0 0
      %749 = vmatprep.subr.bf16.mxu0 0
      %750 = vmatpush1.bf16.msra.mxu0 0
      %751 = vmatprep.subr.bf16.mxu0 0
      %752 = vmatpush1.bf16.msra.mxu0 0
      %753 = vmatprep.subr.bf16.mxu0 0
      %754 = vmatpush1.bf16.msra.mxu0 0
      %755 = vmatprep.subr.bf16.mxu0 0
      %756 = vmatpush1.bf16.msra.mxu0 0
      %757 = vmatprep.subr.bf16.mxu0 0
      %758 = vmatpush1.bf16.msra.mxu0 0
      %759 = vmatprep.subr.bf16.mxu0 0
      %760 = vmatpush1.bf16.msra.mxu0 0
      %761 = vmatprep.subr.bf16.mxu0 0
      %762 = vmatpush1.bf16.msra.mxu0 0
      %763 = vmatprep.subr.bf16.mxu0 0
      %764 = vmatpush1.bf16.msra.mxu0 0
      %765 = vmatprep.subr.bf16.mxu0 0
      %766 = vmatpush1.bf16.msra.mxu0 0
      %767 = vmatprep.subr.bf16.mxu0 0
      %768 = vmatpush1.bf16.msra.mxu0 0
      %769 = vmatprep.subr.bf16.mxu0 0
      %770 = vmatpush1.bf16.msra.mxu0 0
      %771 = vmatprep.mubr.bf16.mxu0 0
      %772 = vmatmul.mubr.bf16.gmra.mrb[0].mxu0 %v455
      %v773 = vpop.f32.mrb[0].mxu0
      %v774 = vadd.f32 0.0, %v773
      %v775 = vpop.f32.mrb[0].mxu0
      %v776 = vpop.f32.mrb[0].mxu0
      %v777 = vpop.f32.mrb[0].mxu0
      %778 = vdwg.mxu0
      %s779 = scalar_lea.vmem %s5, 16
      %v780 = vld [vmem:[%s779] sm:$0xf]
      %v781 = vld [vmem:[%s779 + $0x4] sm:$0xf]
      %v782 = vld [vmem:[%s779 + $0x8] sm:$0xf]
      %v783 = vld [vmem:[%s779 + $0xc] sm:$0xf]
      %v788 = vunpack.c.l.b16 %v780
      %v789 = vunpack.c.l.b16 %v781
      %v790 = vunpack.c.l.b16 %v782
      %v791 = vunpack.c.l.b16 %v783
      %v792 = vpack.c.b16 %v789, %v788
      %v793 = vpack.c.b16 %v791, %v790
      %796 = vmatprep.subr.bf16.mxu0 0
      %797 = vmatpush1.bf16.msra.mxu0 %v792
      %798 = vmatprep.subr.bf16.mxu0 0
      %799 = vmatpush1.bf16.msra.mxu0 %v793
      %800 = vmatprep.subr.bf16.mxu0 0
      %801 = vmatpush1.bf16.msra.mxu0 0
      %802 = vmatprep.subr.bf16.mxu0 0
      %803 = vmatpush1.bf16.msra.mxu0 0
      %804 = vmatprep.subr.bf16.mxu0 0
      %805 = vmatpush1.bf16.msra.mxu0 0
      %806 = vmatprep.subr.bf16.mxu0 0
      %807 = vmatpush1.bf16.msra.mxu0 0
      %808 = vmatprep.subr.bf16.mxu0 0
      %809 = vmatpush1.bf16.msra.mxu0 0
      %810 = vmatprep.subr.bf16.mxu0 0
      %811 = vmatpush1.bf16.msra.mxu0 0
      %812 = vmatprep.subr.bf16.mxu0 0
      %813 = vmatpush1.bf16.msra.mxu0 0
      %814 = vmatprep.subr.bf16.mxu0 0
      %815 = vmatpush1.bf16.msra.mxu0 0
      %816 = vmatprep.subr.bf16.mxu0 0
      %817 = vmatpush1.bf16.msra.mxu0 0
      %818 = vmatprep.subr.bf16.mxu0 0
      %819 = vmatpush1.bf16.msra.mxu0 0
      %820 = vmatprep.subr.bf16.mxu0 0
      %821 = vmatpush1.bf16.msra.mxu0 0
      %822 = vmatprep.subr.bf16.mxu0 0
      %823 = vmatpush1.bf16.msra.mxu0 0
      %824 = vmatprep.subr.bf16.mxu0 0
      %825 = vmatpush1.bf16.msra.mxu0 0
      %826 = vmatprep.subr.bf16.mxu0 0
      %827 = vmatpush1.bf16.msra.mxu0 0
      %828 = vmatprep.mubr.bf16.mxu0 0
      %829 = vmatmul.mubr.bf16.gmra.mrb[0].mxu0 %v455
      %v830 = vpop.f32.mrb[0].mxu0
      %v831 = vadd.f32 0.0, %v830
      %v832 = vpop.f32.mrb[0].mxu0
      %v833 = vpop.f32.mrb[0].mxu0
      %v834 = vpop.f32.mrb[0].mxu0
      %835 = vdwg.mxu0
      %v836 = vpack.c.bf16 %v717, %v717
      %v837 = vpack.c.bf16 %v774, %v774
      %v839 = vsel %vm555, %v836, 0
      %v842 = vsel %vm555, %v837, 0
      %844 = vmatprep.subr.bf16.mxu0 0
      %845 = vmatpush1.bf16.xpose.msra.mxu0 %v842
      %846 = vmatprep.subr.bf16.mxu0 0
      %847 = vmatpush1.bf16.xpose.msra.mxu0 0
      %848 = vmatprep.subr.bf16.mxu0 0
      %849 = vmatpush1.bf16.xpose.msra.mxu0 0
      %850 = vmatprep.subr.bf16.mxu0 0
      %851 = vmatpush1.bf16.xpose.msra.mxu0 0
      %852 = vmatprep.subr.bf16.mxu0 0
      %853 = vmatpush1.bf16.xpose.msra.mxu0 0
      %854 = vmatprep.subr.bf16.mxu0 0
      %855 = vmatpush1.bf16.xpose.msra.mxu0 0
      %856 = vmatprep.subr.bf16.mxu0 0
      %857 = vmatpush1.bf16.xpose.msra.mxu0 0
      %858 = vmatprep.subr.bf16.mxu0 0
      %859 = vmatpush1.bf16.xpose.msra.mxu0 0
      %860 = vmatprep.subr.bf16.mxu0 0
      %861 = vmatpush1.bf16.xpose.msra.mxu0 0
      %862 = vmatprep.subr.bf16.mxu0 0
      %863 = vmatpush1.bf16.xpose.msra.mxu0 0
      %864 = vmatprep.subr.bf16.mxu0 0
      %865 = vmatpush1.bf16.xpose.msra.mxu0 0
      %866 = vmatprep.subr.bf16.mxu0 0
      %867 = vmatpush1.bf16.xpose.msra.mxu0 0
      %868 = vmatprep.subr.bf16.mxu0 0
      %869 = vmatpush1.bf16.xpose.msra.mxu0 0
      %870 = vmatprep.subr.bf16.mxu0 0
      %871 = vmatpush1.bf16.xpose.msra.mxu0 0
      %872 = vmatprep.subr.bf16.mxu0 0
      %873 = vmatpush1.bf16.xpose.msra.mxu0 0
      %874 = vmatprep.subr.bf16.mxu0 0
      %875 = vmatpush1.bf16.xpose.msra.mxu0 0
      %876 = vmatprep.mubr.bf16.mxu0 0
      %877 = vmatmul.mubr.bf16.gmra.mrb[0].mxu0 %v839
      %v878 = vpop.f32.mrb[0].mxu0
      %v879 = vadd.f32 0.0, %v878
      %v880 = vpop.f32.mrb[0].mxu0
      %v881 = vpop.f32.mrb[0].mxu0
      %v882 = vpop.f32.mrb[0].mxu0
      %883 = vdwg.mxu0
      %v884 = vmul.f32 %v879, 0.25
      %v885 = vsel %vm377, %v884, -1e+09
      %v886 = vsel %vm604, %v885, -inf
      %887 = vmax.xlane.f32.xlu0 %v886
      %v888 = vpop.xlane.xlu0 %887
      %v889 = vsub.f32 %v885, %v888
      %v890 = vmul.f32 %v889, 1.442695
      %v891 = vpow.pop %v890
      %v892 = vsel %vm604, %v891, 0.0
      %893 = vadd.xlane.f32.xlu0 %v892
      %v894 = vpop.xlane.xlu0 %893
      %v895 = vrcp.pop %v894
      %v896 = vmul.f32 %v891, %v895
      %v897 = vpack.c.bf16 %v896, %v896
      %v898 = vpack.c.bf16 %v831, %v831
      %v900 = vsel %vm604, %v897, 0
      %v903 = vsel %vm621, %v898, 0
      %905 = vmatprep.subr.bf16.mxu0 0
      %906 = vmatpush1.bf16.msra.mxu0 %v903
      %907 = vmatprep.subr.bf16.mxu0 0
      %908 = vmatpush1.bf16.msra.mxu0 0
      %909 = vmatprep.subr.bf16.mxu0 0
      %910 = vmatpush1.bf16.msra.mxu0 0
      %911 = vmatprep.subr.bf16.mxu0 0
      %912 = vmatpush1.bf16.msra.mxu0 0
      %913 = vmatprep.subr.bf16.mxu0 0
      %914 = vmatpush1.bf16.msra.mxu0 0
      %915 = vmatprep.subr.bf16.mxu0 0
      %916 = vmatpush1.bf16.msra.mxu0 0
      %917 = vmatprep.subr.bf16.mxu0 0
      %918 = vmatpush1.bf16.msra.mxu0 0
      %919 = vmatprep.subr.bf16.mxu0 0
      %920 = vmatpush1.bf16.msra.mxu0 0
      %921 = vmatprep.subr.bf16.mxu0 0
      %922 = vmatpush1.bf16.msra.mxu0 0
      %923 = vmatprep.subr.bf16.mxu0 0
      %924 = vmatpush1.bf16.msra.mxu0 0
      %925 = vmatprep.subr.bf16.mxu0 0
      %926 = vmatpush1.bf16.msra.mxu0 0
      %927 = vmatprep.subr.bf16.mxu0 0
      %928 = vmatpush1.bf16.msra.mxu0 0
      %929 = vmatprep.subr.bf16.mxu0 0
      %930 = vmatpush1.bf16.msra.mxu0 0
      %931 = vmatprep.subr.bf16.mxu0 0
      %932 = vmatpush1.bf16.msra.mxu0 0
      %933 = vmatprep.subr.bf16.mxu0 0
      %934 = vmatpush1.bf16.msra.mxu0 0
      %935 = vmatprep.subr.bf16.mxu0 0
      %936 = vmatpush1.bf16.msra.mxu0 0
      %937 = vmatprep.mubr.bf16.mxu0 0
      %938 = vmatmul.mubr.bf16.gmra.mrb[0].mxu0 %v900
      %v939 = vpop.f32.mrb[0].mxu0
      %v940 = vadd.f32 0.0, %v939
      %v941 = vpop.f32.mrb[0].mxu0
      %v942 = vpop.f32.mrb[0].mxu0
      %v943 = vpop.f32.mrb[0].mxu0
      %944 = vdwg.mxu0
      %946 = vrot.lane.b32.xlu0 %v940, 16
      %v947 = vpop.permute.xlu0 %946
      %v949 = vsel %vm555, %v660, %v947
      %v950 = vpack.c.bf16 %v949, %v949
      %v951 = vld [vmem:[%s6] sm:$0xf]
      %v952 = vld [vmem:[%s6 + $0x4] sm:$0xf]
      %v953 = vld [vmem:[%s6 + $0x8] sm:$0xf]
      %v954 = vld [vmem:[%s6 + $0xc] sm:$0xf]
      %v959 = vunpack.c.l.b16 %v951
      %v960 = vunpack.c.l.b16 %v952
      %v961 = vunpack.c.l.b16 %v953
      %v962 = vunpack.c.l.b16 %v954
      %v963 = vpack.c.b16 %v960, %v959
      %v964 = vpack.c.b16 %v962, %v961
      %v968 = vsel %vm394, %v950, 0
      %970 = vmatprep.subr.bf16.mxu0 0
      %971 = vmatpush1.bf16.msra.mxu0 %v963
      %972 = vmatprep.subr.bf16.mxu0 0
      %973 = vmatpush1.bf16.msra.mxu0 %v964
      %974 = vmatprep.subr.bf16.mxu0 0
      %975 = vmatpush1.bf16.msra.mxu0 0
      %976 = vmatprep.subr.bf16.mxu0 0
      %977 = vmatpush1.bf16.msra.mxu0 0
      %978 = vmatprep.subr.bf16.mxu0 0
      %979 = vmatpush1.bf16.msra.mxu0 0
      %980 = vmatprep.subr.bf16.mxu0 0
      %981 = vmatpush1.bf16.msra.mxu0 0
      %982 = vmatprep.subr.bf16.mxu0 0
      %983 = vmatpush1.bf16.msra.mxu0 0
      %984 = vmatprep.subr.bf16.mxu0 0
      %985 = vmatpush1.bf16.msra.mxu0 0
      %986 = vmatprep.subr.bf16.mxu0 0
      %987 = vmatpush1.bf16.msra.mxu0 0
      %988 = vmatprep.subr.bf16.mxu0 0
      %989 = vmatpush1.bf16.msra.mxu0 0
      %990 = vmatprep.subr.bf16.mxu0 0
      %991 = vmatpush1.bf16.msra.mxu0 0
      %992 = vmatprep.subr.bf16.mxu0 0
      %993 = vmatpush1.bf16.msra.mxu0 0
      %994 = vmatprep.subr.bf16.mxu0 0
      %995 = vmatpush1.bf16.msra.mxu0 0
      %996 = vmatprep.subr.bf16.mxu0 0
      %997 = vmatpush1.bf16.msra.mxu0 0
      %998 = vmatprep.subr.bf16.mxu0 0
      %999 = vmatpush1.bf16.msra.mxu0 0
      %1000 = vmatprep.subr.bf16.mxu0 0
      %1001 = vmatpush1.bf16.msra.mxu0 0
      %1002 = vmatprep.mubr.bf16.mxu0 0
      %1003 = vmatmul.mubr.bf16.gmra.mrb[0].mxu0 %v968
      %v1004 = vpop.f32.mrb[0].mxu0
      %v1005 = vadd.f32 %v360, %v1004
      %v1006 = vpop.f32.mrb[0].mxu0
      %v1007 = vpop.f32.mrb[0].mxu0
      %v1008 = vpop.f32.mrb[0].mxu0
      %1009 = vdwg.mxu0
      %v1010 = vsel %vm394, %v1005, 0.0
      %1011 = vadd.xlane.f32.xlu0 %v1010
      %v1012 = vpop.xlane.xlu0 %1011
      %v1013 = vrcp.pop 32.0
      %v1014 = vmul.f32 %v1012, %v1013
      %v1015 = vsub.f32 %v1005, %v1014
      %v1016 = vmul.f32 %v1015, %v1015
      %v1017 = vsel %vm394, %v1016, 0.0
      %1018 = vadd.xlane.f32.xlu0 %v1017
      %v1019 = vpop.xlane.xlu0 %1018
      %v1020 = vmul.f32 %v1019, %v1013
      %v1021 = vadd.f32 %v1020, 1e-06
      %v1022 = vrsqrt.pop %v1021
      %v1023 = vmul.f32 %v1015, %v1022
      %v1024 = vld [vmem:[%s7] sm:$0x1]
      %v1026 = vlaneseq
      %v1027 = vshrl.u32 %v1026, 7
      %v1028 = vsub.s32 0, %v1027
      %v1029 = vrot.slane %v1024, %v1028
      %v1031 = vmul.f32 %v1023, %v1029
      %v1032 = vld [vmem:[%s8] sm:$0x1]
      %v1034 = vlaneseq
      %v1035 = vshrl.u32 %v1034, 7
      %v1036 = vsub.s32 0, %v1035
      %v1037 = vrot.slane %v1032, %v1036
      %v1039 = vadd.f32 %v1031, %v1037
      %1040 = vst.msk [vmem:[%s358] sm:$0xff] %vm394, %v1039
      %p1041 = scmp.lt.s32.totalorder %s20, 1
      %s1042 = scalar_select %p1041, %s20, 1
      %s1043 = smul.addr %s1042, 8
      %s1044 = scalar_lea.vmem %s9, %s1043
      // Predicated region
      $region57: #{_lambda_.19} parent=55 // pred_check
        %p1045 = pneg %p242
      $region58: #{_lambda_.19} parent=55 // pred_check_branch
        %1047 = sbr.rel (%p1045) target = $region60
      $region59: #{_lambda_.19} parent=55 // pred_region
        _
      $region60: #{_lambda_.19} parent=55 // pred_fallthru
        _
    $region56: #{_lambda_.19} parent=5 // pred_fallthru
      _
    %p1048 = scmp.le.s32.totalorder 2, %s15
    // Predicated region
    $region61: #{_lambda_.19} parent=5 // pred_check
      %p1049 = pneg %p1048
    $region62: #{_lambda_.19} parent=5 // pred_check_branch
      %1051 = sbr.rel (%p1049) target = $region64
    $region63: #{_lambda_.19} parent=5 // pred_region
      %s1052 = ssub.s32 %s15, 2
      // Predicated region
      $region65: #{_lambda_.19} parent=63 // pred_check
        %p1053 = pneg %p248
      $region66: #{_lambda_.19} parent=63 // pred_check_branch
        %1055 = sbr.rel (%p1053) target = $region68
      $region67: #{_lambda_.19} parent=63 // pred_region
        %p1056 = scmp.lt.s32.totalorder %s21, 1
        %s1057 = scalar_select %p1056, %s21, 1
        %s1058 = smul.addr %s1057, 8
        %s1059 = scalar_lea.vmem %s9, %s1058
      $region68: #{_lambda_.19} parent=63 // pred_fallthru
        _
    $region64: #{_lambda_.19} parent=5 // pred_fallthru
      _
  $region6: #{_lambda_.19} parent=0 // loop_footer
    %s19 = sadd.s32 1, %s15
  $region7: #{_lambda_.19} parent=0 // loop_footer_branch
    %14 = sbr.rel target = $region3
  $region8: #{_lambda_.19} parent=0 // loop_exit
    _

// kernel: _lambda_.25
$region0: #{_lambda_.25}
  #allocation0 [shape = 'u32[]', space=smem, size = 0x4, offset = 0x4, fixed_abs, tag = 'smem constant byte address 0x4 - core index']
  #allocation1 [shape = 'u32[144,128]{1,0:T(1,128)}', space=vmem, size = 0x12000, scoped, tag = 'internal scratch']
  %s0 = inlined_call_operand.vmem [shape: bf16[16,32], index: 0, kind: input, shape index: {}]
  %s1 = inlined_call_operand.vmem [shape: bf16[32,128], index: 1, kind: input, shape index: {}]
  %s2 = inlined_call_operand.vmem [shape: f32[16,128], index: 2, kind: output, shape index: {}]
  %s3 = sld [smem:[#allocation0]]
  $region18: #{_lambda_.25} parent=0
    _
  %s5 = ssub.s32 1, %s3
  %s6 = scalar_select 0, %s5, %s3
  // Predicated region
  $region2: #{_lambda_.25} parent=0 // pred_check
    _
  $region3: #{_lambda_.25} parent=0 // pred_check_branch
    %8 = sbr.rel (0) target = $region5
  $region4: #{_lambda_.25} parent=0 // pred_region
    _
  $region5: #{_lambda_.25} parent=0 // pred_fallthru
    _
  // Predicated region
  $region6: #{_lambda_.25} parent=0 // pred_check
    _
  $region7: #{_lambda_.25} parent=0 // pred_check_branch
    %10 = sbr.rel (0) target = $region9
  $region8: #{_lambda_.25} parent=0 // pred_region
    _
  $region9: #{_lambda_.25} parent=0 // pred_fallthru
    _
  %v12 = vld [vmem:[%s0] sm:$0xf]
  %v13 = vld [vmem:[%s0 + $0x4] sm:$0xf]
  %v14 = vld [vmem:[%s1] sm:$0xf]
  %v15 = vld [vmem:[%s1 + $0x4] sm:$0xf]
  %v16 = vld [vmem:[%s1 + $0x8] sm:$0xf]
  %v17 = vld [vmem:[%s1 + $0xc] sm:$0xf]
  %v20 = vunpack.c.l.b16 %v12
  %v21 = vunpack.c.l.b16 %v13
  %v22 = vpack.c.b16 %v21, %v20
  %v27 = vunpack.c.l.b16 %v14
  %v28 = vunpack.c.l.b16 %v15
  %v29 = vunpack.c.l.b16 %v16
  %v30 = vunpack.c.l.b16 %v17
  %v31 = vpack.c.b16 %v28, %v27
  %v32 = vpack.c.b16 %v30, %v29
  %vm35 = vcmask 261120
  %v37 = vsel %vm35, %v22, 0
  %39 = vmatprep.subr.bf16.mxu0 0
  %40 = vmatpush1.bf16.msra.mxu0 %v31
  %41 = vmatprep.subr.bf16.mxu0 0
  %42 = vmatpush1.bf16.msra.mxu0 %v32
  %43 = vmatprep.subr.bf16.mxu0 0
  %44 = vmatpush1.bf16.msra.mxu0 0
  %45 = vmatprep.subr.bf16.mxu0 0
  %46 = vmatpush1.bf16.msra.mxu0 0
  %47 = vmatprep.subr.bf16.mxu0 0
  %48 = vmatpush1.bf16.msra.mxu0 0
  %49 = vmatprep.subr.bf16.mxu0 0
  %50 = vmatpush1.bf16.msra.mxu0 0
  %51 = vmatprep.subr.bf16.mxu0 0
  %52 = vmatpush1.bf16.msra.mxu0 0
  %53 = vmatprep.subr.bf16.mxu0 0
  %54 = vmatpush1.bf16.msra.mxu0 0
  %55 = vmatprep.subr.bf16.mxu0 0
  %56 = vmatpush1.bf16.msra.mxu0 0
  %57 = vmatprep.subr.bf16.mxu0 0
  %58 = vmatpush1.bf16.msra.mxu0 0
  %59 = vmatprep.subr.bf16.mxu0 0
  %60 = vmatpush1.bf16.msra.mxu0 0
  %61 = vmatprep.subr.bf16.mxu0 0
  %62 = vmatpush1.bf16.msra.mxu0 0
  %63 = vmatprep.subr.bf16.mxu0 0
  %64 = vmatpush1.bf16.msra.mxu0 0
  %65 = vmatprep.subr.bf16.mxu0 0
  %66 = vmatpush1.bf16.msra.mxu0 0
  %67 = vmatprep.subr.bf16.mxu0 0
  %68 = vmatpush1.bf16.msra.mxu0 0
  %69 = vmatprep.subr.bf16.mxu0 0
  %70 = vmatpush1.bf16.msra.mxu0 0
  %71 = vmatprep.mubr.bf16.mxu0 0
  %72 = vmatmul.mubr.bf16.gmra.mrb[0].mxu0 %v37
  %v73 = vpop.f32.mrb[0].mxu0
  %v74 = vadd.f32 0.0, %v73
  %v75 = vpop.f32.mrb[0].mxu0
  %v76 = vpop.f32.mrb[0].mxu0
  %v77 = vadd.f32 0.0, %v76
  %v78 = vpop.f32.mrb[0].mxu0
  %79 = vdwg.mxu0
  %v80 = vmul.f32 %v74, 0.17677669
  %v81 = vmul.f32 %v77, 0.17677669
  %82 = vst [vmem:[%s2] sm:$0xff] %v80
  %83 = vst [vmem:[%s2 + $0x8] sm:$0xff] %v81
  // Predicated region
  $region10: #{_lambda_.25} parent=0 // pred_check
    _
  $region11: #{_lambda_.25} parent=0 // pred_check_branch
    %85 = sbr.rel (0) target = $region13
  $region12: #{_lambda_.25} parent=0 // pred_region
    _
  $region13: #{_lambda_.25} parent=0 // pred_fallthru
    _
  // Predicated region
  $region14: #{_lambda_.25} parent=0 // pred_check
    _
  $region15: #{_lambda_.25} parent=0 // pred_check_branch
    %87 = sbr.rel (0) target = $region17
  $region16: #{_lambda_.25} parent=0 // pred_region
    _
  $region17: #{_lambda_.25} parent=0 // pred_fallthru
    _

</llo_original>
